<compile_context>
chip_gen: v7x
topology: tpu7x:2x2x1
jax: 0.10.0
libtpu: 0.0.40
codegen_flags: <defaults>
</compile_context>

<pallas_src>
import math

import jax
import jax.numpy as jnp
from jax import lax
from jax.experimental import pallas as pl
from jax.experimental.pallas import tpu as pltpu


# ----------------------------- kernel helpers ------------------------------

def _layernorm(x, w, b, eps=1e-6):
    # PyTorch LayerNorm: biased variance over last dim, eps inside rsqrt.
    mu = jnp.mean(x, axis=-1, keepdims=True)
    xc = x - mu
    var = jnp.mean(xc * xc, axis=-1, keepdims=True)
    return xc * lax.rsqrt(var + eps) * w + b


def _gelu_exact(x):
    # torch.nn.functional.gelu default = exact erf-based gelu.
    return 0.5 * x * (1.0 + lax.erf(x * (1.0 / math.sqrt(2.0))))


def _make_block_kernel(S, H, num_heads, head_dim, mlp_dim, tile_s, compute_dtype):
    scale = 1.0 / math.sqrt(head_dim)
    use_approx_recip = (compute_dtype != jnp.float32)

    def kernel(x_ref,
               wqkv_ref, bqkv_ref, wo_ref, bo_ref,
               ln1w_ref, ln1b_ref, ln2w_ref, ln2b_ref,
               w1_ref, b1_ref, w2_ref, b2_ref,
               out_ref, wts_ref,
               q_s, k_s, v_s):
        s_idx = pl.program_id(1)

        # --- once per batch element (s axis is "arbitrary"; scratch persists) ---
        # attention_norm + fused QKV projection, split head-major into VMEM scratch.
        @pl.when(s_idx == 0)
        def _():
            x_full = x_ref[0].astype(jnp.float32)                          # (S, H)
            xn = _layernorm(x_full, ln1w_ref[...], ln1b_ref[...])
            qkv = jnp.dot(xn.astype(compute_dtype),
                          wqkv_ref[...].astype(compute_dtype),
                          preferred_element_type=jnp.float32) + bqkv_ref[...]   # (S, 3H)
            for h in range(num_heads):                                     # fill-once, store-immediately
                lo = h * head_dim
                q_s[h] = (qkv[:, lo:lo + head_dim] * scale).astype(q_s.dtype)
                k_s[h] = qkv[:, H + lo:H + lo + head_dim].astype(k_s.dtype)
                v_s[h] = qkv[:, 2 * H + lo:2 * H + lo + head_dim].astype(v_s.dtype)

        row0 = pl.multiple_of(s_idx * tile_s, tile_s)

        # --- head-batched attention for this query tile (pure batched MXU dots) ---
        q_h = q_s[:, pl.ds(row0, tile_s), :]        # (nh, T, hd), pre-scaled
        k_h = k_s[...]                              # (nh, S, hd)
        v_h = v_s[...]                              # (nh, S, hd)

        scores = lax.dot_general(q_h, k_h, (((2,), (2,)), ((0,), (0,))),
                                 preferred_element_type=jnp.float32)       # (nh, T, S)
        m = jnp.max(scores, axis=-1, keepdims=True)
        e = jnp.exp(scores - m)
        denom = jnp.sum(e, axis=-1, keepdims=True)
        probs = e * pl.reciprocal(denom, approx=use_approx_recip)
        wts_ref[0] = probs.astype(wts_ref.dtype)

        ctx = lax.dot_general(probs.astype(compute_dtype), v_h,
                              (((2,), (1,)), ((0,), (0,))),
                              preferred_element_type=jnp.float32)          # (nh, T, hd)

        # Output projection folded per head: attn_out = sum_h ctx_h @ Wo[h] + bo.
        per_head = lax.dot_general(ctx.astype(compute_dtype),
                                   wo_ref[...].astype(compute_dtype),
                                   (((2,), (1,)), ((0,), (0,))),
                                   preferred_element_type=jnp.float32)     # (nh, T, H)
        attn_out = jnp.sum(per_head, axis=0) + bo_ref[...]                 # (T, H)

        x_t = x_ref[0, pl.ds(row0, tile_s), :].astype(jnp.float32)         # residual rows
        x1 = attn_out + x_t

        # --- ffn_norm + MLP (fc1 -> exact gelu -> fc2) + residual ---
        xn2 = _layernorm(x1, ln2w_ref[...], ln2b_ref[...])
        hdn = jnp.dot(xn2.astype(compute_dtype), w1_ref[...].astype(compute_dtype),
                      preferred_element_type=jnp.float32) + b1_ref[...]
        hdn = _gelu_exact(hdn)
        mlp_out = jnp.dot(hdn.astype(compute_dtype), w2_ref[...].astype(compute_dtype),
                          preferred_element_type=jnp.float32) + b2_ref[...]
        out_ref[0] = (mlp_out + x1).astype(out_ref.dtype)

    return kernel


# ------------------------------- wrapper -----------------------------------

def transformer_block(x, params, num_heads, *, tile_s=None,
                      compute_dtype=jnp.float32, wts_dtype=jnp.float32):
    B, S, H = x.shape
    assert H % num_heads == 0
    head_dim = H // num_heads
    mlp_dim = params["w1"].shape[1]
    if tile_s is None:
        tile_s = S
    assert S % tile_s == 0
    assert tile_s == S or tile_s % 8 == 0

    # One-time weight packing (layout plumbing, outside the kernel):
    wqkv = jnp.concatenate([params["wq"], params["wk"], params["wv"]], axis=1)   # (H, 3H)
    bqkv = jnp.concatenate([params["bq"], params["bk"], params["bv"]], axis=1)   # (1, 3H)
    wo_h = params["wo"].reshape(num_heads, head_dim, H)                          # (nh, hd, H)

    args = (x, wqkv, bqkv, wo_h, params["bo"],
            params["ln1_w"], params["ln1_b"], params["ln2_w"], params["ln2_b"],
            params["w1"], params["b1"], params["w2"], params["b2"])

    def build(single_buffer_weights):
        kernel = _make_block_kernel(S, H, num_heads, head_dim, mlp_dim,
                                    tile_s, compute_dtype)

        # Weight blocks never change index -> single-buffer them (halves weight VMEM).
        wkw = {"pipeline_mode": pl.Buffered(1)} if single_buffer_weights else {}

        def wspec(shape):
            nd = len(shape)
            return pl.BlockSpec(shape, lambda b, s: (0,) * nd, **wkw)

        in_specs = [
            pl.BlockSpec((1, S, H), lambda b, s: (b, 0, 0)),     # x (constant over s)
            wspec((H, 3 * H)), wspec((1, 3 * H)),                # fused Wqkv, bqkv
            wspec((num_heads, head_dim, H)), wspec((1, H)),      # Wo (head-major), bo
            wspec((1, H)), wspec((1, H)),                        # attention_norm w, b
            wspec((1, H)), wspec((1, H)),                        # ffn_norm w, b
            wspec((H, mlp_dim)), wspec((1, mlp_dim)),            # fc1 W, b
            wspec((mlp_dim, H)), wspec((1, H)),                  # fc2 W, b
        ]
        out_specs = (
            pl.BlockSpec((1, tile_s, H), lambda b, s: (b, s, 0)),
            pl.BlockSpec((1, num_heads, tile_s, S), lambda b, s: (b, 0, s, 0)),
        )
        out_shape = (
            jax.ShapeDtypeStruct((B, S, H), x.dtype),
            jax.ShapeDtypeStruct((B, num_heads, S, S), wts_dtype),
        )
        scratch_shapes = [
            pltpu.VMEM((num_heads, S, head_dim), compute_dtype),   # q (pre-scaled)
            pltpu.VMEM((num_heads, S, head_dim), compute_dtype),   # k
            pltpu.VMEM((num_heads, S, head_dim), compute_dtype),   # v
        ]

        flops = B * (2 * S * H * 3 * H                     # fused QKV projection
                     + 4 * num_heads * S * S * head_dim    # scores + context
                     + 2 * S * H * H                       # output projection
                     + 4 * S * H * mlp_dim)                # fc1 + fc2
        transcendentals = B * (num_heads * S * S + S * mlp_dim + 2 * S)
        wbytes = 4 * (3 * H * H + H * H + 2 * H * mlp_dim + 3 * H + mlp_dim + 6 * H)
        iobytes = 8 * B * S * H + jnp.dtype(wts_dtype).itemsize * B * num_heads * S * S
        cost = pl.CostEstimate(flops=int(flops),
                               transcendentals=int(transcendentals),
                               bytes_accessed=int(wbytes + iobytes))

        cbytes = jnp.dtype(compute_dtype).itemsize
        vmem_est = (wbytes * (1 if single_buffer_weights else 2)
                    + 3 * num_heads * S * head_dim * cbytes
                    + 4 * (2 * S * H + S * 3 * H
                           + 3 * num_heads * tile_s * S
                           + tile_s * mlp_dim + 6 * tile_s * H))
        vmem_limit = int(min(max(2 * vmem_est, 32 * 1024 * 1024), 128 * 1024 * 1024))

        return pl.pallas_call(
            kernel,
            out_shape=out_shape,
            grid=(B, S // tile_s),
            in_specs=in_specs,
            out_specs=out_specs,
            scratch_shapes=scratch_shapes,
            compiler_params=pltpu.CompilerParams(
                dimension_semantics=("parallel", "arbitrary"),
                vmem_limit_bytes=vmem_limit),
            cost_estimate=cost,
        )

    try:
        return build(True)(*args)
    except Exception:
        # TODO(synk): pl.Buffered(1) single-buffered weight specs not supported on this
        # jax build; fall back to default double-buffered weight BlockSpecs.
        return build(False)(*args)


# -------------------------- pure-JAX reference ------------------------------

def block_reference(x, params, num_heads):
    B, S, H = x.shape
    hd = H // num_heads

    def ln(x, w, b):
        mu = jnp.mean(x, -1, keepdims=True)
        var = jnp.mean((x - mu) ** 2, -1, keepdims=True)
        return (x - mu) / jnp.sqrt(var + 1e-6) * w[0] + b[0]

    h = x
    xn = ln(x, params["ln1_w"], params["ln1_b"])
    q = xn @ params["wq"] + params["bq"][0]
    k = xn @ params["wk"] + params["bk"][0]
    v = xn @ params["wv"] + params["bv"][0]

    def split(t):  # (B,S,H) -> (B,nh,S,hd)
        return t.reshape(B, S, num_heads, hd).transpose(0, 2, 1, 3)

    qh, kh, vh = split(q), split(k), split(v)
    scores = jnp.einsum("bhqd,bhkd->bhqk", qh, kh) / math.sqrt(hd)
    probs = jax.nn.softmax(scores, axis=-1)
    ctx = jnp.einsum("bhqk,bhkd->bhqd", probs, vh)
    ctx = ctx.transpose(0, 2, 1, 3).reshape(B, S, H)
    attn_out = ctx @ params["wo"] + params["bo"][0]
    x1 = attn_out + h

    xn2 = ln(x1, params["ln2_w"], params["ln2_b"])
    hdn = xn2 @ params["w1"] + params["b1"][0]
    hdn = 0.5 * hdn * (1.0 + lax.erf(hdn / math.sqrt(2.0)))
    out = hdn @ params["w2"] + params["b2"][0] + x1
    return out, probs


# ------------------------------ param init ----------------------------------

def init_params(key, hidden, mlp_dim):
    ks = jax.random.split(key, 12)

    def xavier(k, shape):
        fan_in, fan_out = shape
        a = math.sqrt(6.0 / (fan_in + fan_out))
        return jax.random.uniform(k, shape, jnp.float32, -a, a)

    return {
        "ln1_w": jnp.ones((1, hidden), jnp.float32),
        "ln1_b": jnp.zeros((1, hidden), jnp.float32),
        "wq": xavier(ks[0], (hidden, hidden)),
        "bq": 1e-6 * jax.random.normal(ks[1], (1, hidden), jnp.float32),
        "wk": xavier(ks[2], (hidden, hidden)),
        "bk": 1e-6 * jax.random.normal(ks[3], (1, hidden), jnp.float32),
        "wv": xavier(ks[4], (hidden, hidden)),
        "bv": 1e-6 * jax.random.normal(ks[5], (1, hidden), jnp.float32),
        "wo": xavier(ks[6], (hidden, hidden)),
        "bo": 1e-6 * jax.random.normal(ks[7], (1, hidden), jnp.float32),
        "ln2_w": jnp.ones((1, hidden), jnp.float32),
        "ln2_b": jnp.zeros((1, hidden), jnp.float32),
        "w1": xavier(ks[8], (hidden, mlp_dim)),
        "b1": 1e-6 * jax.random.normal(ks[9], (1, mlp_dim), jnp.float32),
        "w2": xavier(ks[10], (mlp_dim, hidden)),
        "b2": 1e-6 * jax.random.normal(ks[11], (1, hidden), jnp.float32),
    }


# --------------------------------- main --------------------------------------

if __name__ == "__main__":
    B, S, H = 2, 16, 32           # batch, seq (n_patches), hidden_size
    NUM_HEADS, MLP_DIM = 4, 64    # config.transformer['num_heads'], ['mlp_dim']
    TILE_S = 8                    # sequence tile -> grid = (B, S // TILE_S) = (2, 2)

    key = jax.random.PRNGKey(0)
    kx, kp = jax.random.split(key)
    x = jax.random.normal(kx, (B, S, H), jnp.float32)
    params = init_params(kp, H, MLP_DIM)

    ref_out, ref_w = block_reference(x, params, NUM_HEADS)

    # Precise path: f32 MXU operands.
    out, wts = transformer_block(x, params, NUM_HEADS, tile_s=TILE_S)
    out = jax.block_until_ready(out)
    wts = jax.block_until_ready(wts)
    assert out.shape == (B, S, H)
    assert wts.shape == (B, NUM_HEADS, S, S)
    assert jnp.allclose(out, ref_out, atol=5e-4, rtol=5e-4), "output mismatch (f32)"
    assert jnp.allclose(wts, ref_w, atol=5e-4, rtol=5e-4), "attn weights mismatch (f32)"

    # Fast path: bf16 MXU operands (f32 accumulation) + bf16 attention-weight writeback.
    out_bf, wts_bf = transformer_block(x, params, NUM_HEADS, tile_s=TILE_S,
                                       compute_dtype=jnp.bfloat16,
                                       wts_dtype=jnp.bfloat16)
    out_bf = jax.block_until_ready(out_bf)
    wts_bf = jax.block_until_ready(wts_bf)
    assert jnp.allclose(out_bf, ref_out, atol=1e-1, rtol=1e-1), "output mismatch (bf16)"
    assert jnp.allclose(wts_bf.astype(jnp.float32), ref_w, atol=1e-1, rtol=1e-1), \
        "attn weights mismatch (bf16)"

    print("KERNEL_OK")
</pallas_src>

<mosaic_0001>
module attributes {stable_mosaic.version = 11 : i64} {
  func.func @kernel(%arg0: i32, %arg1: i32, %arg2: memref<1x16x32xf32, #tpu.memory_space<vmem>>, %arg3: memref<32x96xf32, #tpu.memory_space<vmem>>, %arg4: memref<1x96xf32, #tpu.memory_space<vmem>>, %arg5: memref<4x8x32xf32, #tpu.memory_space<vmem>>, %arg6: memref<1x32xf32, #tpu.memory_space<vmem>>, %arg7: memref<1x32xf32, #tpu.memory_space<vmem>>, %arg8: memref<1x32xf32, #tpu.memory_space<vmem>>, %arg9: memref<1x32xf32, #tpu.memory_space<vmem>>, %arg10: memref<1x32xf32, #tpu.memory_space<vmem>>, %arg11: memref<32x64xf32, #tpu.memory_space<vmem>>, %arg12: memref<1x64xf32, #tpu.memory_space<vmem>>, %arg13: memref<64x32xf32, #tpu.memory_space<vmem>>, %arg14: memref<1x32xf32, #tpu.memory_space<vmem>>, %arg15: memref<1x8x32xf32, #tpu.memory_space<vmem>>, %arg16: memref<1x4x8x16xf32, #tpu.memory_space<vmem>>, %arg17: memref<4x16x8xf32, #tpu.memory_space<vmem>>, %arg18: memref<4x16x8xf32, #tpu.memory_space<vmem>>, %arg19: memref<4x16x8xf32, #tpu.memory_space<vmem>>) attributes {dimension_semantics = [#tpu.dimension_semantics<parallel>, #tpu.dimension_semantics<arbitrary>], iteration_bounds = array<i64: 2, 2>, scalar_prefetch = 0 : i64, scratch_operands = 3 : i64, tpu.core_type = #tpu.core_type<tc>, window_params = [{transform_indices = @transform_0, window_bounds = array<i64: 1, 16, 32>}, {pipeline_mode = #tpu.pipeline_mode<synchronous>, transform_indices = @transform_1, window_bounds = array<i64: 32, 96>}, {pipeline_mode = #tpu.pipeline_mode<synchronous>, transform_indices = @transform_2, window_bounds = array<i64: 1, 96>}, {pipeline_mode = #tpu.pipeline_mode<synchronous>, transform_indices = @transform_3, window_bounds = array<i64: 4, 8, 32>}, {pipeline_mode = #tpu.pipeline_mode<synchronous>, transform_indices = @transform_4, window_bounds = array<i64: 1, 32>}, {pipeline_mode = #tpu.pipeline_mode<synchronous>, transform_indices = @transform_5, window_bounds = array<i64: 1, 32>}, {pipeline_mode = #tpu.pipeline_mode<synchronous>, transform_indices = @transform_6, window_bounds = array<i64: 1, 32>}, {pipeline_mode = #tpu.pipeline_mode<synchronous>, transform_indices = @transform_7, window_bounds = array<i64: 1, 32>}, {pipeline_mode = #tpu.pipeline_mode<synchronous>, transform_indices = @transform_8, window_bounds = array<i64: 1, 32>}, {pipeline_mode = #tpu.pipeline_mode<synchronous>, transform_indices = @transform_9, window_bounds = array<i64: 32, 64>}, {pipeline_mode = #tpu.pipeline_mode<synchronous>, transform_indices = @transform_10, window_bounds = array<i64: 1, 64>}, {pipeline_mode = #tpu.pipeline_mode<synchronous>, transform_indices = @transform_11, window_bounds = array<i64: 64, 32>}, {pipeline_mode = #tpu.pipeline_mode<synchronous>, transform_indices = @transform_12, window_bounds = array<i64: 1, 32>}, {transform_indices = @transform_13, window_bounds = array<i64: 1, 8, 32>}, {transform_indices = @transform_14, window_bounds = array<i64: 1, 4, 8, 16>}]} {
    %c0_i32 = arith.constant 0 : i32
    %0 = arith.cmpi eq, %arg1, %c0_i32 : i32
    %1 = arith.extui %0 : i1 to i32
    %c0_i32_0 = arith.constant 0 : i32
    %2 = arith.cmpi ne, %1, %c0_i32_0 : i32
    scf.if %2 {
      %c0_49 = arith.constant 0 : index
      %c0_50 = arith.constant 0 : index
      %c0_51 = arith.constant 0 : index
      %78 = vector.load %arg2[%c0_49, %c0_50, %c0_51] : memref<1x16x32xf32, #tpu.memory_space<vmem>>, vector<1x16x32xf32>
      %79 = vector.shape_cast %78 : vector<1x16x32xf32> to vector<16x32xf32>
      %c0_52 = arith.constant 0 : index
      %c0_53 = arith.constant 0 : index
      %80 = vector.load %arg7[%c0_52, %c0_53] : memref<1x32xf32, #tpu.memory_space<vmem>>, vector<1x32xf32>
      %c0_54 = arith.constant 0 : index
      %c0_55 = arith.constant 0 : index
      %81 = vector.load %arg8[%c0_54, %c0_55] : memref<1x32xf32, #tpu.memory_space<vmem>>, vector<1x32xf32>
      %cst_56 = arith.constant dense<0.000000e+00> : vector<16xf32>
      %82 = vector.multi_reduction <add>, %79, %cst_56 [1] : vector<16x32xf32> to vector<16xf32>
      %83 = vector.shape_cast %82 : vector<16xf32> to vector<16x1xf32>
      %cst_57 = arith.constant 3.200000e+01 : f32
      %84 = vector.broadcast %cst_57 : f32 to vector<16x1xf32>
      %85 = arith.divf %83, %84 : vector<16x1xf32>
      %86 = vector.broadcast %85 : vector<16x1xf32> to vector<16x32xf32>
      %87 = arith.subf %79, %86 : vector<16x32xf32>
      %88 = arith.mulf %87, %87 : vector<16x32xf32>
      %cst_58 = arith.constant dense<0.000000e+00> : vector<16xf32>
      %89 = vector.multi_reduction <add>, %88, %cst_58 [1] : vector<16x32xf32> to vector<16xf32>
      %90 = vector.shape_cast %89 : vector<16xf32> to vector<16x1xf32>
      %cst_59 = arith.constant 3.200000e+01 : f32
      %91 = vector.broadcast %cst_59 : f32 to vector<16x1xf32>
      %92 = arith.divf %90, %91 : vector<16x1xf32>
      %cst_60 = arith.constant 9.99999997E-7 : f32
      %93 = vector.broadcast %cst_60 : f32 to vector<16x1xf32>
      %94 = arith.addf %92, %93 : vector<16x1xf32>
      %95 = math.rsqrt %94 : vector<16x1xf32>
      %96 = vector.broadcast %95 : vector<16x1xf32> to vector<16x32xf32>
      %97 = arith.mulf %87, %96 : vector<16x32xf32>
      %98 = vector.broadcast %80 : vector<1x32xf32> to vector<16x32xf32>
      %99 = arith.mulf %97, %98 : vector<16x32xf32>
      %100 = vector.broadcast %81 : vector<1x32xf32> to vector<16x32xf32>
      %101 = arith.addf %99, %100 : vector<16x32xf32>
      %c0_61 = arith.constant 0 : index
      %c0_62 = arith.constant 0 : index
      %102 = vector.load %arg3[%c0_61, %c0_62] : memref<32x96xf32, #tpu.memory_space<vmem>>, vector<32x96xf32>
      %cst_63 = arith.constant dense<0.000000e+00> : vector<16x96xf32>
      %103 = tpu.matmul %101, %102, %cst_63 {dimension_numbers = #tpu.dot_dimension_numbers<[1], [0], [0], [1], [0, 0, 1, 1], [], []>} : vector<16x32xf32>, vector<32x96xf32>, vector<16x96xf32> -> vector<16x96xf32>
      %c0_64 = arith.constant 0 : index
      %c0_65 = arith.constant 0 : index
      %104 = vector.load %arg4[%c0_64, %c0_65] : memref<1x96xf32, #tpu.memory_space<vmem>>, vector<1x96xf32>
      %105 = vector.broadcast %104 : vector<1x96xf32> to vector<16x96xf32>
      %106 = arith.addf %103, %105 : vector<16x96xf32>
      %107 = vector.extract_strided_slice %106 {offsets = [0, 0], sizes = [16, 8], strides = [1, 1]} : vector<16x96xf32> to vector<16x8xf32>
      %cst_66 = arith.constant 0.353553385 : f32
      %108 = vector.broadcast %cst_66 : f32 to vector<16x8xf32>
      %109 = arith.mulf %107, %108 : vector<16x8xf32>
      %c0_67 = arith.constant 0 : index
      %c0_68 = arith.constant 0 : index
      %c0_69 = arith.constant 0 : index
      %110 = vector.load %arg17[%c0_67, %c0_68, %c0_69] : memref<4x16x8xf32, #tpu.memory_space<vmem>>, vector<1x16x8xf32>
      %111 = vector.shape_cast %110 : vector<1x16x8xf32> to vector<16x8xf32>
      %112 = vector.shape_cast %109 : vector<16x8xf32> to vector<1x16x8xf32>
      tpu.vector_store %arg17[%c0_67, %c0_68, %c0_69], %112 {strides = array<i32>} : memref<4x16x8xf32, #tpu.memory_space<vmem>>, vector<1x16x8xf32>,
      %113 = vector.extract_strided_slice %106 {offsets = [0, 32], sizes = [16, 8], strides = [1, 1]} : vector<16x96xf32> to vector<16x8xf32>
      %c0_70 = arith.constant 0 : index
      %c0_71 = arith.constant 0 : index
      %c0_72 = arith.constant 0 : index
      %114 = vector.load %arg18[%c0_70, %c0_71, %c0_72] : memref<4x16x8xf32, #tpu.memory_space<vmem>>, vector<1x16x8xf32>
      %115 = vector.shape_cast %114 : vector<1x16x8xf32> to vector<16x8xf32>
      %116 = vector.shape_cast %113 : vector<16x8xf32> to vector<1x16x8xf32>
      tpu.vector_store %arg18[%c0_70, %c0_71, %c0_72], %116 {strides = array<i32>} : memref<4x16x8xf32, #tpu.memory_space<vmem>>, vector<1x16x8xf32>,
      %117 = vector.extract_strided_slice %106 {offsets = [0, 64], sizes = [16, 8], strides = [1, 1]} : vector<16x96xf32> to vector<16x8xf32>
      %c0_73 = arith.constant 0 : index
      %c0_74 = arith.constant 0 : index
      %c0_75 = arith.constant 0 : index
      %118 = vector.load %arg19[%c0_73, %c0_74, %c0_75] : memref<4x16x8xf32, #tpu.memory_space<vmem>>, vector<1x16x8xf32>
      %119 = vector.shape_cast %118 : vector<1x16x8xf32> to vector<16x8xf32>
      %120 = vector.shape_cast %117 : vector<16x8xf32> to vector<1x16x8xf32>
      tpu.vector_store %arg19[%c0_73, %c0_74, %c0_75], %120 {strides = array<i32>} : memref<4x16x8xf32, #tpu.memory_space<vmem>>, vector<1x16x8xf32>,
      %121 = vector.extract_strided_slice %106 {offsets = [0, 8], sizes = [16, 8], strides = [1, 1]} : vector<16x96xf32> to vector<16x8xf32>
      %cst_76 = arith.constant 0.353553385 : f32
      %122 = vector.broadcast %cst_76 : f32 to vector<16x8xf32>
      %123 = arith.mulf %121, %122 : vector<16x8xf32>
      %c1 = arith.constant 1 : index
      %c0_77 = arith.constant 0 : index
      %c0_78 = arith.constant 0 : index
      %124 = vector.load %arg17[%c1, %c0_77, %c0_78] : memref<4x16x8xf32, #tpu.memory_space<vmem>>, vector<1x16x8xf32>
      %125 = vector.shape_cast %124 : vector<1x16x8xf32> to vector<16x8xf32>
      %126 = vector.shape_cast %123 : vector<16x8xf32> to vector<1x16x8xf32>
      tpu.vector_store %arg17[%c1, %c0_77, %c0_78], %126 {strides = array<i32>} : memref<4x16x8xf32, #tpu.memory_space<vmem>>, vector<1x16x8xf32>,
      %127 = vector.extract_strided_slice %106 {offsets = [0, 40], sizes = [16, 8], strides = [1, 1]} : vector<16x96xf32> to vector<16x8xf32>
      %c1_79 = arith.constant 1 : index
      %c0_80 = arith.constant 0 : index
      %c0_81 = arith.constant 0 : index
      %128 = vector.load %arg18[%c1_79, %c0_80, %c0_81] : memref<4x16x8xf32, #tpu.memory_space<vmem>>, vector<1x16x8xf32>
      %129 = vector.shape_cast %128 : vector<1x16x8xf32> to vector<16x8xf32>
      %130 = vector.shape_cast %127 : vector<16x8xf32> to vector<1x16x8xf32>
      tpu.vector_store %arg18[%c1_79, %c0_80, %c0_81], %130 {strides = array<i32>} : memref<4x16x8xf32, #tpu.memory_space<vmem>>, vector<1x16x8xf32>,
      %131 = vector.extract_strided_slice %106 {offsets = [0, 72], sizes = [16, 8], strides = [1, 1]} : vector<16x96xf32> to vector<16x8xf32>
      %c1_82 = arith.constant 1 : index
      %c0_83 = arith.constant 0 : index
      %c0_84 = arith.constant 0 : index
      %132 = vector.load %arg19[%c1_82, %c0_83, %c0_84] : memref<4x16x8xf32, #tpu.memory_space<vmem>>, vector<1x16x8xf32>
      %133 = vector.shape_cast %132 : vector<1x16x8xf32> to vector<16x8xf32>
      %134 = vector.shape_cast %131 : vector<16x8xf32> to vector<1x16x8xf32>
      tpu.vector_store %arg19[%c1_82, %c0_83, %c0_84], %134 {strides = array<i32>} : memref<4x16x8xf32, #tpu.memory_space<vmem>>, vector<1x16x8xf32>,
      %135 = vector.extract_strided_slice %106 {offsets = [0, 16], sizes = [16, 8], strides = [1, 1]} : vector<16x96xf32> to vector<16x8xf32>
      %cst_85 = arith.constant 0.353553385 : f32
      %136 = vector.broadcast %cst_85 : f32 to vector<16x8xf32>
      %137 = arith.mulf %135, %136 : vector<16x8xf32>
      %c2 = arith.constant 2 : index
      %c0_86 = arith.constant 0 : index
      %c0_87 = arith.constant 0 : index
      %138 = vector.load %arg17[%c2, %c0_86, %c0_87] : memref<4x16x8xf32, #tpu.memory_space<vmem>>, vector<1x16x8xf32>
      %139 = vector.shape_cast %138 : vector<1x16x8xf32> to vector<16x8xf32>
      %140 = vector.shape_cast %137 : vector<16x8xf32> to vector<1x16x8xf32>
      tpu.vector_store %arg17[%c2, %c0_86, %c0_87], %140 {strides = array<i32>} : memref<4x16x8xf32, #tpu.memory_space<vmem>>, vector<1x16x8xf32>,
      %141 = vector.extract_strided_slice %106 {offsets = [0, 48], sizes = [16, 8], strides = [1, 1]} : vector<16x96xf32> to vector<16x8xf32>
      %c2_88 = arith.constant 2 : index
      %c0_89 = arith.constant 0 : index
      %c0_90 = arith.constant 0 : index
      %142 = vector.load %arg18[%c2_88, %c0_89, %c0_90] : memref<4x16x8xf32, #tpu.memory_space<vmem>>, vector<1x16x8xf32>
      %143 = vector.shape_cast %142 : vector<1x16x8xf32> to vector<16x8xf32>
      %144 = vector.shape_cast %141 : vector<16x8xf32> to vector<1x16x8xf32>
      tpu.vector_store %arg18[%c2_88, %c0_89, %c0_90], %144 {strides = array<i32>} : memref<4x16x8xf32, #tpu.memory_space<vmem>>, vector<1x16x8xf32>,
      %145 = vector.extract_strided_slice %106 {offsets = [0, 80], sizes = [16, 8], strides = [1, 1]} : vector<16x96xf32> to vector<16x8xf32>
      %c2_91 = arith.constant 2 : index
      %c0_92 = arith.constant 0 : index
      %c0_93 = arith.constant 0 : index
      %146 = vector.load %arg19[%c2_91, %c0_92, %c0_93] : memref<4x16x8xf32, #tpu.memory_space<vmem>>, vector<1x16x8xf32>
      %147 = vector.shape_cast %146 : vector<1x16x8xf32> to vector<16x8xf32>
      %148 = vector.shape_cast %145 : vector<16x8xf32> to vector<1x16x8xf32>
      tpu.vector_store %arg19[%c2_91, %c0_92, %c0_93], %148 {strides = array<i32>} : memref<4x16x8xf32, #tpu.memory_space<vmem>>, vector<1x16x8xf32>,
      %149 = vector.extract_strided_slice %106 {offsets = [0, 24], sizes = [16, 8], strides = [1, 1]} : vector<16x96xf32> to vector<16x8xf32>
      %cst_94 = arith.constant 0.353553385 : f32
      %150 = vector.broadcast %cst_94 : f32 to vector<16x8xf32>
      %151 = arith.mulf %149, %150 : vector<16x8xf32>
      %c3 = arith.constant 3 : index
      %c0_95 = arith.constant 0 : index
      %c0_96 = arith.constant 0 : index
      %152 = vector.load %arg17[%c3, %c0_95, %c0_96] : memref<4x16x8xf32, #tpu.memory_space<vmem>>, vector<1x16x8xf32>
      %153 = vector.shape_cast %152 : vector<1x16x8xf32> to vector<16x8xf32>
      %154 = vector.shape_cast %151 : vector<16x8xf32> to vector<1x16x8xf32>
      tpu.vector_store %arg17[%c3, %c0_95, %c0_96], %154 {strides = array<i32>} : memref<4x16x8xf32, #tpu.memory_space<vmem>>, vector<1x16x8xf32>,
      %155 = vector.extract_strided_slice %106 {offsets = [0, 56], sizes = [16, 8], strides = [1, 1]} : vector<16x96xf32> to vector<16x8xf32>
      %c3_97 = arith.constant 3 : index
      %c0_98 = arith.constant 0 : index
      %c0_99 = arith.constant 0 : index
      %156 = vector.load %arg18[%c3_97, %c0_98, %c0_99] : memref<4x16x8xf32, #tpu.memory_space<vmem>>, vector<1x16x8xf32>
      %157 = vector.shape_cast %156 : vector<1x16x8xf32> to vector<16x8xf32>
      %158 = vector.shape_cast %155 : vector<16x8xf32> to vector<1x16x8xf32>
      tpu.vector_store %arg18[%c3_97, %c0_98, %c0_99], %158 {strides = array<i32>} : memref<4x16x8xf32, #tpu.memory_space<vmem>>, vector<1x16x8xf32>,
      %159 = vector.extract_strided_slice %106 {offsets = [0, 88], sizes = [16, 8], strides = [1, 1]} : vector<16x96xf32> to vector<16x8xf32>
      %c3_100 = arith.constant 3 : index
      %c0_101 = arith.constant 0 : index
      %c0_102 = arith.constant 0 : index
      %160 = vector.load %arg19[%c3_100, %c0_101, %c0_102] : memref<4x16x8xf32, #tpu.memory_space<vmem>>, vector<1x16x8xf32>
      %161 = vector.shape_cast %160 : vector<1x16x8xf32> to vector<16x8xf32>
      %162 = vector.shape_cast %159 : vector<16x8xf32> to vector<1x16x8xf32>
      tpu.vector_store %arg19[%c3_100, %c0_101, %c0_102], %162 {strides = array<i32>} : memref<4x16x8xf32, #tpu.memory_space<vmem>>, vector<1x16x8xf32>,
    } else {
    }
    %c8_i32 = arith.constant 8 : i32
    %3 = arith.muli %arg1, %c8_i32 : i32
    %4 = tpu.assume_multiple %3, 8 : i32
    %c0 = arith.constant 0 : index
    %5 = arith.index_cast %4 : i32 to index
    %c0_1 = arith.constant 0 : index
    %6 = vector.load %arg17[%c0, %5, %c0_1] : memref<4x16x8xf32, #tpu.memory_space<vmem>>, vector<4x8x8xf32>
    %c0_2 = arith.constant 0 : index
    %c0_3 = arith.constant 0 : index
    %c0_4 = arith.constant 0 : index
    %7 = vector.load %arg18[%c0_2, %c0_3, %c0_4] : memref<4x16x8xf32, #tpu.memory_space<vmem>>, vector<4x16x8xf32>
    %c0_5 = arith.constant 0 : index
    %c0_6 = arith.constant 0 : index
    %c0_7 = arith.constant 0 : index
    %8 = vector.load %arg19[%c0_5, %c0_6, %c0_7] : memref<4x16x8xf32, #tpu.memory_space<vmem>>, vector<4x16x8xf32>
    %cst = arith.constant dense<0.000000e+00> : vector<4x8x16xf32>
    %9 = tpu.matmul %6, %7, %cst {dimension_numbers = #tpu.dot_dimension_numbers<[2], [2], [1], [1], [0, 0, 0, 1, 1, 1], [0], [0]>} : vector<4x8x8xf32>, vector<4x16x8xf32>, vector<4x8x16xf32> -> vector<4x8x16xf32>
    %cst_8 = arith.constant dense<0xFF800000> : vector<4x8xf32>
    %10 = vector.multi_reduction <maximumf>, %9, %cst_8 [2] : vector<4x8x16xf32> to vector<4x8xf32>
    %11 = vector.shape_cast %10 : vector<4x8xf32> to vector<4x8x1xf32>
    %12 = vector.broadcast %11 : vector<4x8x1xf32> to vector<4x8x16xf32>
    %13 = arith.subf %9, %12 : vector<4x8x16xf32>
    %14 = math.exp %13 : vector<4x8x16xf32>
    %cst_9 = arith.constant dense<0.000000e+00> : vector<4x8xf32>
    %15 = vector.multi_reduction <add>, %14, %cst_9 [2] : vector<4x8x16xf32> to vector<4x8xf32>
    %16 = vector.shape_cast %15 : vector<4x8xf32> to vector<4x8x1xf32>
    %17 = tpu.reciprocal %16 : vector<4x8x1xf32> -> vector<4x8x1xf32>
    %18 = vector.broadcast %17 : vector<4x8x1xf32> to vector<4x8x16xf32>
    %19 = arith.mulf %14, %18 : vector<4x8x16xf32>
    %c0_10 = arith.constant 0 : index
    %c0_11 = arith.constant 0 : index
    %c0_12 = arith.constant 0 : index
    %c0_13 = arith.constant 0 : index
    %20 = vector.load %arg16[%c0_10, %c0_11, %c0_12, %c0_13] : memref<1x4x8x16xf32, #tpu.memory_space<vmem>>, vector<1x4x8x16xf32>
    %21 = vector.shape_cast %20 : vector<1x4x8x16xf32> to vector<4x8x16xf32>
    %22 = vector.shape_cast %19 : vector<4x8x16xf32> to vector<1x4x8x16xf32>
    tpu.vector_store %arg16[%c0_10, %c0_11, %c0_12, %c0_13], %22 {strides = array<i32>} : memref<1x4x8x16xf32, #tpu.memory_space<vmem>>, vector<1x4x8x16xf32>,
    %cst_14 = arith.constant dense<0.000000e+00> : vector<4x8x8xf32>
    %23 = tpu.matmul %19, %8, %cst_14 {dimension_numbers = #tpu.dot_dimension_numbers<[2], [1], [1], [2], [0, 0, 0, 1, 1, 2], [0], [0]>} : vector<4x8x16xf32>, vector<4x16x8xf32>, vector<4x8x8xf32> -> vector<4x8x8xf32>
    %c0_15 = arith.constant 0 : index
    %c0_16 = arith.constant 0 : index
    %c0_17 = arith.constant 0 : index
    %24 = vector.load %arg5[%c0_15, %c0_16, %c0_17] : memref<4x8x32xf32, #tpu.memory_space<vmem>>, vector<4x8x32xf32>
    %cst_18 = arith.constant dense<0.000000e+00> : vector<4x8x32xf32>
    %25 = tpu.matmul %23, %24, %cst_18 {dimension_numbers = #tpu.dot_dimension_numbers<[2], [1], [1], [2], [0, 0, 0, 1, 1, 2], [0], [0]>} : vector<4x8x8xf32>, vector<4x8x32xf32>, vector<4x8x32xf32> -> vector<4x8x32xf32>
    %cst_19 = arith.constant dense<0.000000e+00> : vector<8x32xf32>
    %26 = vector.multi_reduction <add>, %25, %cst_19 [0] : vector<4x8x32xf32> to vector<8x32xf32>
    %c0_20 = arith.constant 0 : index
    %c0_21 = arith.constant 0 : index
    %27 = vector.load %arg6[%c0_20, %c0_21] : memref<1x32xf32, #tpu.memory_space<vmem>>, vector<1x32xf32>
    %28 = vector.broadcast %27 : vector<1x32xf32> to vector<8x32xf32>
    %29 = arith.addf %26, %28 : vector<8x32xf32>
    %c0_22 = arith.constant 0 : index
    %30 = arith.index_cast %4 : i32 to index
    %c0_23 = arith.constant 0 : index
    %31 = vector.load %arg2[%c0_22, %30, %c0_23] : memref<1x16x32xf32, #tpu.memory_space<vmem>>, vector<1x8x32xf32>
    %32 = vector.shape_cast %31 : vector<1x8x32xf32> to vector<8x32xf32>
    %33 = arith.addf %29, %32 : vector<8x32xf32>
    %c0_24 = arith.constant 0 : index
    %c0_25 = arith.constant 0 : index
    %34 = vector.load %arg9[%c0_24, %c0_25] : memref<1x32xf32, #tpu.memory_space<vmem>>, vector<1x32xf32>
    %c0_26 = arith.constant 0 : index
    %c0_27 = arith.constant 0 : index
    %35 = vector.load %arg10[%c0_26, %c0_27] : memref<1x32xf32, #tpu.memory_space<vmem>>, vector<1x32xf32>
    %cst_28 = arith.constant dense<0.000000e+00> : vector<8xf32>
    %36 = vector.multi_reduction <add>, %33, %cst_28 [1] : vector<8x32xf32> to vector<8xf32>
    %37 = vector.shape_cast %36 : vector<8xf32> to vector<8x1xf32>
    %cst_29 = arith.constant 3.200000e+01 : f32
    %38 = vector.broadcast %cst_29 : f32 to vector<8x1xf32>
    %39 = arith.divf %37, %38 : vector<8x1xf32>
    %40 = vector.broadcast %39 : vector<8x1xf32> to vector<8x32xf32>
    %41 = arith.subf %33, %40 : vector<8x32xf32>
    %42 = arith.mulf %41, %41 : vector<8x32xf32>
    %cst_30 = arith.constant dense<0.000000e+00> : vector<8xf32>
    %43 = vector.multi_reduction <add>, %42, %cst_30 [1] : vector<8x32xf32> to vector<8xf32>
    %44 = vector.shape_cast %43 : vector<8xf32> to vector<8x1xf32>
    %cst_31 = arith.constant 3.200000e+01 : f32
    %45 = vector.broadcast %cst_31 : f32 to vector<8x1xf32>
    %46 = arith.divf %44, %45 : vector<8x1xf32>
    %cst_32 = arith.constant 9.99999997E-7 : f32
    %47 = vector.broadcast %cst_32 : f32 to vector<8x1xf32>
    %48 = arith.addf %46, %47 : vector<8x1xf32>
    %49 = math.rsqrt %48 : vector<8x1xf32>
    %50 = vector.broadcast %49 : vector<8x1xf32> to vector<8x32xf32>
    %51 = arith.mulf %41, %50 : vector<8x32xf32>
    %52 = vector.broadcast %34 : vector<1x32xf32> to vector<8x32xf32>
    %53 = arith.mulf %51, %52 : vector<8x32xf32>
    %54 = vector.broadcast %35 : vector<1x32xf32> to vector<8x32xf32>
    %55 = arith.addf %53, %54 : vector<8x32xf32>
    %c0_33 = arith.constant 0 : index
    %c0_34 = arith.constant 0 : index
    %56 = vector.load %arg11[%c0_33, %c0_34] : memref<32x64xf32, #tpu.memory_space<vmem>>, vector<32x64xf32>
    %cst_35 = arith.constant dense<0.000000e+00> : vector<8x64xf32>
    %57 = tpu.matmul %55, %56, %cst_35 {dimension_numbers = #tpu.dot_dimension_numbers<[1], [0], [0], [1], [0, 0, 1, 1], [], []>} : vector<8x32xf32>, vector<32x64xf32>, vector<8x64xf32> -> vector<8x64xf32>
    %c0_36 = arith.constant 0 : index
    %c0_37 = arith.constant 0 : index
    %58 = vector.load %arg12[%c0_36, %c0_37] : memref<1x64xf32, #tpu.memory_space<vmem>>, vector<1x64xf32>
    %59 = vector.broadcast %58 : vector<1x64xf32> to vector<8x64xf32>
    %60 = arith.addf %57, %59 : vector<8x64xf32>
    %cst_38 = arith.constant 5.000000e-01 : f32
    %61 = vector.broadcast %cst_38 : f32 to vector<8x64xf32>
    %62 = arith.mulf %61, %60 : vector<8x64xf32>
    %cst_39 = arith.constant 0.707106769 : f32
    %63 = vector.broadcast %cst_39 : f32 to vector<8x64xf32>
    %64 = arith.mulf %60, %63 : vector<8x64xf32>
    %65 = math.erf %64 : vector<8x64xf32>
    %cst_40 = arith.constant 1.000000e+00 : f32
    %66 = vector.broadcast %cst_40 : f32 to vector<8x64xf32>
    %67 = arith.addf %66, %65 : vector<8x64xf32>
    %68 = arith.mulf %62, %67 : vector<8x64xf32>
    %c0_41 = arith.constant 0 : index
    %c0_42 = arith.constant 0 : index
    %69 = vector.load %arg13[%c0_41, %c0_42] : memref<64x32xf32, #tpu.memory_space<vmem>>, vector<64x32xf32>
    %cst_43 = arith.constant dense<0.000000e+00> : vector<8x32xf32>
    %70 = tpu.matmul %68, %69, %cst_43 {dimension_numbers = #tpu.dot_dimension_numbers<[1], [0], [0], [1], [0, 0, 1, 1], [], []>} : vector<8x64xf32>, vector<64x32xf32>, vector<8x32xf32> -> vector<8x32xf32>
    %c0_44 = arith.constant 0 : index
    %c0_45 = arith.constant 0 : index
    %71 = vector.load %arg14[%c0_44, %c0_45] : memref<1x32xf32, #tpu.memory_space<vmem>>, vector<1x32xf32>
    %72 = vector.broadcast %71 : vector<1x32xf32> to vector<8x32xf32>
    %73 = arith.addf %70, %72 : vector<8x32xf32>
    %74 = arith.addf %73, %33 : vector<8x32xf32>
    %c0_46 = arith.constant 0 : index
    %c0_47 = arith.constant 0 : index
    %c0_48 = arith.constant 0 : index
    %75 = vector.load %arg15[%c0_46, %c0_47, %c0_48] : memref<1x8x32xf32, #tpu.memory_space<vmem>>, vector<1x8x32xf32>
    %76 = vector.shape_cast %75 : vector<1x8x32xf32> to vector<8x32xf32>
    %77 = vector.shape_cast %74 : vector<8x32xf32> to vector<1x8x32xf32>
    tpu.vector_store %arg15[%c0_46, %c0_47, %c0_48], %77 {strides = array<i32>} : memref<1x8x32xf32, #tpu.memory_space<vmem>>, vector<1x8x32xf32>,
    return
  }
  func.func @transform_0(%arg0: i32, %arg1: i32) -> (i32, i32, i32) {
    %c0_i32 = arith.constant 0 : i32
    %c0_i32_0 = arith.constant 0 : i32
    %c0_i32_1 = arith.constant 0 : i32
    return %arg0, %c0_i32, %c0_i32_0 : i32, i32, i32
  }
  func.func @transform_1(%arg0: i32, %arg1: i32) -> (i32, i32) {
    %c0_i32 = arith.constant 0 : i32
    %c0_i32_0 = arith.constant 0 : i32
    %c0_i32_1 = arith.constant 0 : i32
    return %c0_i32, %c0_i32_0 : i32, i32
  }
  func.func @transform_2(%arg0: i32, %arg1: i32) -> (i32, i32) {
    %c0_i32 = arith.constant 0 : i32
    %c0_i32_0 = arith.constant 0 : i32
    %c0_i32_1 = arith.constant 0 : i32
    return %c0_i32, %c0_i32_0 : i32, i32
  }
  func.func @transform_3(%arg0: i32, %arg1: i32) -> (i32, i32, i32) {
    %c0_i32 = arith.constant 0 : i32
    %c0_i32_0 = arith.constant 0 : i32
    %c0_i32_1 = arith.constant 0 : i32
    %c0_i32_2 = arith.constant 0 : i32
    return %c0_i32, %c0_i32_0, %c0_i32_1 : i32, i32, i32
  }
  func.func @transform_4(%arg0: i32, %arg1: i32) -> (i32, i32) {
    %c0_i32 = arith.constant 0 : i32
    %c0_i32_0 = arith.constant 0 : i32
    %c0_i32_1 = arith.constant 0 : i32
    return %c0_i32, %c0_i32_0 : i32, i32
  }
  func.func @transform_5(%arg0: i32, %arg1: i32) -> (i32, i32) {
    %c0_i32 = arith.constant 0 : i32
    %c0_i32_0 = arith.constant 0 : i32
    %c0_i32_1 = arith.constant 0 : i32
    return %c0_i32, %c0_i32_0 : i32, i32
  }
  func.func @transform_6(%arg0: i32, %arg1: i32) -> (i32, i32) {
    %c0_i32 = arith.constant 0 : i32
    %c0_i32_0 = arith.constant 0 : i32
    %c0_i32_1 = arith.constant 0 : i32
    return %c0_i32, %c0_i32_0 : i32, i32
  }
  func.func @transform_7(%arg0: i32, %arg1: i32) -> (i32, i32) {
    %c0_i32 = arith.constant 0 : i32
    %c0_i32_0 = arith.constant 0 : i32
    %c0_i32_1 = arith.constant 0 : i32
    return %c0_i32, %c0_i32_0 : i32, i32
  }
  func.func @transform_8(%arg0: i32, %arg1: i32) -> (i32, i32) {
    %c0_i32 = arith.constant 0 : i32
    %c0_i32_0 = arith.constant 0 : i32
    %c0_i32_1 = arith.constant 0 : i32
    return %c0_i32, %c0_i32_0 : i32, i32
  }
  func.func @transform_9(%arg0: i32, %arg1: i32) -> (i32, i32) {
    %c0_i32 = arith.constant 0 : i32
    %c0_i32_0 = arith.constant 0 : i32
    %c0_i32_1 = arith.constant 0 : i32
    return %c0_i32, %c0_i32_0 : i32, i32
  }
  func.func @transform_10(%arg0: i32, %arg1: i32) -> (i32, i32) {
    %c0_i32 = arith.constant 0 : i32
    %c0_i32_0 = arith.constant 0 : i32
    %c0_i32_1 = arith.constant 0 : i32
    return %c0_i32, %c0_i32_0 : i32, i32
  }
  func.func @transform_11(%arg0: i32, %arg1: i32) -> (i32, i32) {
    %c0_i32 = arith.constant 0 : i32
    %c0_i32_0 = arith.constant 0 : i32
    %c0_i32_1 = arith.constant 0 : i32
    return %c0_i32, %c0_i32_0 : i32, i32
  }
  func.func @transform_12(%arg0: i32, %arg1: i32) -> (i32, i32) {
    %c0_i32 = arith.constant 0 : i32
    %c0_i32_0 = arith.constant 0 : i32
    %c0_i32_1 = arith.constant 0 : i32
    return %c0_i32, %c0_i32_0 : i32, i32
  }
  func.func @transform_13(%arg0: i32, %arg1: i32) -> (i32, i32, i32) {
    %c0_i32 = arith.constant 0 : i32
    %c0_i32_0 = arith.constant 0 : i32
    return %arg0, %arg1, %c0_i32 : i32, i32, i32
  }
  func.func @transform_14(%arg0: i32, %arg1: i32) -> (i32, i32, i32, i32) {
    %c0_i32 = arith.constant 0 : i32
    %c0_i32_0 = arith.constant 0 : i32
    %c0_i32_1 = arith.constant 0 : i32
    return %arg0, %c0_i32, %arg1, %c0_i32_0 : i32, i32, i32, i32
  }
}

module attributes {stable_mosaic.version = 11 : i64} {
  func.func @kernel(%arg0: i32, %arg1: i32, %arg2: memref<1x16x32xf32, #tpu.memory_space<vmem>>, %arg3: memref<32x96xf32, #tpu.memory_space<vmem>>, %arg4: memref<1x96xf32, #tpu.memory_space<vmem>>, %arg5: memref<4x8x32xf32, #tpu.memory_space<vmem>>, %arg6: memref<1x32xf32, #tpu.memory_space<vmem>>, %arg7: memref<1x32xf32, #tpu.memory_space<vmem>>, %arg8: memref<1x32xf32, #tpu.memory_space<vmem>>, %arg9: memref<1x32xf32, #tpu.memory_space<vmem>>, %arg10: memref<1x32xf32, #tpu.memory_space<vmem>>, %arg11: memref<32x64xf32, #tpu.memory_space<vmem>>, %arg12: memref<1x64xf32, #tpu.memory_space<vmem>>, %arg13: memref<64x32xf32, #tpu.memory_space<vmem>>, %arg14: memref<1x32xf32, #tpu.memory_space<vmem>>, %arg15: memref<1x8x32xf32, #tpu.memory_space<vmem>>, %arg16: memref<1x4x8x16xf32, #tpu.memory_space<vmem>>, %arg17: memref<4x16x8xf32, #tpu.memory_space<vmem>>, %arg18: memref<4x16x8xf32, #tpu.memory_space<vmem>>, %arg19: memref<4x16x8xf32, #tpu.memory_space<vmem>>) attributes {dimension_semantics = [#tpu.dimension_semantics<parallel>, #tpu.dimension_semantics<arbitrary>], iteration_bounds = array<i64: 2, 2>, scalar_prefetch = 0 : i64, scratch_operands = 3 : i64, tpu.core_type = #tpu.core_type<tc>, window_params = [{transform_indices = @transform_0, window_bounds = array<i64: 1, 16, 32>}, {pipeline_mode = #tpu.pipeline_mode<synchronous>, transform_indices = @transform_1, window_bounds = array<i64: 32, 96>}, {pipeline_mode = #tpu.pipeline_mode<synchronous>, transform_indices = @transform_2, window_bounds = array<i64: 1, 96>}, {pipeline_mode = #tpu.pipeline_mode<synchronous>, transform_indices = @transform_3, window_bounds = array<i64: 4, 8, 32>}, {pipeline_mode = #tpu.pipeline_mode<synchronous>, transform_indices = @transform_4, window_bounds = array<i64: 1, 32>}, {pipeline_mode = #tpu.pipeline_mode<synchronous>, transform_indices = @transform_5, window_bounds = array<i64: 1, 32>}, {pipeline_mode = #tpu.pipeline_mode<synchronous>, transform_indices = @transform_6, window_bounds = array<i64: 1, 32>}, {pipeline_mode = #tpu.pipeline_mode<synchronous>, transform_indices = @transform_7, window_bounds = array<i64: 1, 32>}, {pipeline_mode = #tpu.pipeline_mode<synchronous>, transform_indices = @transform_8, window_bounds = array<i64: 1, 32>}, {pipeline_mode = #tpu.pipeline_mode<synchronous>, transform_indices = @transform_9, window_bounds = array<i64: 32, 64>}, {pipeline_mode = #tpu.pipeline_mode<synchronous>, transform_indices = @transform_10, window_bounds = array<i64: 1, 64>}, {pipeline_mode = #tpu.pipeline_mode<synchronous>, transform_indices = @transform_11, window_bounds = array<i64: 64, 32>}, {pipeline_mode = #tpu.pipeline_mode<synchronous>, transform_indices = @transform_12, window_bounds = array<i64: 1, 32>}, {transform_indices = @transform_13, window_bounds = array<i64: 1, 8, 32>}, {transform_indices = @transform_14, window_bounds = array<i64: 1, 4, 8, 16>}]} {
    %c0_i32 = arith.constant 0 : i32
    %0 = arith.cmpi eq, %arg1, %c0_i32 : i32
    %1 = arith.extui %0 : i1 to i32
    %c0_i32_0 = arith.constant 0 : i32
    %2 = arith.cmpi ne, %1, %c0_i32_0 : i32
    scf.if %2 {
      %c0_49 = arith.constant 0 : index
      %c0_50 = arith.constant 0 : index
      %c0_51 = arith.constant 0 : index
      %78 = vector.load %arg2[%c0_49, %c0_50, %c0_51] : memref<1x16x32xf32, #tpu.memory_space<vmem>>, vector<1x16x32xf32>
      %79 = vector.shape_cast %78 : vector<1x16x32xf32> to vector<16x32xf32>
      %c0_52 = arith.constant 0 : index
      %c0_53 = arith.constant 0 : index
      %80 = vector.load %arg7[%c0_52, %c0_53] : memref<1x32xf32, #tpu.memory_space<vmem>>, vector<1x32xf32>
      %c0_54 = arith.constant 0 : index
      %c0_55 = arith.constant 0 : index
      %81 = vector.load %arg8[%c0_54, %c0_55] : memref<1x32xf32, #tpu.memory_space<vmem>>, vector<1x32xf32>
      %cst_56 = arith.constant dense<0.000000e+00> : vector<16xf32>
      %82 = vector.multi_reduction <add>, %79, %cst_56 [1] : vector<16x32xf32> to vector<16xf32>
      %83 = vector.shape_cast %82 : vector<16xf32> to vector<16x1xf32>
      %cst_57 = arith.constant 3.200000e+01 : f32
      %84 = vector.broadcast %cst_57 : f32 to vector<16x1xf32>
      %85 = arith.divf %83, %84 : vector<16x1xf32>
      %86 = vector.broadcast %85 : vector<16x1xf32> to vector<16x32xf32>
      %87 = arith.subf %79, %86 : vector<16x32xf32>
      %88 = arith.mulf %87, %87 : vector<16x32xf32>
      %cst_58 = arith.constant dense<0.000000e+00> : vector<16xf32>
      %89 = vector.multi_reduction <add>, %88, %cst_58 [1] : vector<16x32xf32> to vector<16xf32>
      %90 = vector.shape_cast %89 : vector<16xf32> to vector<16x1xf32>
      %cst_59 = arith.constant 3.200000e+01 : f32
      %91 = vector.broadcast %cst_59 : f32 to vector<16x1xf32>
      %92 = arith.divf %90, %91 : vector<16x1xf32>
      %cst_60 = arith.constant 9.99999997E-7 : f32
      %93 = vector.broadcast %cst_60 : f32 to vector<16x1xf32>
      %94 = arith.addf %92, %93 : vector<16x1xf32>
      %95 = math.rsqrt %94 : vector<16x1xf32>
      %96 = vector.broadcast %95 : vector<16x1xf32> to vector<16x32xf32>
      %97 = arith.mulf %87, %96 : vector<16x32xf32>
      %98 = vector.broadcast %80 : vector<1x32xf32> to vector<16x32xf32>
      %99 = arith.mulf %97, %98 : vector<16x32xf32>
      %100 = vector.broadcast %81 : vector<1x32xf32> to vector<16x32xf32>
      %101 = arith.addf %99, %100 : vector<16x32xf32>
      %c0_61 = arith.constant 0 : index
      %c0_62 = arith.constant 0 : index
      %102 = vector.load %arg3[%c0_61, %c0_62] : memref<32x96xf32, #tpu.memory_space<vmem>>, vector<32x96xf32>
      %cst_63 = arith.constant dense<0.000000e+00> : vector<16x96xf32>
      %103 = tpu.matmul %101, %102, %cst_63 {dimension_numbers = #tpu.dot_dimension_numbers<[1], [0], [0], [1], [0, 0, 1, 1], [], []>} : vector<16x32xf32>, vector<32x96xf32>, vector<16x96xf32> -> vector<16x96xf32>
      %c0_64 = arith.constant 0 : index
      %c0_65 = arith.constant 0 : index
      %104 = vector.load %arg4[%c0_64, %c0_65] : memref<1x96xf32, #tpu.memory_space<vmem>>, vector<1x96xf32>
      %105 = vector.broadcast %104 : vector<1x96xf32> to vector<16x96xf32>
      %106 = arith.addf %103, %105 : vector<16x96xf32>
      %107 = vector.extract_strided_slice %106 {offsets = [0, 0], sizes = [16, 8], strides = [1, 1]} : vector<16x96xf32> to vector<16x8xf32>
      %cst_66 = arith.constant 0.353553385 : f32
      %108 = vector.broadcast %cst_66 : f32 to vector<16x8xf32>
      %109 = arith.mulf %107, %108 : vector<16x8xf32>
      %c0_67 = arith.constant 0 : index
      %c0_68 = arith.constant 0 : index
      %c0_69 = arith.constant 0 : index
      %110 = vector.load %arg17[%c0_67, %c0_68, %c0_69] : memref<4x16x8xf32, #tpu.memory_space<vmem>>, vector<1x16x8xf32>
      %111 = vector.shape_cast %110 : vector<1x16x8xf32> to vector<16x8xf32>
      %112 = vector.shape_cast %109 : vector<16x8xf32> to vector<1x16x8xf32>
      tpu.vector_store %arg17[%c0_67, %c0_68, %c0_69], %112 {strides = array<i32>} : memref<4x16x8xf32, #tpu.memory_space<vmem>>, vector<1x16x8xf32>,
      %113 = vector.extract_strided_slice %106 {offsets = [0, 32], sizes = [16, 8], strides = [1, 1]} : vector<16x96xf32> to vector<16x8xf32>
      %c0_70 = arith.constant 0 : index
      %c0_71 = arith.constant 0 : index
      %c0_72 = arith.constant 0 : index
      %114 = vector.load %arg18[%c0_70, %c0_71, %c0_72] : memref<4x16x8xf32, #tpu.memory_space<vmem>>, vector<1x16x8xf32>
      %115 = vector.shape_cast %114 : vector<1x16x8xf32> to vector<16x8xf32>
      %116 = vector.shape_cast %113 : vector<16x8xf32> to vector<1x16x8xf32>
      tpu.vector_store %arg18[%c0_70, %c0_71, %c0_72], %116 {strides = array<i32>} : memref<4x16x8xf32, #tpu.memory_space<vmem>>, vector<1x16x8xf32>,
      %117 = vector.extract_strided_slice %106 {offsets = [0, 64], sizes = [16, 8], strides = [1, 1]} : vector<16x96xf32> to vector<16x8xf32>
      %c0_73 = arith.constant 0 : index
      %c0_74 = arith.constant 0 : index
      %c0_75 = arith.constant 0 : index
      %118 = vector.load %arg19[%c0_73, %c0_74, %c0_75] : memref<4x16x8xf32, #tpu.memory_space<vmem>>, vector<1x16x8xf32>
      %119 = vector.shape_cast %118 : vector<1x16x8xf32> to vector<16x8xf32>
      %120 = vector.shape_cast %117 : vector<16x8xf32> to vector<1x16x8xf32>
      tpu.vector_store %arg19[%c0_73, %c0_74, %c0_75], %120 {strides = array<i32>} : memref<4x16x8xf32, #tpu.memory_space<vmem>>, vector<1x16x8xf32>,
      %121 = vector.extract_strided_slice %106 {offsets = [0, 8], sizes = [16, 8], strides = [1, 1]} : vector<16x96xf32> to vector<16x8xf32>
      %cst_76 = arith.constant 0.353553385 : f32
      %122 = vector.broadcast %cst_76 : f32 to vector<16x8xf32>
      %123 = arith.mulf %121, %122 : vector<16x8xf32>
      %c1 = arith.constant 1 : index
      %c0_77 = arith.constant 0 : index
      %c0_78 = arith.constant 0 : index
      %124 = vector.load %arg17[%c1, %c0_77, %c0_78] : memref<4x16x8xf32, #tpu.memory_space<vmem>>, vector<1x16x8xf32>
      %125 = vector.shape_cast %124 : vector<1x16x8xf32> to vector<16x8xf32>
      %126 = vector.shape_cast %123 : vector<16x8xf32> to vector<1x16x8xf32>
      tpu.vector_store %arg17[%c1, %c0_77, %c0_78], %126 {strides = array<i32>} : memref<4x16x8xf32, #tpu.memory_space<vmem>>, vector<1x16x8xf32>,
      %127 = vector.extract_strided_slice %106 {offsets = [0, 40], sizes = [16, 8], strides = [1, 1]} : vector<16x96xf32> to vector<16x8xf32>
      %c1_79 = arith.constant 1 : index
      %c0_80 = arith.constant 0 : index
      %c0_81 = arith.constant 0 : index
      %128 = vector.load %arg18[%c1_79, %c0_80, %c0_81] : memref<4x16x8xf32, #tpu.memory_space<vmem>>, vector<1x16x8xf32>
      %129 = vector.shape_cast %128 : vector<1x16x8xf32> to vector<16x8xf32>
      %130 = vector.shape_cast %127 : vector<16x8xf32> to vector<1x16x8xf32>
      tpu.vector_store %arg18[%c1_79, %c0_80, %c0_81], %130 {strides = array<i32>} : memref<4x16x8xf32, #tpu.memory_space<vmem>>, vector<1x16x8xf32>,
      %131 = vector.extract_strided_slice %106 {offsets = [0, 72], sizes = [16, 8], strides = [1, 1]} : vector<16x96xf32> to vector<16x8xf32>
      %c1_82 = arith.constant 1 : index
      %c0_83 = arith.constant 0 : index
      %c0_84 = arith.constant 0 : index
      %132 = vector.load %arg19[%c1_82, %c0_83, %c0_84] : memref<4x16x8xf32, #tpu.memory_space<vmem>>, vector<1x16x8xf32>
      %133 = vector.shape_cast %132 : vector<1x16x8xf32> to vector<16x8xf32>
      %134 = vector.shape_cast %131 : vector<16x8xf32> to vector<1x16x8xf32>
      tpu.vector_store %arg19[%c1_82, %c0_83, %c0_84], %134 {strides = array<i32>} : memref<4x16x8xf32, #tpu.memory_space<vmem>>, vector<1x16x8xf32>,
      %135 = vector.extract_strided_slice %106 {offsets = [0, 16], sizes = [16, 8], strides = [1, 1]} : vector<16x96xf32> to vector<16x8xf32>
      %cst_85 = arith.constant 0.353553385 : f32
      %136 = vector.broadcast %cst_85 : f32 to vector<16x8xf32>
      %137 = arith.mulf %135, %136 : vector<16x8xf32>
      %c2 = arith.constant 2 : index
      %c0_86 = arith.constant 0 : index
      %c0_87 = arith.constant 0 : index
      %138 = vector.load %arg17[%c2, %c0_86, %c0_87] : memref<4x16x8xf32, #tpu.memory_space<vmem>>, vector<1x16x8xf32>
      %139 = vector.shape_cast %138 : vector<1x16x8xf32> to vector<16x8xf32>
      %140 = vector.shape_cast %137 : vector<16x8xf32> to vector<1x16x8xf32>
      tpu.vector_store %arg17[%c2, %c0_86, %c0_87], %140 {strides = array<i32>} : memref<4x16x8xf32, #tpu.memory_space<vmem>>, vector<1x16x8xf32>,
      %141 = vector.extract_strided_slice %106 {offsets = [0, 48], sizes = [16, 8], strides = [1, 1]} : vector<16x96xf32> to vector<16x8xf32>
      %c2_88 = arith.constant 2 : index
      %c0_89 = arith.constant 0 : index
      %c0_90 = arith.constant 0 : index
      %142 = vector.load %arg18[%c2_88, %c0_89, %c0_90] : memref<4x16x8xf32, #tpu.memory_space<vmem>>, vector<1x16x8xf32>
      %143 = vector.shape_cast %142 : vector<1x16x8xf32> to vector<16x8xf32>
      %144 = vector.shape_cast %141 : vector<16x8xf32> to vector<1x16x8xf32>
      tpu.vector_store %arg18[%c2_88, %c0_89, %c0_90], %144 {strides = array<i32>} : memref<4x16x8xf32, #tpu.memory_space<vmem>>, vector<1x16x8xf32>,
      %145 = vector.extract_strided_slice %106 {offsets = [0, 80], sizes = [16, 8], strides = [1, 1]} : vector<16x96xf32> to vector<16x8xf32>
      %c2_91 = arith.constant 2 : index
      %c0_92 = arith.constant 0 : index
      %c0_93 = arith.constant 0 : index
      %146 = vector.load %arg19[%c2_91, %c0_92, %c0_93] : memref<4x16x8xf32, #tpu.memory_space<vmem>>, vector<1x16x8xf32>
      %147 = vector.shape_cast %146 : vector<1x16x8xf32> to vector<16x8xf32>
      %148 = vector.shape_cast %145 : vector<16x8xf32> to vector<1x16x8xf32>
      tpu.vector_store %arg19[%c2_91, %c0_92, %c0_93], %148 {strides = array<i32>} : memref<4x16x8xf32, #tpu.memory_space<vmem>>, vector<1x16x8xf32>,
      %149 = vector.extract_strided_slice %106 {offsets = [0, 24], sizes = [16, 8], strides = [1, 1]} : vector<16x96xf32> to vector<16x8xf32>
      %cst_94 = arith.constant 0.353553385 : f32
      %150 = vector.broadcast %cst_94 : f32 to vector<16x8xf32>
      %151 = arith.mulf %149, %150 : vector<16x8xf32>
      %c3 = arith.constant 3 : index
      %c0_95 = arith.constant 0 : index
      %c0_96 = arith.constant 0 : index
      %152 = vector.load %arg17[%c3, %c0_95, %c0_96] : memref<4x16x8xf32, #tpu.memory_space<vmem>>, vector<1x16x8xf32>
      %153 = vector.shape_cast %152 : vector<1x16x8xf32> to vector<16x8xf32>
      %154 = vector.shape_cast %151 : vector<16x8xf32> to vector<1x16x8xf32>
      tpu.vector_store %arg17[%c3, %c0_95, %c0_96], %154 {strides = array<i32>} : memref<4x16x8xf32, #tpu.memory_space<vmem>>, vector<1x16x8xf32>,
      %155 = vector.extract_strided_slice %106 {offsets = [0, 56], sizes = [16, 8], strides = [1, 1]} : vector<16x96xf32> to vector<16x8xf32>
      %c3_97 = arith.constant 3 : index
      %c0_98 = arith.constant 0 : index
      %c0_99 = arith.constant 0 : index
      %156 = vector.load %arg18[%c3_97, %c0_98, %c0_99] : memref<4x16x8xf32, #tpu.memory_space<vmem>>, vector<1x16x8xf32>
      %157 = vector.shape_cast %156 : vector<1x16x8xf32> to vector<16x8xf32>
      %158 = vector.shape_cast %155 : vector<16x8xf32> to vector<1x16x8xf32>
      tpu.vector_store %arg18[%c3_97, %c0_98, %c0_99], %158 {strides = array<i32>} : memref<4x16x8xf32, #tpu.memory_space<vmem>>, vector<1x16x8xf32>,
      %159 = vector.extract_strided_slice %106 {offsets = [0, 88], sizes = [16, 8], strides = [1, 1]} : vector<16x96xf32> to vector<16x8xf32>
      %c3_100 = arith.constant 3 : index
      %c0_101 = arith.constant 0 : index
      %c0_102 = arith.constant 0 : index
      %160 = vector.load %arg19[%c3_100, %c0_101, %c0_102] : memref<4x16x8xf32, #tpu.memory_space<vmem>>, vector<1x16x8xf32>
      %161 = vector.shape_cast %160 : vector<1x16x8xf32> to vector<16x8xf32>
      %162 = vector.shape_cast %159 : vector<16x8xf32> to vector<1x16x8xf32>
      tpu.vector_store %arg19[%c3_100, %c0_101, %c0_102], %162 {strides = array<i32>} : memref<4x16x8xf32, #tpu.memory_space<vmem>>, vector<1x16x8xf32>,
    } else {
    }
    %c8_i32 = arith.constant 8 : i32
    %3 = arith.muli %arg1, %c8_i32 : i32
    %4 = tpu.assume_multiple %3, 8 : i32
    %c0 = arith.constant 0 : index
    %5 = arith.index_cast %4 : i32 to index
    %c0_1 = arith.constant 0 : index
    %6 = vector.load %arg17[%c0, %5, %c0_1] : memref<4x16x8xf32, #tpu.memory_space<vmem>>, vector<4x8x8xf32>
    %c0_2 = arith.constant 0 : index
    %c0_3 = arith.constant 0 : index
    %c0_4 = arith.constant 0 : index
    %7 = vector.load %arg18[%c0_2, %c0_3, %c0_4] : memref<4x16x8xf32, #tpu.memory_space<vmem>>, vector<4x16x8xf32>
    %c0_5 = arith.constant 0 : index
    %c0_6 = arith.constant 0 : index
    %c0_7 = arith.constant 0 : index
    %8 = vector.load %arg19[%c0_5, %c0_6, %c0_7] : memref<4x16x8xf32, #tpu.memory_space<vmem>>, vector<4x16x8xf32>
    %cst = arith.constant dense<0.000000e+00> : vector<4x8x16xf32>
    %9 = tpu.matmul %6, %7, %cst {dimension_numbers = #tpu.dot_dimension_numbers<[2], [2], [1], [1], [0, 0, 0, 1, 1, 1], [0], [0]>} : vector<4x8x8xf32>, vector<4x16x8xf32>, vector<4x8x16xf32> -> vector<4x8x16xf32>
    %cst_8 = arith.constant dense<0xFF800000> : vector<4x8xf32>
    %10 = vector.multi_reduction <maximumf>, %9, %cst_8 [2] : vector<4x8x16xf32> to vector<4x8xf32>
    %11 = vector.shape_cast %10 : vector<4x8xf32> to vector<4x8x1xf32>
    %12 = vector.broadcast %11 : vector<4x8x1xf32> to vector<4x8x16xf32>
    %13 = arith.subf %9, %12 : vector<4x8x16xf32>
    %14 = math.exp %13 : vector<4x8x16xf32>
    %cst_9 = arith.constant dense<0.000000e+00> : vector<4x8xf32>
    %15 = vector.multi_reduction <add>, %14, %cst_9 [2] : vector<4x8x16xf32> to vector<4x8xf32>
    %16 = vector.shape_cast %15 : vector<4x8xf32> to vector<4x8x1xf32>
    %17 = tpu.reciprocal %16 : vector<4x8x1xf32> -> vector<4x8x1xf32>
    %18 = vector.broadcast %17 : vector<4x8x1xf32> to vector<4x8x16xf32>
    %19 = arith.mulf %14, %18 : vector<4x8x16xf32>
    %c0_10 = arith.constant 0 : index
    %c0_11 = arith.constant 0 : index
    %c0_12 = arith.constant 0 : index
    %c0_13 = arith.constant 0 : index
    %20 = vector.load %arg16[%c0_10, %c0_11, %c0_12, %c0_13] : memref<1x4x8x16xf32, #tpu.memory_space<vmem>>, vector<1x4x8x16xf32>
    %21 = vector.shape_cast %20 : vector<1x4x8x16xf32> to vector<4x8x16xf32>
    %22 = vector.shape_cast %19 : vector<4x8x16xf32> to vector<1x4x8x16xf32>
    tpu.vector_store %arg16[%c0_10, %c0_11, %c0_12, %c0_13], %22 {strides = array<i32>} : memref<1x4x8x16xf32, #tpu.memory_space<vmem>>, vector<1x4x8x16xf32>,
    %cst_14 = arith.constant dense<0.000000e+00> : vector<4x8x8xf32>
    %23 = tpu.matmul %19, %8, %cst_14 {dimension_numbers = #tpu.dot_dimension_numbers<[2], [1], [1], [2], [0, 0, 0, 1, 1, 2], [0], [0]>} : vector<4x8x16xf32>, vector<4x16x8xf32>, vector<4x8x8xf32> -> vector<4x8x8xf32>
    %c0_15 = arith.constant 0 : index
    %c0_16 = arith.constant 0 : index
    %c0_17 = arith.constant 0 : index
    %24 = vector.load %arg5[%c0_15, %c0_16, %c0_17] : memref<4x8x32xf32, #tpu.memory_space<vmem>>, vector<4x8x32xf32>
    %cst_18 = arith.constant dense<0.000000e+00> : vector<4x8x32xf32>
    %25 = tpu.matmul %23, %24, %cst_18 {dimension_numbers = #tpu.dot_dimension_numbers<[2], [1], [1], [2], [0, 0, 0, 1, 1, 2], [0], [0]>} : vector<4x8x8xf32>, vector<4x8x32xf32>, vector<4x8x32xf32> -> vector<4x8x32xf32>
    %cst_19 = arith.constant dense<0.000000e+00> : vector<8x32xf32>
    %26 = vector.multi_reduction <add>, %25, %cst_19 [0] : vector<4x8x32xf32> to vector<8x32xf32>
    %c0_20 = arith.constant 0 : index
    %c0_21 = arith.constant 0 : index
    %27 = vector.load %arg6[%c0_20, %c0_21] : memref<1x32xf32, #tpu.memory_space<vmem>>, vector<1x32xf32>
    %28 = vector.broadcast %27 : vector<1x32xf32> to vector<8x32xf32>
    %29 = arith.addf %26, %28 : vector<8x32xf32>
    %c0_22 = arith.constant 0 : index
    %30 = arith.index_cast %4 : i32 to index
    %c0_23 = arith.constant 0 : index
    %31 = vector.load %arg2[%c0_22, %30, %c0_23] : memref<1x16x32xf32, #tpu.memory_space<vmem>>, vector<1x8x32xf32>
    %32 = vector.shape_cast %31 : vector<1x8x32xf32> to vector<8x32xf32>
    %33 = arith.addf %29, %32 : vector<8x32xf32>
    %c0_24 = arith.constant 0 : index
    %c0_25 = arith.constant 0 : index
    %34 = vector.load %arg9[%c0_24, %c0_25] : memref<1x32xf32, #tpu.memory_space<vmem>>, vector<1x32xf32>
    %c0_26 = arith.constant 0 : index
    %c0_27 = arith.constant 0 : index
    %35 = vector.load %arg10[%c0_26, %c0_27] : memref<1x32xf32, #tpu.memory_space<vmem>>, vector<1x32xf32>
    %cst_28 = arith.constant dense<0.000000e+00> : vector<8xf32>
    %36 = vector.multi_reduction <add>, %33, %cst_28 [1] : vector<8x32xf32> to vector<8xf32>
    %37 = vector.shape_cast %36 : vector<8xf32> to vector<8x1xf32>
    %cst_29 = arith.constant 3.200000e+01 : f32
    %38 = vector.broadcast %cst_29 : f32 to vector<8x1xf32>
    %39 = arith.divf %37, %38 : vector<8x1xf32>
    %40 = vector.broadcast %39 : vector<8x1xf32> to vector<8x32xf32>
    %41 = arith.subf %33, %40 : vector<8x32xf32>
    %42 = arith.mulf %41, %41 : vector<8x32xf32>
    %cst_30 = arith.constant dense<0.000000e+00> : vector<8xf32>
    %43 = vector.multi_reduction <add>, %42, %cst_30 [1] : vector<8x32xf32> to vector<8xf32>
    %44 = vector.shape_cast %43 : vector<8xf32> to vector<8x1xf32>
    %cst_31 = arith.constant 3.200000e+01 : f32
    %45 = vector.broadcast %cst_31 : f32 to vector<8x1xf32>
    %46 = arith.divf %44, %45 : vector<8x1xf32>
    %cst_32 = arith.constant 9.99999997E-7 : f32
    %47 = vector.broadcast %cst_32 : f32 to vector<8x1xf32>
    %48 = arith.addf %46, %47 : vector<8x1xf32>
    %49 = math.rsqrt %48 : vector<8x1xf32>
    %50 = vector.broadcast %49 : vector<8x1xf32> to vector<8x32xf32>
    %51 = arith.mulf %41, %50 : vector<8x32xf32>
    %52 = vector.broadcast %34 : vector<1x32xf32> to vector<8x32xf32>
    %53 = arith.mulf %51, %52 : vector<8x32xf32>
    %54 = vector.broadcast %35 : vector<1x32xf32> to vector<8x32xf32>
    %55 = arith.addf %53, %54 : vector<8x32xf32>
    %c0_33 = arith.constant 0 : index
    %c0_34 = arith.constant 0 : index
    %56 = vector.load %arg11[%c0_33, %c0_34] : memref<32x64xf32, #tpu.memory_space<vmem>>, vector<32x64xf32>
    %cst_35 = arith.constant dense<0.000000e+00> : vector<8x64xf32>
    %57 = tpu.matmul %55, %56, %cst_35 {dimension_numbers = #tpu.dot_dimension_numbers<[1], [0], [0], [1], [0, 0, 1, 1], [], []>} : vector<8x32xf32>, vector<32x64xf32>, vector<8x64xf32> -> vector<8x64xf32>
    %c0_36 = arith.constant 0 : index
    %c0_37 = arith.constant 0 : index
    %58 = vector.load %arg12[%c0_36, %c0_37] : memref<1x64xf32, #tpu.memory_space<vmem>>, vector<1x64xf32>
    %59 = vector.broadcast %58 : vector<1x64xf32> to vector<8x64xf32>
    %60 = arith.addf %57, %59 : vector<8x64xf32>
    %cst_38 = arith.constant 5.000000e-01 : f32
    %61 = vector.broadcast %cst_38 : f32 to vector<8x64xf32>
    %62 = arith.mulf %61, %60 : vector<8x64xf32>
    %cst_39 = arith.constant 0.707106769 : f32
    %63 = vector.broadcast %cst_39 : f32 to vector<8x64xf32>
    %64 = arith.mulf %60, %63 : vector<8x64xf32>
    %65 = math.erf %64 : vector<8x64xf32>
    %cst_40 = arith.constant 1.000000e+00 : f32
    %66 = vector.broadcast %cst_40 : f32 to vector<8x64xf32>
    %67 = arith.addf %66, %65 : vector<8x64xf32>
    %68 = arith.mulf %62, %67 : vector<8x64xf32>
    %c0_41 = arith.constant 0 : index
    %c0_42 = arith.constant 0 : index
    %69 = vector.load %arg13[%c0_41, %c0_42] : memref<64x32xf32, #tpu.memory_space<vmem>>, vector<64x32xf32>
    %cst_43 = arith.constant dense<0.000000e+00> : vector<8x32xf32>
    %70 = tpu.matmul %68, %69, %cst_43 {dimension_numbers = #tpu.dot_dimension_numbers<[1], [0], [0], [1], [0, 0, 1, 1], [], []>} : vector<8x64xf32>, vector<64x32xf32>, vector<8x32xf32> -> vector<8x32xf32>
    %c0_44 = arith.constant 0 : index
    %c0_45 = arith.constant 0 : index
    %71 = vector.load %arg14[%c0_44, %c0_45] : memref<1x32xf32, #tpu.memory_space<vmem>>, vector<1x32xf32>
    %72 = vector.broadcast %71 : vector<1x32xf32> to vector<8x32xf32>
    %73 = arith.addf %70, %72 : vector<8x32xf32>
    %74 = arith.addf %73, %33 : vector<8x32xf32>
    %c0_46 = arith.constant 0 : index
    %c0_47 = arith.constant 0 : index
    %c0_48 = arith.constant 0 : index
    %75 = vector.load %arg15[%c0_46, %c0_47, %c0_48] : memref<1x8x32xf32, #tpu.memory_space<vmem>>, vector<1x8x32xf32>
    %76 = vector.shape_cast %75 : vector<1x8x32xf32> to vector<8x32xf32>
    %77 = vector.shape_cast %74 : vector<8x32xf32> to vector<1x8x32xf32>
    tpu.vector_store %arg15[%c0_46, %c0_47, %c0_48], %77 {strides = array<i32>} : memref<1x8x32xf32, #tpu.memory_space<vmem>>, vector<1x8x32xf32>,
    return
  }
  func.func @transform_0(%arg0: i32, %arg1: i32) -> (i32, i32, i32) {
    %c0_i32 = arith.constant 0 : i32
    %c0_i32_0 = arith.constant 0 : i32
    %c0_i32_1 = arith.constant 0 : i32
    return %arg0, %c0_i32, %c0_i32_0 : i32, i32, i32
  }
  func.func @transform_1(%arg0: i32, %arg1: i32) -> (i32, i32) {
    %c0_i32 = arith.constant 0 : i32
    %c0_i32_0 = arith.constant 0 : i32
    %c0_i32_1 = arith.constant 0 : i32
    return %c0_i32, %c0_i32_0 : i32, i32
  }
  func.func @transform_2(%arg0: i32, %arg1: i32) -> (i32, i32) {
    %c0_i32 = arith.constant 0 : i32
    %c0_i32_0 = arith.constant 0 : i32
    %c0_i32_1 = arith.constant 0 : i32
    return %c0_i32, %c0_i32_0 : i32, i32
  }
  func.func @transform_3(%arg0: i32, %arg1: i32) -> (i32, i32, i32) {
    %c0_i32 = arith.constant 0 : i32
    %c0_i32_0 = arith.constant 0 : i32
    %c0_i32_1 = arith.constant 0 : i32
    %c0_i32_2 = arith.constant 0 : i32
    return %c0_i32, %c0_i32_0, %c0_i32_1 : i32, i32, i32
  }
  func.func @transform_4(%arg0: i32, %arg1: i32) -> (i32, i32) {
    %c0_i32 = arith.constant 0 : i32
    %c0_i32_0 = arith.constant 0 : i32
    %c0_i32_1 = arith.constant 0 : i32
    return %c0_i32, %c0_i32_0 : i32, i32
  }
  func.func @transform_5(%arg0: i32, %arg1: i32) -> (i32, i32) {
    %c0_i32 = arith.constant 0 : i32
    %c0_i32_0 = arith.constant 0 : i32
    %c0_i32_1 = arith.constant 0 : i32
    return %c0_i32, %c0_i32_0 : i32, i32
  }
  func.func @transform_6(%arg0: i32, %arg1: i32) -> (i32, i32) {
    %c0_i32 = arith.constant 0 : i32
    %c0_i32_0 = arith.constant 0 : i32
    %c0_i32_1 = arith.constant 0 : i32
    return %c0_i32, %c0_i32_0 : i32, i32
  }
  func.func @transform_7(%arg0: i32, %arg1: i32) -> (i32, i32) {
    %c0_i32 = arith.constant 0 : i32
    %c0_i32_0 = arith.constant 0 : i32
    %c0_i32_1 = arith.constant 0 : i32
    return %c0_i32, %c0_i32_0 : i32, i32
  }
  func.func @transform_8(%arg0: i32, %arg1: i32) -> (i32, i32) {
    %c0_i32 = arith.constant 0 : i32
    %c0_i32_0 = arith.constant 0 : i32
    %c0_i32_1 = arith.constant 0 : i32
    return %c0_i32, %c0_i32_0 : i32, i32
  }
  func.func @transform_9(%arg0: i32, %arg1: i32) -> (i32, i32) {
    %c0_i32 = arith.constant 0 : i32
    %c0_i32_0 = arith.constant 0 : i32
    %c0_i32_1 = arith.constant 0 : i32
    return %c0_i32, %c0_i32_0 : i32, i32
  }
  func.func @transform_10(%arg0: i32, %arg1: i32) -> (i32, i32) {
    %c0_i32 = arith.constant 0 : i32
    %c0_i32_0 = arith.constant 0 : i32
    %c0_i32_1 = arith.constant 0 : i32
    return %c0_i32, %c0_i32_0 : i32, i32
  }
  func.func @transform_11(%arg0: i32, %arg1: i32) -> (i32, i32) {
    %c0_i32 = arith.constant 0 : i32
    %c0_i32_0 = arith.constant 0 : i32
    %c0_i32_1 = arith.constant 0 : i32
    return %c0_i32, %c0_i32_0 : i32, i32
  }
  func.func @transform_12(%arg0: i32, %arg1: i32) -> (i32, i32) {
    %c0_i32 = arith.constant 0 : i32
    %c0_i32_0 = arith.constant 0 : i32
    %c0_i32_1 = arith.constant 0 : i32
    return %c0_i32, %c0_i32_0 : i32, i32
  }
  func.func @transform_13(%arg0: i32, %arg1: i32) -> (i32, i32, i32) {
    %c0_i32 = arith.constant 0 : i32
    %c0_i32_0 = arith.constant 0 : i32
    return %arg0, %arg1, %c0_i32 : i32, i32, i32
  }
  func.func @transform_14(%arg0: i32, %arg1: i32) -> (i32, i32, i32, i32) {
    %c0_i32 = arith.constant 0 : i32
    %c0_i32_0 = arith.constant 0 : i32
    %c0_i32_1 = arith.constant 0 : i32
    return %arg0, %c0_i32, %arg1, %c0_i32_0 : i32, i32, i32, i32
  }
}

</mosaic_0001>

<llo_original>
// kernel: tpu_custom_call.1
$region0: #{tpu_custom_call.1}
  #allocation0 [shape = 'u32[]', space=smem, size = 0x4, offset = 0x4, fixed_abs, tag = 'smem constant byte address 0x4 - core index']
  #allocation1 [shape = 'u32[144,128]{1,0:T(1,128)}', space=vmem, size = 0x12000, scoped, tag = 'internal scratch']
  #allocation2 [shape = 'f32[4,16,8]{2,1,0:T(8,128)}', space=vmem, size = 0x8000, scoped, tag = 'scratch operand']
  #allocation3 [shape = 'f32[4,16,8]{2,1,0:T(8,128)}', space=vmem, size = 0x8000, scoped, tag = 'scratch operand']
  #allocation4 [shape = 'f32[4,16,8]{2,1,0:T(8,128)}', space=vmem, size = 0x8000, scoped, tag = 'scratch operand']
  %s0 = inlined_call_operand.vmem [shape: f32[2,16,32], index: 0, kind: input, shape index: {}]
  %s1 = inlined_call_operand.vmem [shape: f32[32,96], index: 1, kind: input, shape index: {}]
  %s2 = inlined_call_operand.vmem [shape: f32[1,96], index: 2, kind: input, shape index: {}]
  %s3 = inlined_call_operand.vmem [shape: f32[4,8,32], index: 3, kind: input, shape index: {}]
  %s4 = inlined_call_operand.vmem [shape: f32[1,32], index: 4, kind: input, shape index: {}]
  %s5 = inlined_call_operand.vmem [shape: f32[1,32], index: 5, kind: input, shape index: {}]
  %s6 = inlined_call_operand.vmem [shape: f32[1,32], index: 6, kind: input, shape index: {}]
  %s7 = inlined_call_operand.vmem [shape: f32[1,32], index: 7, kind: input, shape index: {}]
  %s8 = inlined_call_operand.vmem [shape: f32[1,32], index: 8, kind: input, shape index: {}]
  %s9 = inlined_call_operand.hbm [shape: f32[32,64], index: 9, kind: input, shape index: {}]
  %s10 = inlined_call_operand.vmem [shape: f32[1,64], index: 10, kind: input, shape index: {}]
  %s11 = inlined_call_operand.vmem [shape: f32[64,32], index: 11, kind: input, shape index: {}]
  %s12 = inlined_call_operand.vmem [shape: f32[1,32], index: 12, kind: input, shape index: {}]
  %s13 = inlined_call_operand.hbm [shape: f32[2,16,32], index: 13, kind: output, shape index: {0}]
  %s14 = inlined_call_operand.hbm [shape: f32[2,4,16,16], index: 14, kind: output, shape index: {1}]
  %15 = xla_tuple %s13, %s14
  %s16 = sld [smem:[#allocation0]]
  $region101: #{tpu_custom_call.1} parent=0
    _
  %s18 = ssub.s32 1, %s16
  %s19 = scalar_select 0, %s18, %s16
  $region1: #{tpu_custom_call.1} parent=0
    #allocation5 [shape = 'u8[16384]{0}', space=vmem, size = 0x4000, scoped, tag = 'input window, operand 9, single buffered']
    #allocation6 [shape = 's32[2]{0}', space=sflag, size = 0x8, scoped, tag = 'scoped memory for tpu_custom_call.1']
    #allocation7 [shape = 's32[2]{0}', space=sflag, size = 0x8, scoped, tag = 'scoped memory for tpu_custom_call.1']
    #allocation8 [shape = 'u8[8192]{0}', space=vmem, size = 0x2000, scoped, tag = 'output window, operand 0']
    #allocation9 [shape = 'u8[32768]{0}', space=vmem, size = 0x8000, scoped, tag = 'output window, operand 1']
    #allocation10 [shape = 's32[2]{0}', space=sflag, size = 0x8, scoped, tag = 'scoped memory for tpu_custom_call.1']
    %20 = vsyncpa [#allocation6], 0
    %21 = vsyncpa [#allocation7], 0
    %s22 = scalar_lea.sflag [#allocation7], 1
    %23 = vsyncpa %s22, 0
    %24 = vsyncpa [#allocation10], 0
    %s25 = scalar_lea.sflag [#allocation10], 1
    %26 = vsyncpa %s25, 0
    loop: start=0, step=1, limit=6
    $region2: #{tpu_custom_call.1} parent=1 // loop_pre_header
      _
    $region3: #{tpu_custom_call.1} parent=1 // loop_header
      %s28 = sphi 0, %s32
      %p29 = scmp.ge.s32.totalorder %s28, 6
      %s35 = sphi 0, %s47
      %s36 = sphi 0, %s43
      %s37 = sphi 0, %s35
      %s38 = sphi 0, %s36
      %s39 = sphi 0, %s37
      %s40 = sphi 0, %s38
      %s50 = sphi 0, %s52
      %s53 = sphi 0, %s50
      %s54 = sphi 0, %s53
      %s70 = sphi 0, %s54
      %s74 = sphi 0, %s74
      %s76 = sphi 0, %s74
      %s77 = sphi 0, %s76
      %s91 = sphi 0, %s77
      %s95 = sphi 0, %s95
      %s97 = sphi 0, %s95
      %s98 = sphi 0, %s97
      %s112 = sphi 0, %s98
      %s116 = sphi 0, %s116
      %s118 = sphi 0, %s116
      %s119 = sphi 0, %s118
      %s133 = sphi 0, %s119
      %s137 = sphi 0, %s137
      %s139 = sphi 0, %s137
      %s140 = sphi 0, %s139
      %s154 = sphi 0, %s140
      %s158 = sphi 0, %s158
      %s160 = sphi 0, %s158
      %s161 = sphi 0, %s160
      %s175 = sphi 0, %s161
      %s179 = sphi 0, %s179
      %s181 = sphi 0, %s179
      %s182 = sphi 0, %s181
      %s196 = sphi 0, %s182
      %s200 = sphi 0, %s200
      %s202 = sphi 0, %s200
      %s203 = sphi 0, %s202
      %s217 = sphi 0, %s203
      %s221 = sphi 0, %s221
      %s223 = sphi 0, %s221
      %s224 = sphi 0, %s223
      %s238 = sphi 0, %s224
      %s242 = sphi 0, %s242
      %s244 = sphi 0, %s242
      %s245 = sphi 0, %s244
      %s259 = sphi 0, %s245
      %s263 = sphi 0, %s263
      %s265 = sphi 0, %s263
      %s266 = sphi 0, %s265
      %s280 = sphi 0, %s266
      %s284 = sphi 0, %s284
      %s286 = sphi 0, %s284
      %s287 = sphi 0, %s286
      %s301 = sphi 0, %s287
      %s305 = sphi 0, %s305
      %s307 = sphi 0, %s305
      %s308 = sphi 0, %s307
      %s322 = sphi 0, %s308
      %s330 = sphi 0, %s332
      %s333 = sphi 0, %s330
      %s334 = sphi 0, %s333
      %s350 = sphi 0, %s334
      %s358 = sphi 0, %s360
      %s361 = sphi 0, %s358
      %s362 = sphi 0, %s361
      %s378 = sphi 0, %s362
    $region4: #{tpu_custom_call.1} parent=1 // loop_header_branch
      %31 = sbr.rel (%p29) target = $region8
    $region5: #{tpu_custom_call.1} parent=1 // loop_body
      %s33 = ssub.s32 %s28, 1
      %s34 = ssub.s32 %s28, 2
      %s41 = sadd.s32 1, %s36
      %p42 = scmp.ge.s32.totalorder %s41, 2
      %s43 = scalar_select %p42, 0, %s41
      %s44 = sadd.s32 1, %s35
      %s45 = scalar_select %p42, %s44, %s35
      %p46 = scmp.ge.s32.totalorder %s45, 2
      %s47 = scalar_select %p46, 0, %s45
      %s48 = ssub.s32 %s35, %s47
      %p49 = scmp.eq.s32.totalorder %s48, 0
      %s51 = sadd.s32 %s50, 1
      %s52 = scalar_select %p49, %s50, %s51
      %p55 = pneg %p49
      %p56 = scmp.eq.s32.totalorder %s28, 3
      %p57 = por %p55, %p56
      %p58 = scmp.ne.s32.totalorder %s50, %s53
      %p59 = scmp.eq.s32.totalorder %s28, 0
      %p60 = por %p58, %p59
      %p61 = scmp.ne.s32.totalorder %s50, %s53
      %p62 = scmp.eq.s32.totalorder %s33, 3
      %p63 = por %p61, %p62
      %p64 = scmp.ne.s32.totalorder %s53, %s54
      %p65 = scmp.eq.s32.totalorder %s33, 0
      %p66 = por %p64, %p65
      %p67 = scmp.ne.s32.totalorder %s53, %s54
      %p68 = scmp.eq.s32.totalorder %s34, 3
      %p69 = por %p67, %p68
      %p71 = scmp.ne.s32.totalorder %s54, %s70
      %p72 = scmp.eq.s32.totalorder %s34, 0
      %p73 = por %p71, %p72
      %s75 = sadd.s32 %s74, 1
      %p78 = scmp.eq.s32.totalorder %s28, 3
      %p79 = scmp.ne.s32.totalorder %s74, %s76
      %p80 = scmp.eq.s32.totalorder %s28, 0
      %p81 = por %p79, %p80
      %p82 = scmp.ne.s32.totalorder %s74, %s76
      %p83 = scmp.eq.s32.totalorder %s33, 3
      %p84 = por %p82, %p83
      %p85 = scmp.ne.s32.totalorder %s76, %s77
      %p86 = scmp.eq.s32.totalorder %s33, 0
      %p87 = por %p85, %p86
      %p88 = scmp.ne.s32.totalorder %s76, %s77
      %p89 = scmp.eq.s32.totalorder %s34, 3
      %p90 = por %p88, %p89
      %p92 = scmp.ne.s32.totalorder %s77, %s91
      %p93 = scmp.eq.s32.totalorder %s34, 0
      %p94 = por %p92, %p93
      %s96 = sadd.s32 %s95, 1
      %p99 = scmp.eq.s32.totalorder %s28, 3
      %p100 = scmp.ne.s32.totalorder %s95, %s97
      %p101 = scmp.eq.s32.totalorder %s28, 0
      %p102 = por %p100, %p101
      %p103 = scmp.ne.s32.totalorder %s95, %s97
      %p104 = scmp.eq.s32.totalorder %s33, 3
      %p105 = por %p103, %p104
      %p106 = scmp.ne.s32.totalorder %s97, %s98
      %p107 = scmp.eq.s32.totalorder %s33, 0
      %p108 = por %p106, %p107
      %p109 = scmp.ne.s32.totalorder %s97, %s98
      %p110 = scmp.eq.s32.totalorder %s34, 3
      %p111 = por %p109, %p110
      %p113 = scmp.ne.s32.totalorder %s98, %s112
      %p114 = scmp.eq.s32.totalorder %s34, 0
      %p115 = por %p113, %p114
      %s117 = sadd.s32 %s116, 1
      %p120 = scmp.eq.s32.totalorder %s28, 3
      %p121 = scmp.ne.s32.totalorder %s116, %s118
      %p122 = scmp.eq.s32.totalorder %s28, 0
      %p123 = por %p121, %p122
      %p124 = scmp.ne.s32.totalorder %s116, %s118
      %p125 = scmp.eq.s32.totalorder %s33, 3
      %p126 = por %p124, %p125
      %p127 = scmp.ne.s32.totalorder %s118, %s119
      %p128 = scmp.eq.s32.totalorder %s33, 0
      %p129 = por %p127, %p128
      %p130 = scmp.ne.s32.totalorder %s118, %s119
      %p131 = scmp.eq.s32.totalorder %s34, 3
      %p132 = por %p130, %p131
      %p134 = scmp.ne.s32.totalorder %s119, %s133
      %p135 = scmp.eq.s32.totalorder %s34, 0
      %p136 = por %p134, %p135
      %s138 = sadd.s32 %s137, 1
      %p141 = scmp.eq.s32.totalorder %s28, 3
      %p142 = scmp.ne.s32.totalorder %s137, %s139
      %p143 = scmp.eq.s32.totalorder %s28, 0
      %p144 = por %p142, %p143
      %p145 = scmp.ne.s32.totalorder %s137, %s139
      %p146 = scmp.eq.s32.totalorder %s33, 3
      %p147 = por %p145, %p146
      %p148 = scmp.ne.s32.totalorder %s139, %s140
      %p149 = scmp.eq.s32.totalorder %s33, 0
      %p150 = por %p148, %p149
      %p151 = scmp.ne.s32.totalorder %s139, %s140
      %p152 = scmp.eq.s32.totalorder %s34, 3
      %p153 = por %p151, %p152
      %p155 = scmp.ne.s32.totalorder %s140, %s154
      %p156 = scmp.eq.s32.totalorder %s34, 0
      %p157 = por %p155, %p156
      %s159 = sadd.s32 %s158, 1
      %p162 = scmp.eq.s32.totalorder %s28, 3
      %p163 = scmp.ne.s32.totalorder %s158, %s160
      %p164 = scmp.eq.s32.totalorder %s28, 0
      %p165 = por %p163, %p164
      %p166 = scmp.ne.s32.totalorder %s158, %s160
      %p167 = scmp.eq.s32.totalorder %s33, 3
      %p168 = por %p166, %p167
      %p169 = scmp.ne.s32.totalorder %s160, %s161
      %p170 = scmp.eq.s32.totalorder %s33, 0
      %p171 = por %p169, %p170
      %p172 = scmp.ne.s32.totalorder %s160, %s161
      %p173 = scmp.eq.s32.totalorder %s34, 3
      %p174 = por %p172, %p173
      %p176 = scmp.ne.s32.totalorder %s161, %s175
      %p177 = scmp.eq.s32.totalorder %s34, 0
      %p178 = por %p176, %p177
      %s180 = sadd.s32 %s179, 1
      %p183 = scmp.eq.s32.totalorder %s28, 3
      %p184 = scmp.ne.s32.totalorder %s179, %s181
      %p185 = scmp.eq.s32.totalorder %s28, 0
      %p186 = por %p184, %p185
      %p187 = scmp.ne.s32.totalorder %s179, %s181
      %p188 = scmp.eq.s32.totalorder %s33, 3
      %p189 = por %p187, %p188
      %p190 = scmp.ne.s32.totalorder %s181, %s182
      %p191 = scmp.eq.s32.totalorder %s33, 0
      %p192 = por %p190, %p191
      %p193 = scmp.ne.s32.totalorder %s181, %s182
      %p194 = scmp.eq.s32.totalorder %s34, 3
      %p195 = por %p193, %p194
      %p197 = scmp.ne.s32.totalorder %s182, %s196
      %p198 = scmp.eq.s32.totalorder %s34, 0
      %p199 = por %p197, %p198
      %s201 = sadd.s32 %s200, 1
      %p204 = scmp.eq.s32.totalorder %s28, 3
      %p205 = scmp.ne.s32.totalorder %s200, %s202
      %p206 = scmp.eq.s32.totalorder %s28, 0
      %p207 = por %p205, %p206
      %p208 = scmp.ne.s32.totalorder %s200, %s202
      %p209 = scmp.eq.s32.totalorder %s33, 3
      %p210 = por %p208, %p209
      %p211 = scmp.ne.s32.totalorder %s202, %s203
      %p212 = scmp.eq.s32.totalorder %s33, 0
      %p213 = por %p211, %p212
      %p214 = scmp.ne.s32.totalorder %s202, %s203
      %p215 = scmp.eq.s32.totalorder %s34, 3
      %p216 = por %p214, %p215
      %p218 = scmp.ne.s32.totalorder %s203, %s217
      %p219 = scmp.eq.s32.totalorder %s34, 0
      %p220 = por %p218, %p219
      %s222 = sadd.s32 %s221, 1
      %p225 = scmp.eq.s32.totalorder %s28, 3
      %p226 = scmp.ne.s32.totalorder %s221, %s223
      %p227 = scmp.eq.s32.totalorder %s28, 0
      %p228 = por %p226, %p227
      %p229 = scmp.ne.s32.totalorder %s221, %s223
      %p230 = scmp.eq.s32.totalorder %s33, 3
      %p231 = por %p229, %p230
      %p232 = scmp.ne.s32.totalorder %s223, %s224
      %p233 = scmp.eq.s32.totalorder %s33, 0
      %p234 = por %p232, %p233
      %p235 = scmp.ne.s32.totalorder %s223, %s224
      %p236 = scmp.eq.s32.totalorder %s34, 3
      %p237 = por %p235, %p236
      %p239 = scmp.ne.s32.totalorder %s224, %s238
      %p240 = scmp.eq.s32.totalorder %s34, 0
      %p241 = por %p239, %p240
      %s243 = sadd.s32 %s242, 1
      %p246 = scmp.eq.s32.totalorder %s28, 3
      %p247 = scmp.ne.s32.totalorder %s242, %s244
      %p248 = scmp.eq.s32.totalorder %s28, 0
      %p249 = por %p247, %p248
      %p250 = scmp.ne.s32.totalorder %s242, %s244
      %p251 = scmp.eq.s32.totalorder %s33, 3
      %p252 = por %p250, %p251
      %p253 = scmp.ne.s32.totalorder %s244, %s245
      %p254 = scmp.eq.s32.totalorder %s33, 0
      %p255 = por %p253, %p254
      %p256 = scmp.ne.s32.totalorder %s244, %s245
      %p257 = scmp.eq.s32.totalorder %s34, 3
      %p258 = por %p256, %p257
      %p260 = scmp.ne.s32.totalorder %s245, %s259
      %p261 = scmp.eq.s32.totalorder %s34, 0
      %p262 = por %p260, %p261
      %s264 = sadd.s32 %s263, 1
      %p267 = scmp.eq.s32.totalorder %s28, 3
      %p268 = scmp.ne.s32.totalorder %s263, %s265
      %p269 = scmp.eq.s32.totalorder %s28, 0
      %p270 = por %p268, %p269
      %p271 = scmp.ne.s32.totalorder %s263, %s265
      %p272 = scmp.eq.s32.totalorder %s33, 3
      %p273 = por %p271, %p272
      %p274 = scmp.ne.s32.totalorder %s265, %s266
      %p275 = scmp.eq.s32.totalorder %s33, 0
      %p276 = por %p274, %p275
      %p277 = scmp.ne.s32.totalorder %s265, %s266
      %p278 = scmp.eq.s32.totalorder %s34, 3
      %p279 = por %p277, %p278
      %p281 = scmp.ne.s32.totalorder %s266, %s280
      %p282 = scmp.eq.s32.totalorder %s34, 0
      %p283 = por %p281, %p282
      %s285 = sadd.s32 %s284, 1
      %p288 = scmp.eq.s32.totalorder %s28, 3
      %p289 = scmp.ne.s32.totalorder %s284, %s286
      %p290 = scmp.eq.s32.totalorder %s28, 0
      %p291 = por %p289, %p290
      %p292 = scmp.ne.s32.totalorder %s284, %s286
      %p293 = scmp.eq.s32.totalorder %s33, 3
      %p294 = por %p292, %p293
      %p295 = scmp.ne.s32.totalorder %s286, %s287
      %p296 = scmp.eq.s32.totalorder %s33, 0
      %p297 = por %p295, %p296
      %p298 = scmp.ne.s32.totalorder %s286, %s287
      %p299 = scmp.eq.s32.totalorder %s34, 3
      %p300 = por %p298, %p299
      %p302 = scmp.ne.s32.totalorder %s287, %s301
      %p303 = scmp.eq.s32.totalorder %s34, 0
      %p304 = por %p302, %p303
      %s306 = sadd.s32 %s305, 1
      %p309 = scmp.eq.s32.totalorder %s28, 3
      %p310 = scmp.ne.s32.totalorder %s305, %s307
      %p311 = scmp.eq.s32.totalorder %s28, 0
      %p312 = por %p310, %p311
      %p313 = scmp.ne.s32.totalorder %s305, %s307
      %p314 = scmp.eq.s32.totalorder %s33, 3
      %p315 = por %p313, %p314
      %p316 = scmp.ne.s32.totalorder %s307, %s308
      %p317 = scmp.eq.s32.totalorder %s33, 0
      %p318 = por %p316, %p317
      %p319 = scmp.ne.s32.totalorder %s307, %s308
      %p320 = scmp.eq.s32.totalorder %s34, 3
      %p321 = por %p319, %p320
      %p323 = scmp.ne.s32.totalorder %s308, %s322
      %p324 = scmp.eq.s32.totalorder %s34, 0
      %p325 = por %p323, %p324
      %s326 = ssub.s32 %s35, %s47
      %s327 = ssub.s32 %s36, %s43
      %s328 = sor.u32 %s326, %s327
      %p329 = scmp.eq.s32.totalorder %s328, 0
      %s331 = sadd.s32 %s330, 1
      %s332 = scalar_select %p329, %s330, %s331
      %p335 = pneg %p329
      %p336 = scmp.eq.s32.totalorder %s28, 3
      %p337 = por %p335, %p336
      %p338 = scmp.ne.s32.totalorder %s330, %s333
      %p339 = scmp.eq.s32.totalorder %s28, 0
      %p340 = por %p338, %p339
      %p341 = scmp.ne.s32.totalorder %s330, %s333
      %p342 = scmp.eq.s32.totalorder %s33, 3
      %p343 = por %p341, %p342
      %p344 = scmp.ne.s32.totalorder %s333, %s334
      %p345 = scmp.eq.s32.totalorder %s33, 0
      %p346 = por %p344, %p345
      %p347 = scmp.ne.s32.totalorder %s333, %s334
      %p348 = scmp.eq.s32.totalorder %s34, 3
      %p349 = por %p347, %p348
      %p351 = scmp.ne.s32.totalorder %s334, %s350
      %p352 = scmp.eq.s32.totalorder %s34, 0
      %p353 = por %p351, %p352
      %s354 = ssub.s32 %s35, %s47
      %s355 = ssub.s32 %s36, %s43
      %s356 = sor.u32 %s354, %s355
      %p357 = scmp.eq.s32.totalorder %s356, 0
      %s359 = sadd.s32 %s358, 1
      %s360 = scalar_select %p357, %s358, %s359
      %p363 = pneg %p357
      %p364 = scmp.eq.s32.totalorder %s28, 3
      %p365 = por %p363, %p364
      %p366 = scmp.ne.s32.totalorder %s358, %s361
      %p367 = scmp.eq.s32.totalorder %s28, 0
      %p368 = por %p366, %p367
      %p369 = scmp.ne.s32.totalorder %s358, %s361
      %p370 = scmp.eq.s32.totalorder %s33, 3
      %p371 = por %p369, %p370
      %p372 = scmp.ne.s32.totalorder %s361, %s362
      %p373 = scmp.eq.s32.totalorder %s33, 0
      %p374 = por %p372, %p373
      %p375 = scmp.ne.s32.totalorder %s361, %s362
      %p376 = scmp.eq.s32.totalorder %s34, 3
      %p377 = por %p375, %p376
      %p379 = scmp.ne.s32.totalorder %s362, %s378
      %p380 = scmp.eq.s32.totalorder %s34, 0
      %p381 = por %p379, %p380
      %p382 = scmp.le.s32.totalorder 1, %s28
      %p383 = scmp.lt.s32.totalorder %s28, 5
      %p384 = pnand %p382, %p383
      %p385 = pneg %p384
      // Predicated region
      $region9: #{tpu_custom_call.1} parent=5 // pred_check
        _
      $region10: #{tpu_custom_call.1} parent=5 // pred_check_branch
        %387 = sbr.rel (%p384) target = $region12
      $region11: #{tpu_custom_call.1} parent=5 // pred_region
        %s388 = ssub.s32 %s28, 1
        // Predicated region
        $region13: #{tpu_custom_call.1} parent=11 // pred_check
          %p389 = pneg %p87
        $region14: #{tpu_custom_call.1} parent=11 // pred_check_branch
          %391 = sbr.rel (%p389) target = $region16
        $region15: #{tpu_custom_call.1} parent=11 // pred_region
          _
        $region16: #{tpu_custom_call.1} parent=11 // pred_fallthru
          _
        // Predicated region
        $region17: #{tpu_custom_call.1} parent=11 // pred_check
          %p392 = pneg %p108
        $region18: #{tpu_custom_call.1} parent=11 // pred_check_branch
          %394 = sbr.rel (%p392) target = $region20
        $region19: #{tpu_custom_call.1} parent=11 // pred_region
          _
        $region20: #{tpu_custom_call.1} parent=11 // pred_fallthru
          _
        // Predicated region
        $region21: #{tpu_custom_call.1} parent=11 // pred_check
          %p395 = pneg %p129
        $region22: #{tpu_custom_call.1} parent=11 // pred_check_branch
          %397 = sbr.rel (%p395) target = $region24
        $region23: #{tpu_custom_call.1} parent=11 // pred_region
          _
        $region24: #{tpu_custom_call.1} parent=11 // pred_fallthru
          _
        // Predicated region
        $region25: #{tpu_custom_call.1} parent=11 // pred_check
          %p398 = pneg %p150
        $region26: #{tpu_custom_call.1} parent=11 // pred_check_branch
          %400 = sbr.rel (%p398) target = $region28
        $region27: #{tpu_custom_call.1} parent=11 // pred_region
          _
        $region28: #{tpu_custom_call.1} parent=11 // pred_fallthru
          _
        // Predicated region
        $region29: #{tpu_custom_call.1} parent=11 // pred_check
          %p401 = pneg %p171
        $region30: #{tpu_custom_call.1} parent=11 // pred_check_branch
          %403 = sbr.rel (%p401) target = $region32
        $region31: #{tpu_custom_call.1} parent=11 // pred_region
          _
        $region32: #{tpu_custom_call.1} parent=11 // pred_fallthru
          _
        // Predicated region
        $region33: #{tpu_custom_call.1} parent=11 // pred_check
          %p404 = pneg %p192
        $region34: #{tpu_custom_call.1} parent=11 // pred_check_branch
          %406 = sbr.rel (%p404) target = $region36
        $region35: #{tpu_custom_call.1} parent=11 // pred_region
          _
        $region36: #{tpu_custom_call.1} parent=11 // pred_fallthru
          _
        // Predicated region
        $region37: #{tpu_custom_call.1} parent=11 // pred_check
          %p407 = pneg %p213
        $region38: #{tpu_custom_call.1} parent=11 // pred_check_branch
          %409 = sbr.rel (%p407) target = $region40
        $region39: #{tpu_custom_call.1} parent=11 // pred_region
          _
        $region40: #{tpu_custom_call.1} parent=11 // pred_fallthru
          _
        // Predicated region
        $region41: #{tpu_custom_call.1} parent=11 // pred_check
          %p410 = pneg %p234
        $region42: #{tpu_custom_call.1} parent=11 // pred_check_branch
          %412 = sbr.rel (%p410) target = $region44
        $region43: #{tpu_custom_call.1} parent=11 // pred_region
          _
        $region44: #{tpu_custom_call.1} parent=11 // pred_fallthru
          _
        // Predicated region
        $region45: #{tpu_custom_call.1} parent=11 // pred_check
          %p413 = pneg %p255
        $region46: #{tpu_custom_call.1} parent=11 // pred_check_branch
          %415 = sbr.rel (%p413) target = $region48
        $region47: #{tpu_custom_call.1} parent=11 // pred_region
          %s417 = ssub.s32 512, 512
          %418 = vsyncadd [#allocation6], %s417
          %s419 = sshll.u32 [#allocation5], 4
          %s420 = int_to_ptr.vmem [resolvable:$true] %s419
          %425 = dma.hbm_to_vmem [thread:$0]  %s9, 512, %s420, [#allocation6], 128, 128, 8
        $region48: #{tpu_custom_call.1} parent=11 // pred_fallthru
          _
        // Predicated region
        $region49: #{tpu_custom_call.1} parent=11 // pred_check
          %p426 = pneg %p276
        $region50: #{tpu_custom_call.1} parent=11 // pred_check_branch
          %428 = sbr.rel (%p426) target = $region52
        $region51: #{tpu_custom_call.1} parent=11 // pred_region
          _
        $region52: #{tpu_custom_call.1} parent=11 // pred_fallthru
          _
        // Predicated region
        $region53: #{tpu_custom_call.1} parent=11 // pred_check
          %p429 = pneg %p297
        $region54: #{tpu_custom_call.1} parent=11 // pred_check_branch
          %431 = sbr.rel (%p429) target = $region56
        $region55: #{tpu_custom_call.1} parent=11 // pred_region
          _
        $region56: #{tpu_custom_call.1} parent=11 // pred_fallthru
          _
        // Predicated region
        $region57: #{tpu_custom_call.1} parent=11 // pred_check
          %p432 = pneg %p318
        $region58: #{tpu_custom_call.1} parent=11 // pred_check_branch
          %434 = sbr.rel (%p432) target = $region60
        $region59: #{tpu_custom_call.1} parent=11 // pred_region
          _
        $region60: #{tpu_custom_call.1} parent=11 // pred_fallthru
          _
      $region12: #{tpu_custom_call.1} parent=5 // pred_fallthru
        _
      %p435 = scmp.lt.s32.totalorder %s28, 4
      // Predicated region
      $region61: #{tpu_custom_call.1} parent=5 // pred_check
        %p436 = pneg %p435
      $region62: #{tpu_custom_call.1} parent=5 // pred_check_branch
        %438 = sbr.rel (%p436) target = $region64
      $region63: #{tpu_custom_call.1} parent=5 // pred_region
        // Predicated region
        $region65: #{tpu_custom_call.1} parent=63 // pred_check
          %p439 = pneg %p60
        $region66: #{tpu_custom_call.1} parent=63 // pred_check_branch
          %441 = sbr.rel (%p439) target = $region68
        $region67: #{tpu_custom_call.1} parent=63 // pred_region
          %p442 = scmp.lt.s32.totalorder %s35, 1
          %s443 = scalar_select %p442, %s35, 1
          %s444 = smul.addr %s443, 2
          %s445 = smul.addr %s444, 8
          %s446 = scalar_lea.vmem %s0, %s445
        $region68: #{tpu_custom_call.1} parent=63 // pred_fallthru
          _
      $region64: #{tpu_custom_call.1} parent=5 // pred_fallthru
        _
      %p447 = scmp.le.s32.totalorder 1, %s28
      %p448 = scmp.lt.s32.totalorder %s28, 5
      %p449 = pnand %p447, %p448
      %p450 = pneg %p449
      // Predicated region
      $region69: #{tpu_custom_call.1} parent=5 // pred_check
        _
      $region70: #{tpu_custom_call.1} parent=5 // pred_check_branch
        %452 = sbr.rel (%p449) target = $region72
      $region71: #{tpu_custom_call.1} parent=5 // pred_region
        %s453 = ssub.s32 %s28, 1
        // Predicated region
        $region73: #{tpu_custom_call.1} parent=71 // pred_check
          %p454 = pneg %p255
        $region74: #{tpu_custom_call.1} parent=71 // pred_check_branch
          %456 = sbr.rel (%p454) target = $region76
        $region75: #{tpu_custom_call.1} parent=71 // pred_region
          %457 = dma.done [#allocation6], 512
        $region76: #{tpu_custom_call.1} parent=71 // pred_fallthru
          _
        %p458 = scmp.lt.s32.totalorder %s37, 1
        %s459 = scalar_select %p458, %s37, 1
        %s460 = smul.addr %s459, 2
        %s461 = smul.addr %s460, 8
        %s462 = scalar_lea.vmem %s0, %s461
        %p463 = pneg %p66
        %p464 = pneg %p63
        %p465 = pneg %p87
        %p466 = pneg %p84
        %p467 = pneg %p108
        %p468 = pneg %p105
        %p469 = pneg %p129
        %p470 = pneg %p126
        %p471 = pneg %p150
        %p472 = pneg %p147
        %p473 = pneg %p171
        %p474 = pneg %p168
        %p475 = pneg %p192
        %p476 = pneg %p189
        %p477 = pneg %p213
        %p478 = pneg %p210
        %p479 = pneg %p234
        %p480 = pneg %p231
        %p481 = pneg %p255
        %p482 = pneg %p252
        %p483 = pneg %p276
        %p484 = pneg %p273
        %p485 = pneg %p297
        %p486 = pneg %p294
        %p487 = pneg %p318
        %p488 = pneg %p315
        %p489 = pneg %p346
        %p490 = pneg %p343
        %s491 = sand.u32 %s333, 1
        %s492 = scalar_lea.sflag [#allocation7], %s491
        %s493 = sand.u32 %s333, 1
        %s494 = smul.addr %s493, 8
        %s495 = scalar_lea.vmem [#allocation8], %s494
        %p496 = pneg %p374
        %p497 = pneg %p371
        %s498 = sand.u32 %s361, 1
        %s499 = scalar_lea.sflag [#allocation10], %s498
        %s500 = sand.u32 %s361, 1
        %s501 = smul.addr %s500, 32
        %s502 = scalar_lea.vmem [#allocation9], %s501
        %p503 = scmp.lt.s32.totalorder %s37, 1
        %s504 = scalar_select %p503, %s37, 1
        %s505 = smul.addr %s504, 2
        %s506 = smul.addr %s505, 8
        %s507 = scalar_lea.vmem %s0, %s506
        %p508 = scmp.eq.s32.totalorder %s38, 0
        // Predicated region
        $region77: #{tpu_custom_call.1} parent=71 // pred_check
          %p509 = pneg %p508
        $region78: #{tpu_custom_call.1} parent=71 // pred_check_branch
          %511 = sbr.rel (%p509) target = $region80
        $region79: #{tpu_custom_call.1} parent=71 // pred_region
          %v512 = vld [vmem:[%s507] sm:$0xff]
          %v513 = vld [vmem:[%s507 + $0x8] sm:$0xff]
          %v514 = vld [vmem:[%s5] sm:$0x1]
          %v515 = vld [vmem:[%s6] sm:$0x1]
          %vm516 = vcmask 261120
          %v517 = vsel %vm516, %v512, 0.0
          %518 = vadd.xlane.f32.xlu0 %v517
          %v519 = vpop.xlane.xlu0 %518
          %v520 = vsel %vm516, %v513, 0.0
          %521 = vadd.xlane.f32.xlu0 %v520
          %v522 = vpop.xlane.xlu0 %521
          %v523 = vrcp.pop 32.0
          %v524 = vmul.f32 %v519, %v523
          %v525 = vmul.f32 %v522, %v523
          %v526 = vsub.f32 %v512, %v524
          %v527 = vsub.f32 %v513, %v525
          %v528 = vmul.f32 %v526, %v526
          %v529 = vmul.f32 %v527, %v527
          %v530 = vsel %vm516, %v528, 0.0
          %531 = vadd.xlane.f32.xlu0 %v530
          %v532 = vpop.xlane.xlu0 %531
          %v533 = vsel %vm516, %v529, 0.0
          %534 = vadd.xlane.f32.xlu0 %v533
          %v535 = vpop.xlane.xlu0 %534
          %v536 = vmul.f32 %v532, %v523
          %v537 = vmul.f32 %v535, %v523
          %v538 = vadd.f32 %v536, 1e-06
          %v539 = vadd.f32 %v537, 1e-06
          %v540 = vrsqrt.pop %v538
          %v541 = vrsqrt.pop %v539
          %v542 = vmul.f32 %v526, %v540
          %v543 = vmul.f32 %v527, %v541
          %v545 = vlaneseq
          %v546 = vshrl.u32 %v545, 7
          %v547 = vsub.s32 0, %v546
          %v548 = vrot.slane %v514, %v547
          %v550 = vmul.f32 %v542, %v548
          %v551 = vmul.f32 %v543, %v548
          %v553 = vlaneseq
          %v554 = vshrl.u32 %v553, 7
          %v555 = vsub.s32 0, %v554
          %v556 = vrot.slane %v515, %v555
          %v558 = vadd.f32 %v550, %v556
          %v559 = vadd.f32 %v551, %v556
          %v560 = vld [vmem:[%s1] sm:$0xff]
          %v561 = vld [vmem:[%s1 + $0x8] sm:$0xff]
          %v562 = vld [vmem:[%s1 + $0x10] sm:$0xff]
          %v563 = vld [vmem:[%s1 + $0x18] sm:$0xff]
          %v564 = vld [vmem:[%s2] sm:$0x1]
          %v566 = vlaneseq
          %v567 = vshrl.u32 %v566, 7
          %v568 = vsub.s32 0, %v567
          %v569 = vrot.slane %v564, %v568
          %v572 = vsel %vm516, %v558, 0
          %v575 = vsel %vm516, %v559, 0
          %577 = vmatprep.subr.mxu0 0.0
          %578 = vmatpush1.msra.mxu0 %v560
          %579 = vmatprep.subr.mxu0 0.0
          %580 = vmatpush1.msra.mxu0 %v561
          %581 = vmatprep.subr.mxu0 0.0
          %582 = vmatpush1.msra.mxu0 %v562
          %583 = vmatprep.subr.mxu0 0.0
          %584 = vmatpush1.msra.mxu0 %v563
          %585 = vmatprep.subr.mxu0 0.0
          %586 = vmatpush1.msra.mxu0 0.0
          %587 = vmatprep.subr.mxu0 0.0
          %588 = vmatpush1.msra.mxu0 0.0
          %589 = vmatprep.subr.mxu0 0.0
          %590 = vmatpush1.msra.mxu0 0.0
          %591 = vmatprep.subr.mxu0 0.0
          %592 = vmatpush1.msra.mxu0 0.0
          %593 = vmatprep.subr.mxu0 0.0
          %594 = vmatpush1.msra.mxu0 0.0
          %595 = vmatprep.subr.mxu0 0.0
          %596 = vmatpush1.msra.mxu0 0.0
          %597 = vmatprep.subr.mxu0 0.0
          %598 = vmatpush1.msra.mxu0 0.0
          %599 = vmatprep.subr.mxu0 0.0
          %600 = vmatpush1.msra.mxu0 0.0
          %601 = vmatprep.subr.mxu0 0.0
          %602 = vmatpush1.msra.mxu0 0.0
          %603 = vmatprep.subr.mxu0 0.0
          %604 = vmatpush1.msra.mxu0 0.0
          %605 = vmatprep.subr.mxu0 0.0
          %606 = vmatpush1.msra.mxu0 0.0
          %607 = vmatprep.subr.mxu0 0.0
          %608 = vmatpush1.msra.mxu0 0.0
          %609 = vmatprep.subr.mxu0 0.0
          %610 = vmatpush1.msra.mxu0 0.0
          %611 = vmatprep.subr.mxu0 0.0
          %612 = vmatpush1.msra.mxu0 0.0
          %613 = vmatprep.subr.mxu0 0.0
          %614 = vmatpush1.msra.mxu0 0.0
          %615 = vmatprep.subr.mxu0 0.0
          %616 = vmatpush1.msra.mxu0 0.0
          %617 = vmatprep.subr.mxu0 0.0
          %618 = vmatpush1.msra.mxu0 0.0
          %619 = vmatprep.subr.mxu0 0.0
          %620 = vmatpush1.msra.mxu0 0.0
          %621 = vmatprep.subr.mxu0 0.0
          %622 = vmatpush1.msra.mxu0 0.0
          %623 = vmatprep.subr.mxu0 0.0
          %624 = vmatpush1.msra.mxu0 0.0
          %625 = vmatprep.subr.mxu0 0.0
          %626 = vmatpush1.msra.mxu0 0.0
          %627 = vmatprep.subr.mxu0 0.0
          %628 = vmatpush1.msra.mxu0 0.0
          %629 = vmatprep.subr.mxu0 0.0
          %630 = vmatpush1.msra.mxu0 0.0
          %631 = vmatprep.subr.mxu0 0.0
          %632 = vmatpush1.msra.mxu0 0.0
          %633 = vmatprep.subr.mxu0 0.0
          %634 = vmatpush1.msra.mxu0 0.0
          %635 = vmatprep.subr.mxu0 0.0
          %636 = vmatpush1.msra.mxu0 0.0
          %637 = vmatprep.subr.mxu0 0.0
          %638 = vmatpush1.msra.mxu0 0.0
          %639 = vmatprep.subr.mxu0 0.0
          %640 = vmatpush1.msra.mxu0 0.0
          %641 = vmatprep.mubr.f32.mxu0 0.0
          %642 = vmatmul.mubr.f32.gmra.mrb[0].mxu0 %v572
          %v643 = vpop.f32.mrb[0].mxu0
          %v644 = vadd.f32 %v569, %v643
          %v645 = vpop.f32.mrb[0].mxu0
          %646 = vmatprep.mubr.f32.mxu0 0.0
          %647 = vmatmul.mubr.f32.gmra.mrb[0].mxu0 %v575
          %v648 = vpop.f32.mrb[0].mxu0
          %v649 = vadd.f32 %v569, %v648
          %v650 = vpop.f32.mrb[0].mxu0
          %651 = vdwg.mxu0
          %v652 = vmul.f32 %v644, 0.35355338
          %v653 = vmul.f32 %v649, 0.35355338
          %vm654 = vcmask 64512
          %655 = vst.msk [vmem:[#allocation2] sm:$0xff] %vm654, %v652
          %656 = vst.msk [vmem:[#allocation2 + $0x8] sm:$0xff] %vm654, %v653
          %659 = vrot.lane.b32.xlu0 %v644, 96
          %v660 = vpop.permute.xlu0 %659
          %661 = vrot.lane.b32.xlu0 %v649, 96
          %v662 = vpop.permute.xlu0 %661
          %665 = vst.msk [vmem:[#allocation3] sm:$0xff] %vm654, %v660
          %666 = vst.msk [vmem:[#allocation3 + $0x8] sm:$0xff] %vm654, %v662
          %667 = vrot.lane.b32.xlu0 %v644, 64
          %v668 = vpop.permute.xlu0 %667
          %669 = vrot.lane.b32.xlu0 %v649, 64
          %v670 = vpop.permute.xlu0 %669
          %673 = vst.msk [vmem:[#allocation4] sm:$0xff] %vm654, %v668
          %674 = vst.msk [vmem:[#allocation4 + $0x8] sm:$0xff] %vm654, %v670
          %677 = vrot.lane.b32.xlu0 %v652, 120
          %v678 = vpop.permute.xlu0 %677
          %679 = vrot.lane.b32.xlu0 %v653, 120
          %v680 = vpop.permute.xlu0 %679
          %s683 = scalar_lea.vmem [#allocation2], 16
          %684 = vst.msk [vmem:[%s683] sm:$0xff] %vm654, %v678
          %685 = vst.msk [vmem:[%s683 + $0x8] sm:$0xff] %vm654, %v680
          %686 = vrot.lane.b32.xlu0 %v644, 88
          %v687 = vpop.permute.xlu0 %686
          %688 = vrot.lane.b32.xlu0 %v649, 88
          %v689 = vpop.permute.xlu0 %688
          %s692 = scalar_lea.vmem [#allocation3], 16
          %693 = vst.msk [vmem:[%s692] sm:$0xff] %vm654, %v687
          %694 = vst.msk [vmem:[%s692 + $0x8] sm:$0xff] %vm654, %v689
          %695 = vrot.lane.b32.xlu0 %v644, 56
          %v696 = vpop.permute.xlu0 %695
          %697 = vrot.lane.b32.xlu0 %v649, 56
          %v698 = vpop.permute.xlu0 %697
          %s701 = scalar_lea.vmem [#allocation4], 16
          %702 = vst.msk [vmem:[%s701] sm:$0xff] %vm654, %v696
          %703 = vst.msk [vmem:[%s701 + $0x8] sm:$0xff] %vm654, %v698
          %704 = vrot.lane.b32.xlu0 %v652, 112
          %v705 = vpop.permute.xlu0 %704
          %706 = vrot.lane.b32.xlu0 %v653, 112
          %v707 = vpop.permute.xlu0 %706
          %s710 = scalar_lea.vmem [#allocation2], 32
          %711 = vst.msk [vmem:[%s710] sm:$0xff] %vm654, %v705
          %712 = vst.msk [vmem:[%s710 + $0x8] sm:$0xff] %vm654, %v707
          %713 = vrot.lane.b32.xlu0 %v644, 80
          %v714 = vpop.permute.xlu0 %713
          %715 = vrot.lane.b32.xlu0 %v649, 80
          %v716 = vpop.permute.xlu0 %715
          %s719 = scalar_lea.vmem [#allocation3], 32
          %720 = vst.msk [vmem:[%s719] sm:$0xff] %vm654, %v714
          %721 = vst.msk [vmem:[%s719 + $0x8] sm:$0xff] %vm654, %v716
          %722 = vrot.lane.b32.xlu0 %v644, 48
          %v723 = vpop.permute.xlu0 %722
          %724 = vrot.lane.b32.xlu0 %v649, 48
          %v725 = vpop.permute.xlu0 %724
          %s728 = scalar_lea.vmem [#allocation4], 32
          %729 = vst.msk [vmem:[%s728] sm:$0xff] %vm654, %v723
          %730 = vst.msk [vmem:[%s728 + $0x8] sm:$0xff] %vm654, %v725
          %731 = vrot.lane.b32.xlu0 %v652, 104
          %v732 = vpop.permute.xlu0 %731
          %733 = vrot.lane.b32.xlu0 %v653, 104
          %v734 = vpop.permute.xlu0 %733
          %s737 = scalar_lea.vmem [#allocation2], 48
          %738 = vst.msk [vmem:[%s737] sm:$0xff] %vm654, %v732
          %739 = vst.msk [vmem:[%s737 + $0x8] sm:$0xff] %vm654, %v734
          %740 = vrot.lane.b32.xlu0 %v644, 72
          %v741 = vpop.permute.xlu0 %740
          %742 = vrot.lane.b32.xlu0 %v649, 72
          %v743 = vpop.permute.xlu0 %742
          %s746 = scalar_lea.vmem [#allocation3], 48
          %747 = vst.msk [vmem:[%s746] sm:$0xff] %vm654, %v741
          %748 = vst.msk [vmem:[%s746 + $0x8] sm:$0xff] %vm654, %v743
          %749 = vrot.lane.b32.xlu0 %v644, 40
          %v750 = vpop.permute.xlu0 %749
          %751 = vrot.lane.b32.xlu0 %v649, 40
          %v752 = vpop.permute.xlu0 %751
          %s755 = scalar_lea.vmem [#allocation4], 48
          %756 = vst.msk [vmem:[%s755] sm:$0xff] %vm654, %v750
          %757 = vst.msk [vmem:[%s755 + $0x8] sm:$0xff] %vm654, %v752
        $region80: #{tpu_custom_call.1} parent=71 // pred_fallthru
          _
        %s758 = smul.u32 %s38, 8
        %s759 = scalar_lea.vmem [#allocation2], %s758
        %v760 = vld [vmem:[%s759] sm:$0xff]
        %v761 = vld [vmem:[%s759 + $0x10] sm:$0xff]
        %v762 = vld [vmem:[%s759 + $0x20] sm:$0xff]
        %v763 = vld [vmem:[%s759 + $0x30] sm:$0xff]
        %v764 = vld [vmem:[#allocation3] sm:$0xff]
        %v765 = vld [vmem:[#allocation3 + $0x8] sm:$0xff]
        %v766 = vld [vmem:[#allocation3 + $0x10] sm:$0xff]
        %v767 = vld [vmem:[#allocation3 + $0x18] sm:$0xff]
        %v768 = vld [vmem:[#allocation3 + $0x20] sm:$0xff]
        %v769 = vld [vmem:[#allocation3 + $0x28] sm:$0xff]
        %v770 = vld [vmem:[#allocation3 + $0x30] sm:$0xff]
        %v771 = vld [vmem:[#allocation3 + $0x38] sm:$0xff]
        %v772 = vld [vmem:[#allocation4] sm:$0xff]
        %v773 = vld [vmem:[#allocation4 + $0x8] sm:$0xff]
        %v774 = vld [vmem:[#allocation4 + $0x10] sm:$0xff]
        %v775 = vld [vmem:[#allocation4 + $0x18] sm:$0xff]
        %v776 = vld [vmem:[#allocation4 + $0x20] sm:$0xff]
        %v777 = vld [vmem:[#allocation4 + $0x28] sm:$0xff]
        %v778 = vld [vmem:[#allocation4 + $0x30] sm:$0xff]
        %v779 = vld [vmem:[#allocation4 + $0x38] sm:$0xff]
        %vm780 = vcmask 64512
        %v782 = vsel %vm780, %v760, 0
        %v785 = vsel %vm780, %v764, 0
        %v788 = vsel %vm780, %v765, 0
        %790 = vmatprep.subr.mxu0 0.0
        %791 = vmatpush1.xpose.msra.mxu0 %v785
        %792 = vmatprep.subr.mxu0 0.0
        %793 = vmatpush1.xpose.msra.mxu0 %v788
        %794 = vmatprep.subr.mxu0 0.0
        %795 = vmatpush1.xpose.msra.mxu0 0.0
        %796 = vmatprep.subr.mxu0 0.0
        %797 = vmatpush1.xpose.msra.mxu0 0.0
        %798 = vmatprep.subr.mxu0 0.0
        %799 = vmatpush1.xpose.msra.mxu0 0.0
        %800 = vmatprep.subr.mxu0 0.0
        %801 = vmatpush1.xpose.msra.mxu0 0.0
        %802 = vmatprep.subr.mxu0 0.0
        %803 = vmatpush1.xpose.msra.mxu0 0.0
        %804 = vmatprep.subr.mxu0 0.0
        %805 = vmatpush1.xpose.msra.mxu0 0.0
        %806 = vmatprep.subr.mxu0 0.0
        %807 = vmatpush1.xpose.msra.mxu0 0.0
        %808 = vmatprep.subr.mxu0 0.0
        %809 = vmatpush1.xpose.msra.mxu0 0.0
        %810 = vmatprep.subr.mxu0 0.0
        %811 = vmatpush1.xpose.msra.mxu0 0.0
        %812 = vmatprep.subr.mxu0 0.0
        %813 = vmatpush1.xpose.msra.mxu0 0.0
        %814 = vmatprep.subr.mxu0 0.0
        %815 = vmatpush1.xpose.msra.mxu0 0.0
        %816 = vmatprep.subr.mxu0 0.0
        %817 = vmatpush1.xpose.msra.mxu0 0.0
        %818 = vmatprep.subr.mxu0 0.0
        %819 = vmatpush1.xpose.msra.mxu0 0.0
        %820 = vmatprep.subr.mxu0 0.0
        %821 = vmatpush1.xpose.msra.mxu0 0.0
        %822 = vmatprep.subr.mxu0 0.0
        %823 = vmatpush1.xpose.msra.mxu0 0.0
        %824 = vmatprep.subr.mxu0 0.0
        %825 = vmatpush1.xpose.msra.mxu0 0.0
        %826 = vmatprep.subr.mxu0 0.0
        %827 = vmatpush1.xpose.msra.mxu0 0.0
        %828 = vmatprep.subr.mxu0 0.0
        %829 = vmatpush1.xpose.msra.mxu0 0.0
        %830 = vmatprep.subr.mxu0 0.0
        %831 = vmatpush1.xpose.msra.mxu0 0.0
        %832 = vmatprep.subr.mxu0 0.0
        %833 = vmatpush1.xpose.msra.mxu0 0.0
        %834 = vmatprep.subr.mxu0 0.0
        %835 = vmatpush1.xpose.msra.mxu0 0.0
        %836 = vmatprep.subr.mxu0 0.0
        %837 = vmatpush1.xpose.msra.mxu0 0.0
        %838 = vmatprep.subr.mxu0 0.0
        %839 = vmatpush1.xpose.msra.mxu0 0.0
        %840 = vmatprep.subr.mxu0 0.0
        %841 = vmatpush1.xpose.msra.mxu0 0.0
        %842 = vmatprep.subr.mxu0 0.0
        %843 = vmatpush1.xpose.msra.mxu0 0.0
        %844 = vmatprep.subr.mxu0 0.0
        %845 = vmatpush1.xpose.msra.mxu0 0.0
        %846 = vmatprep.subr.mxu0 0.0
        %847 = vmatpush1.xpose.msra.mxu0 0.0
        %848 = vmatprep.subr.mxu0 0.0
        %849 = vmatpush1.xpose.msra.mxu0 0.0
        %850 = vmatprep.subr.mxu0 0.0
        %851 = vmatpush1.xpose.msra.mxu0 0.0
        %852 = vmatprep.subr.mxu0 0.0
        %853 = vmatpush1.xpose.msra.mxu0 0.0
        %854 = vmatprep.mubr.f32.mxu0 0.0
        %855 = vmatmul.mubr.f32.gmra.mrb[0].mxu0 %v782
        %v856 = vpop.f32.mrb[0].mxu0
        %v857 = vadd.f32 0.0, %v856
        %v858 = vpop.f32.mrb[0].mxu0
        %859 = vdwg.mxu0
        %v861 = vsel %vm780, %v761, 0
        %v864 = vsel %vm780, %v766, 0
        %v867 = vsel %vm780, %v767, 0
        %869 = vmatprep.subr.mxu0 0.0
        %870 = vmatpush1.xpose.msra.mxu0 %v864
        %871 = vmatprep.subr.mxu0 0.0
        %872 = vmatpush1.xpose.msra.mxu0 %v867
        %873 = vmatprep.subr.mxu0 0.0
        %874 = vmatpush1.xpose.msra.mxu0 0.0
        %875 = vmatprep.subr.mxu0 0.0
        %876 = vmatpush1.xpose.msra.mxu0 0.0
        %877 = vmatprep.subr.mxu0 0.0
        %878 = vmatpush1.xpose.msra.mxu0 0.0
        %879 = vmatprep.subr.mxu0 0.0
        %880 = vmatpush1.xpose.msra.mxu0 0.0
        %881 = vmatprep.subr.mxu0 0.0
        %882 = vmatpush1.xpose.msra.mxu0 0.0
        %883 = vmatprep.subr.mxu0 0.0
        %884 = vmatpush1.xpose.msra.mxu0 0.0
        %885 = vmatprep.subr.mxu0 0.0
        %886 = vmatpush1.xpose.msra.mxu0 0.0
        %887 = vmatprep.subr.mxu0 0.0
        %888 = vmatpush1.xpose.msra.mxu0 0.0
        %889 = vmatprep.subr.mxu0 0.0
        %890 = vmatpush1.xpose.msra.mxu0 0.0
        %891 = vmatprep.subr.mxu0 0.0
        %892 = vmatpush1.xpose.msra.mxu0 0.0
        %893 = vmatprep.subr.mxu0 0.0
        %894 = vmatpush1.xpose.msra.mxu0 0.0
        %895 = vmatprep.subr.mxu0 0.0
        %896 = vmatpush1.xpose.msra.mxu0 0.0
        %897 = vmatprep.subr.mxu0 0.0
        %898 = vmatpush1.xpose.msra.mxu0 0.0
        %899 = vmatprep.subr.mxu0 0.0
        %900 = vmatpush1.xpose.msra.mxu0 0.0
        %901 = vmatprep.subr.mxu0 0.0
        %902 = vmatpush1.xpose.msra.mxu0 0.0
        %903 = vmatprep.subr.mxu0 0.0
        %904 = vmatpush1.xpose.msra.mxu0 0.0
        %905 = vmatprep.subr.mxu0 0.0
        %906 = vmatpush1.xpose.msra.mxu0 0.0
        %907 = vmatprep.subr.mxu0 0.0
        %908 = vmatpush1.xpose.msra.mxu0 0.0
        %909 = vmatprep.subr.mxu0 0.0
        %910 = vmatpush1.xpose.msra.mxu0 0.0
        %911 = vmatprep.subr.mxu0 0.0
        %912 = vmatpush1.xpose.msra.mxu0 0.0
        %913 = vmatprep.subr.mxu0 0.0
        %914 = vmatpush1.xpose.msra.mxu0 0.0
        %915 = vmatprep.subr.mxu0 0.0
        %916 = vmatpush1.xpose.msra.mxu0 0.0
        %917 = vmatprep.subr.mxu0 0.0
        %918 = vmatpush1.xpose.msra.mxu0 0.0
        %919 = vmatprep.subr.mxu0 0.0
        %920 = vmatpush1.xpose.msra.mxu0 0.0
        %921 = vmatprep.subr.mxu0 0.0
        %922 = vmatpush1.xpose.msra.mxu0 0.0
        %923 = vmatprep.subr.mxu0 0.0
        %924 = vmatpush1.xpose.msra.mxu0 0.0
        %925 = vmatprep.subr.mxu0 0.0
        %926 = vmatpush1.xpose.msra.mxu0 0.0
        %927 = vmatprep.subr.mxu0 0.0
        %928 = vmatpush1.xpose.msra.mxu0 0.0
        %929 = vmatprep.subr.mxu0 0.0
        %930 = vmatpush1.xpose.msra.mxu0 0.0
        %931 = vmatprep.subr.mxu0 0.0
        %932 = vmatpush1.xpose.msra.mxu0 0.0
        %933 = vmatprep.mubr.f32.mxu0 0.0
        %934 = vmatmul.mubr.f32.gmra.mrb[0].mxu0 %v861
        %v935 = vpop.f32.mrb[0].mxu0
        %v936 = vadd.f32 0.0, %v935
        %v937 = vpop.f32.mrb[0].mxu0
        %938 = vdwg.mxu0
        %v940 = vsel %vm780, %v762, 0
        %v943 = vsel %vm780, %v768, 0
        %v946 = vsel %vm780, %v769, 0
        %948 = vmatprep.subr.mxu0 0.0
        %949 = vmatpush1.xpose.msra.mxu0 %v943
        %950 = vmatprep.subr.mxu0 0.0
        %951 = vmatpush1.xpose.msra.mxu0 %v946
        %952 = vmatprep.subr.mxu0 0.0
        %953 = vmatpush1.xpose.msra.mxu0 0.0
        %954 = vmatprep.subr.mxu0 0.0
        %955 = vmatpush1.xpose.msra.mxu0 0.0
        %956 = vmatprep.subr.mxu0 0.0
        %957 = vmatpush1.xpose.msra.mxu0 0.0
        %958 = vmatprep.subr.mxu0 0.0
        %959 = vmatpush1.xpose.msra.mxu0 0.0
        %960 = vmatprep.subr.mxu0 0.0
        %961 = vmatpush1.xpose.msra.mxu0 0.0
        %962 = vmatprep.subr.mxu0 0.0
        %963 = vmatpush1.xpose.msra.mxu0 0.0
        %964 = vmatprep.subr.mxu0 0.0
        %965 = vmatpush1.xpose.msra.mxu0 0.0
        %966 = vmatprep.subr.mxu0 0.0
        %967 = vmatpush1.xpose.msra.mxu0 0.0
        %968 = vmatprep.subr.mxu0 0.0
        %969 = vmatpush1.xpose.msra.mxu0 0.0
        %970 = vmatprep.subr.mxu0 0.0
        %971 = vmatpush1.xpose.msra.mxu0 0.0
        %972 = vmatprep.subr.mxu0 0.0
        %973 = vmatpush1.xpose.msra.mxu0 0.0
        %974 = vmatprep.subr.mxu0 0.0
        %975 = vmatpush1.xpose.msra.mxu0 0.0
        %976 = vmatprep.subr.mxu0 0.0
        %977 = vmatpush1.xpose.msra.mxu0 0.0
        %978 = vmatprep.subr.mxu0 0.0
        %979 = vmatpush1.xpose.msra.mxu0 0.0
        %980 = vmatprep.subr.mxu0 0.0
        %981 = vmatpush1.xpose.msra.mxu0 0.0
        %982 = vmatprep.subr.mxu0 0.0
        %983 = vmatpush1.xpose.msra.mxu0 0.0
        %984 = vmatprep.subr.mxu0 0.0
        %985 = vmatpush1.xpose.msra.mxu0 0.0
        %986 = vmatprep.subr.mxu0 0.0
        %987 = vmatpush1.xpose.msra.mxu0 0.0
        %988 = vmatprep.subr.mxu0 0.0
        %989 = vmatpush1.xpose.msra.mxu0 0.0
        %990 = vmatprep.subr.mxu0 0.0
        %991 = vmatpush1.xpose.msra.mxu0 0.0
        %992 = vmatprep.subr.mxu0 0.0
        %993 = vmatpush1.xpose.msra.mxu0 0.0
        %994 = vmatprep.subr.mxu0 0.0
        %995 = vmatpush1.xpose.msra.mxu0 0.0
        %996 = vmatprep.subr.mxu0 0.0
        %997 = vmatpush1.xpose.msra.mxu0 0.0
        %998 = vmatprep.subr.mxu0 0.0
        %999 = vmatpush1.xpose.msra.mxu0 0.0
        %1000 = vmatprep.subr.mxu0 0.0
        %1001 = vmatpush1.xpose.msra.mxu0 0.0
        %1002 = vmatprep.subr.mxu0 0.0
        %1003 = vmatpush1.xpose.msra.mxu0 0.0
        %1004 = vmatprep.subr.mxu0 0.0
        %1005 = vmatpush1.xpose.msra.mxu0 0.0
        %1006 = vmatprep.subr.mxu0 0.0
        %1007 = vmatpush1.xpose.msra.mxu0 0.0
        %1008 = vmatprep.subr.mxu0 0.0
        %1009 = vmatpush1.xpose.msra.mxu0 0.0
        %1010 = vmatprep.subr.mxu0 0.0
        %1011 = vmatpush1.xpose.msra.mxu0 0.0
        %1012 = vmatprep.mubr.f32.mxu0 0.0
        %1013 = vmatmul.mubr.f32.gmra.mrb[0].mxu0 %v940
        %v1014 = vpop.f32.mrb[0].mxu0
        %v1015 = vadd.f32 0.0, %v1014
        %v1016 = vpop.f32.mrb[0].mxu0
        %1017 = vdwg.mxu0
        %v1019 = vsel %vm780, %v763, 0
        %v1022 = vsel %vm780, %v770, 0
        %v1025 = vsel %vm780, %v771, 0
        %1027 = vmatprep.subr.mxu0 0.0
        %1028 = vmatpush1.xpose.msra.mxu0 %v1022
        %1029 = vmatprep.subr.mxu0 0.0
        %1030 = vmatpush1.xpose.msra.mxu0 %v1025
        %1031 = vmatprep.subr.mxu0 0.0
        %1032 = vmatpush1.xpose.msra.mxu0 0.0
        %1033 = vmatprep.subr.mxu0 0.0
        %1034 = vmatpush1.xpose.msra.mxu0 0.0
        %1035 = vmatprep.subr.mxu0 0.0
        %1036 = vmatpush1.xpose.msra.mxu0 0.0
        %1037 = vmatprep.subr.mxu0 0.0
        %1038 = vmatpush1.xpose.msra.mxu0 0.0
        %1039 = vmatprep.subr.mxu0 0.0
        %1040 = vmatpush1.xpose.msra.mxu0 0.0
        %1041 = vmatprep.subr.mxu0 0.0
        %1042 = vmatpush1.xpose.msra.mxu0 0.0
        %1043 = vmatprep.subr.mxu0 0.0
        %1044 = vmatpush1.xpose.msra.mxu0 0.0
        %1045 = vmatprep.subr.mxu0 0.0
        %1046 = vmatpush1.xpose.msra.mxu0 0.0
        %1047 = vmatprep.subr.mxu0 0.0
        %1048 = vmatpush1.xpose.msra.mxu0 0.0
        %1049 = vmatprep.subr.mxu0 0.0
        %1050 = vmatpush1.xpose.msra.mxu0 0.0
        %1051 = vmatprep.subr.mxu0 0.0
        %1052 = vmatpush1.xpose.msra.mxu0 0.0
        %1053 = vmatprep.subr.mxu0 0.0
        %1054 = vmatpush1.xpose.msra.mxu0 0.0
        %1055 = vmatprep.subr.mxu0 0.0
        %1056 = vmatpush1.xpose.msra.mxu0 0.0
        %1057 = vmatprep.subr.mxu0 0.0
        %1058 = vmatpush1.xpose.msra.mxu0 0.0
        %1059 = vmatprep.subr.mxu0 0.0
        %1060 = vmatpush1.xpose.msra.mxu0 0.0
        %1061 = vmatprep.subr.mxu0 0.0
        %1062 = vmatpush1.xpose.msra.mxu0 0.0
        %1063 = vmatprep.subr.mxu0 0.0
        %1064 = vmatpush1.xpose.msra.mxu0 0.0
        %1065 = vmatprep.subr.mxu0 0.0
        %1066 = vmatpush1.xpose.msra.mxu0 0.0
        %1067 = vmatprep.subr.mxu0 0.0
        %1068 = vmatpush1.xpose.msra.mxu0 0.0
        %1069 = vmatprep.subr.mxu0 0.0
        %1070 = vmatpush1.xpose.msra.mxu0 0.0
        %1071 = vmatprep.subr.mxu0 0.0
        %1072 = vmatpush1.xpose.msra.mxu0 0.0
        %1073 = vmatprep.subr.mxu0 0.0
        %1074 = vmatpush1.xpose.msra.mxu0 0.0
        %1075 = vmatprep.subr.mxu0 0.0
        %1076 = vmatpush1.xpose.msra.mxu0 0.0
        %1077 = vmatprep.subr.mxu0 0.0
        %1078 = vmatpush1.xpose.msra.mxu0 0.0
        %1079 = vmatprep.subr.mxu0 0.0
        %1080 = vmatpush1.xpose.msra.mxu0 0.0
        %1081 = vmatprep.subr.mxu0 0.0
        %1082 = vmatpush1.xpose.msra.mxu0 0.0
        %1083 = vmatprep.subr.mxu0 0.0
        %1084 = vmatpush1.xpose.msra.mxu0 0.0
        %1085 = vmatprep.subr.mxu0 0.0
        %1086 = vmatpush1.xpose.msra.mxu0 0.0
        %1087 = vmatprep.subr.mxu0 0.0
        %1088 = vmatpush1.xpose.msra.mxu0 0.0
        %1089 = vmatprep.subr.mxu0 0.0
        %1090 = vmatpush1.xpose.msra.mxu0 0.0
        %1091 = vmatprep.mubr.f32.mxu0 0.0
        %1092 = vmatmul.mubr.f32.gmra.mrb[0].mxu0 %v1019
        %v1093 = vpop.f32.mrb[0].mxu0
        %v1094 = vadd.f32 0.0, %v1093
        %v1095 = vpop.f32.mrb[0].mxu0
        %1096 = vdwg.mxu0
        %vm1097 = vcmask 130048
        %v1098 = vsel %vm1097, %v857, -inf
        %1099 = vmax.xlane.f32.xlu0 %v1098
        %v1100 = vpop.xlane.xlu0 %1099
        %v1101 = vsel %vm1097, %v936, -inf
        %1102 = vmax.xlane.f32.xlu0 %v1101
        %v1103 = vpop.xlane.xlu0 %1102
        %v1104 = vsel %vm1097, %v1015, -inf
        %1105 = vmax.xlane.f32.xlu0 %v1104
        %v1106 = vpop.xlane.xlu0 %1105
        %v1107 = vsel %vm1097, %v1094, -inf
        %1108 = vmax.xlane.f32.xlu0 %v1107
        %v1109 = vpop.xlane.xlu0 %1108
        %v1110 = vsub.f32 %v857, %v1100
        %v1111 = vsub.f32 %v936, %v1103
        %v1112 = vsub.f32 %v1015, %v1106
        %v1113 = vsub.f32 %v1094, %v1109
        %v1114 = vmul.f32 %v1110, 1.442695
        %v1115 = vpow.pop %v1114
        %v1116 = vmul.f32 %v1111, 1.442695
        %v1117 = vpow.pop %v1116
        %v1118 = vmul.f32 %v1112, 1.442695
        %v1119 = vpow.pop %v1118
        %v1120 = vmul.f32 %v1113, 1.442695
        %v1121 = vpow.pop %v1120
        %v1122 = vsel %vm1097, %v1115, 0.0
        %1123 = vadd.xlane.f32.xlu0 %v1122
        %v1124 = vpop.xlane.xlu0 %1123
        %v1125 = vsel %vm1097, %v1117, 0.0
        %1126 = vadd.xlane.f32.xlu0 %v1125
        %v1127 = vpop.xlane.xlu0 %1126
        %v1128 = vsel %vm1097, %v1119, 0.0
        %1129 = vadd.xlane.f32.xlu0 %v1128
        %v1130 = vpop.xlane.xlu0 %1129
        %v1131 = vsel %vm1097, %v1121, 0.0
        %1132 = vadd.xlane.f32.xlu0 %v1131
        %v1133 = vpop.xlane.xlu0 %1132
        %v1134 = vrcp.pop %v1124
        %v1135 = vrcp.pop %v1127
        %v1136 = vrcp.pop %v1130
        %v1137 = vrcp.pop %v1133
        %v1138 = vmul.f32 %v1115, %v1134
        %v1139 = vmul.f32 %v1117, %v1135
        %v1140 = vmul.f32 %v1119, %v1136
        %v1141 = vmul.f32 %v1121, %v1137
        %1142 = vst.msk [vmem:[%s502] sm:$0xff] %vm1097, %v1138
        %1143 = vst.msk [vmem:[%s502 + $0x8] sm:$0xff] %vm1097, %v1139
        %1144 = vst.msk [vmem:[%s502 + $0x10] sm:$0xff] %vm1097, %v1140
        %1145 = vst.msk [vmem:[%s502 + $0x18] sm:$0xff] %vm1097, %v1141
        %v1147 = vsel %vm1097, %v1138, 0
        %1149 = vmatprep.subr.mxu0 0.0
        %1150 = vmatpush1.msra.mxu0 %v772
        %1151 = vmatprep.subr.mxu0 0.0
        %1152 = vmatpush1.msra.mxu0 %v773
        %1153 = vmatprep.subr.mxu0 0.0
        %1154 = vmatpush1.msra.mxu0 0.0
        %1155 = vmatprep.subr.mxu0 0.0
        %1156 = vmatpush1.msra.mxu0 0.0
        %1157 = vmatprep.subr.mxu0 0.0
        %1158 = vmatpush1.msra.mxu0 0.0
        %1159 = vmatprep.subr.mxu0 0.0
        %1160 = vmatpush1.msra.mxu0 0.0
        %1161 = vmatprep.subr.mxu0 0.0
        %1162 = vmatpush1.msra.mxu0 0.0
        %1163 = vmatprep.subr.mxu0 0.0
        %1164 = vmatpush1.msra.mxu0 0.0
        %1165 = vmatprep.subr.mxu0 0.0
        %1166 = vmatpush1.msra.mxu0 0.0
        %1167 = vmatprep.subr.mxu0 0.0
        %1168 = vmatpush1.msra.mxu0 0.0
        %1169 = vmatprep.subr.mxu0 0.0
        %1170 = vmatpush1.msra.mxu0 0.0
        %1171 = vmatprep.subr.mxu0 0.0
        %1172 = vmatpush1.msra.mxu0 0.0
        %1173 = vmatprep.subr.mxu0 0.0
        %1174 = vmatpush1.msra.mxu0 0.0
        %1175 = vmatprep.subr.mxu0 0.0
        %1176 = vmatpush1.msra.mxu0 0.0
        %1177 = vmatprep.subr.mxu0 0.0
        %1178 = vmatpush1.msra.mxu0 0.0
        %1179 = vmatprep.subr.mxu0 0.0
        %1180 = vmatpush1.msra.mxu0 0.0
        %1181 = vmatprep.subr.mxu0 0.0
        %1182 = vmatpush1.msra.mxu0 0.0
        %1183 = vmatprep.subr.mxu0 0.0
        %1184 = vmatpush1.msra.mxu0 0.0
        %1185 = vmatprep.subr.mxu0 0.0
        %1186 = vmatpush1.msra.mxu0 0.0
        %1187 = vmatprep.subr.mxu0 0.0
        %1188 = vmatpush1.msra.mxu0 0.0
        %1189 = vmatprep.subr.mxu0 0.0
        %1190 = vmatpush1.msra.mxu0 0.0
        %1191 = vmatprep.subr.mxu0 0.0
        %1192 = vmatpush1.msra.mxu0 0.0
        %1193 = vmatprep.subr.mxu0 0.0
        %1194 = vmatpush1.msra.mxu0 0.0
        %1195 = vmatprep.subr.mxu0 0.0
        %1196 = vmatpush1.msra.mxu0 0.0
        %1197 = vmatprep.subr.mxu0 0.0
        %1198 = vmatpush1.msra.mxu0 0.0
        %1199 = vmatprep.subr.mxu0 0.0
        %1200 = vmatpush1.msra.mxu0 0.0
        %1201 = vmatprep.subr.mxu0 0.0
        %1202 = vmatpush1.msra.mxu0 0.0
        %1203 = vmatprep.subr.mxu0 0.0
        %1204 = vmatpush1.msra.mxu0 0.0
        %1205 = vmatprep.subr.mxu0 0.0
        %1206 = vmatpush1.msra.mxu0 0.0
        %1207 = vmatprep.subr.mxu0 0.0
        %1208 = vmatpush1.msra.mxu0 0.0
        %1209 = vmatprep.subr.mxu0 0.0
        %1210 = vmatpush1.msra.mxu0 0.0
        %1211 = vmatprep.subr.mxu0 0.0
        %1212 = vmatpush1.msra.mxu0 0.0
        %1213 = vmatprep.mubr.f32.mxu0 0.0
        %1214 = vmatmul.mubr.f32.gmra.mrb[0].mxu0 %v1147
        %v1215 = vpop.f32.mrb[0].mxu0
        %v1216 = vadd.f32 0.0, %v1215
        %v1217 = vpop.f32.mrb[0].mxu0
        %1218 = vdwg.mxu0
        %v1220 = vsel %vm1097, %v1139, 0
        %1222 = vmatprep.subr.mxu0 0.0
        %1223 = vmatpush1.msra.mxu0 %v774
        %1224 = vmatprep.subr.mxu0 0.0
        %1225 = vmatpush1.msra.mxu0 %v775
        %1226 = vmatprep.subr.mxu0 0.0
        %1227 = vmatpush1.msra.mxu0 0.0
        %1228 = vmatprep.subr.mxu0 0.0
        %1229 = vmatpush1.msra.mxu0 0.0
        %1230 = vmatprep.subr.mxu0 0.0
        %1231 = vmatpush1.msra.mxu0 0.0
        %1232 = vmatprep.subr.mxu0 0.0
        %1233 = vmatpush1.msra.mxu0 0.0
        %1234 = vmatprep.subr.mxu0 0.0
        %1235 = vmatpush1.msra.mxu0 0.0
        %1236 = vmatprep.subr.mxu0 0.0
        %1237 = vmatpush1.msra.mxu0 0.0
        %1238 = vmatprep.subr.mxu0 0.0
        %1239 = vmatpush1.msra.mxu0 0.0
        %1240 = vmatprep.subr.mxu0 0.0
        %1241 = vmatpush1.msra.mxu0 0.0
        %1242 = vmatprep.subr.mxu0 0.0
        %1243 = vmatpush1.msra.mxu0 0.0
        %1244 = vmatprep.subr.mxu0 0.0
        %1245 = vmatpush1.msra.mxu0 0.0
        %1246 = vmatprep.subr.mxu0 0.0
        %1247 = vmatpush1.msra.mxu0 0.0
        %1248 = vmatprep.subr.mxu0 0.0
        %1249 = vmatpush1.msra.mxu0 0.0
        %1250 = vmatprep.subr.mxu0 0.0
        %1251 = vmatpush1.msra.mxu0 0.0
        %1252 = vmatprep.subr.mxu0 0.0
        %1253 = vmatpush1.msra.mxu0 0.0
        %1254 = vmatprep.subr.mxu0 0.0
        %1255 = vmatpush1.msra.mxu0 0.0
        %1256 = vmatprep.subr.mxu0 0.0
        %1257 = vmatpush1.msra.mxu0 0.0
        %1258 = vmatprep.subr.mxu0 0.0
        %1259 = vmatpush1.msra.mxu0 0.0
        %1260 = vmatprep.subr.mxu0 0.0
        %1261 = vmatpush1.msra.mxu0 0.0
        %1262 = vmatprep.subr.mxu0 0.0
        %1263 = vmatpush1.msra.mxu0 0.0
        %1264 = vmatprep.subr.mxu0 0.0
        %1265 = vmatpush1.msra.mxu0 0.0
        %1266 = vmatprep.subr.mxu0 0.0
        %1267 = vmatpush1.msra.mxu0 0.0
        %1268 = vmatprep.subr.mxu0 0.0
        %1269 = vmatpush1.msra.mxu0 0.0
        %1270 = vmatprep.subr.mxu0 0.0
        %1271 = vmatpush1.msra.mxu0 0.0
        %1272 = vmatprep.subr.mxu0 0.0
        %1273 = vmatpush1.msra.mxu0 0.0
        %1274 = vmatprep.subr.mxu0 0.0
        %1275 = vmatpush1.msra.mxu0 0.0
        %1276 = vmatprep.subr.mxu0 0.0
        %1277 = vmatpush1.msra.mxu0 0.0
        %1278 = vmatprep.subr.mxu0 0.0
        %1279 = vmatpush1.msra.mxu0 0.0
        %1280 = vmatprep.subr.mxu0 0.0
        %1281 = vmatpush1.msra.mxu0 0.0
        %1282 = vmatprep.subr.mxu0 0.0
        %1283 = vmatpush1.msra.mxu0 0.0
        %1284 = vmatprep.subr.mxu0 0.0
        %1285 = vmatpush1.msra.mxu0 0.0
        %1286 = vmatprep.mubr.f32.mxu0 0.0
        %1287 = vmatmul.mubr.f32.gmra.mrb[0].mxu0 %v1220
        %v1288 = vpop.f32.mrb[0].mxu0
        %v1289 = vadd.f32 0.0, %v1288
        %v1290 = vpop.f32.mrb[0].mxu0
        %1291 = vdwg.mxu0
        %v1293 = vsel %vm1097, %v1140, 0
        %1295 = vmatprep.subr.mxu0 0.0
        %1296 = vmatpush1.msra.mxu0 %v776
        %1297 = vmatprep.subr.mxu0 0.0
        %1298 = vmatpush1.msra.mxu0 %v777
        %1299 = vmatprep.subr.mxu0 0.0
        %1300 = vmatpush1.msra.mxu0 0.0
        %1301 = vmatprep.subr.mxu0 0.0
        %1302 = vmatpush1.msra.mxu0 0.0
        %1303 = vmatprep.subr.mxu0 0.0
        %1304 = vmatpush1.msra.mxu0 0.0
        %1305 = vmatprep.subr.mxu0 0.0
        %1306 = vmatpush1.msra.mxu0 0.0
        %1307 = vmatprep.subr.mxu0 0.0
        %1308 = vmatpush1.msra.mxu0 0.0
        %1309 = vmatprep.subr.mxu0 0.0
        %1310 = vmatpush1.msra.mxu0 0.0
        %1311 = vmatprep.subr.mxu0 0.0
        %1312 = vmatpush1.msra.mxu0 0.0
        %1313 = vmatprep.subr.mxu0 0.0
        %1314 = vmatpush1.msra.mxu0 0.0
        %1315 = vmatprep.subr.mxu0 0.0
        %1316 = vmatpush1.msra.mxu0 0.0
        %1317 = vmatprep.subr.mxu0 0.0
        %1318 = vmatpush1.msra.mxu0 0.0
        %1319 = vmatprep.subr.mxu0 0.0
        %1320 = vmatpush1.msra.mxu0 0.0
        %1321 = vmatprep.subr.mxu0 0.0
        %1322 = vmatpush1.msra.mxu0 0.0
        %1323 = vmatprep.subr.mxu0 0.0
        %1324 = vmatpush1.msra.mxu0 0.0
        %1325 = vmatprep.subr.mxu0 0.0
        %1326 = vmatpush1.msra.mxu0 0.0
        %1327 = vmatprep.subr.mxu0 0.0
        %1328 = vmatpush1.msra.mxu0 0.0
        %1329 = vmatprep.subr.mxu0 0.0
        %1330 = vmatpush1.msra.mxu0 0.0
        %1331 = vmatprep.subr.mxu0 0.0
        %1332 = vmatpush1.msra.mxu0 0.0
        %1333 = vmatprep.subr.mxu0 0.0
        %1334 = vmatpush1.msra.mxu0 0.0
        %1335 = vmatprep.subr.mxu0 0.0
        %1336 = vmatpush1.msra.mxu0 0.0
        %1337 = vmatprep.subr.mxu0 0.0
        %1338 = vmatpush1.msra.mxu0 0.0
        %1339 = vmatprep.subr.mxu0 0.0
        %1340 = vmatpush1.msra.mxu0 0.0
        %1341 = vmatprep.subr.mxu0 0.0
        %1342 = vmatpush1.msra.mxu0 0.0
        %1343 = vmatprep.subr.mxu0 0.0
        %1344 = vmatpush1.msra.mxu0 0.0
        %1345 = vmatprep.subr.mxu0 0.0
        %1346 = vmatpush1.msra.mxu0 0.0
        %1347 = vmatprep.subr.mxu0 0.0
        %1348 = vmatpush1.msra.mxu0 0.0
        %1349 = vmatprep.subr.mxu0 0.0
        %1350 = vmatpush1.msra.mxu0 0.0
        %1351 = vmatprep.subr.mxu0 0.0
        %1352 = vmatpush1.msra.mxu0 0.0
        %1353 = vmatprep.subr.mxu0 0.0
        %1354 = vmatpush1.msra.mxu0 0.0
        %1355 = vmatprep.subr.mxu0 0.0
        %1356 = vmatpush1.msra.mxu0 0.0
        %1357 = vmatprep.subr.mxu0 0.0
        %1358 = vmatpush1.msra.mxu0 0.0
        %1359 = vmatprep.mubr.f32.mxu0 0.0
        %1360 = vmatmul.mubr.f32.gmra.mrb[0].mxu0 %v1293
        %v1361 = vpop.f32.mrb[0].mxu0
        %v1362 = vadd.f32 0.0, %v1361
        %v1363 = vpop.f32.mrb[0].mxu0
        %1364 = vdwg.mxu0
        %v1366 = vsel %vm1097, %v1141, 0
        %1368 = vmatprep.subr.mxu0 0.0
        %1369 = vmatpush1.msra.mxu0 %v778
        %1370 = vmatprep.subr.mxu0 0.0
        %1371 = vmatpush1.msra.mxu0 %v779
        %1372 = vmatprep.subr.mxu0 0.0
        %1373 = vmatpush1.msra.mxu0 0.0
        %1374 = vmatprep.subr.mxu0 0.0
        %1375 = vmatpush1.msra.mxu0 0.0
        %1376 = vmatprep.subr.mxu0 0.0
        %1377 = vmatpush1.msra.mxu0 0.0
        %1378 = vmatprep.subr.mxu0 0.0
        %1379 = vmatpush1.msra.mxu0 0.0
        %1380 = vmatprep.subr.mxu0 0.0
        %1381 = vmatpush1.msra.mxu0 0.0
        %1382 = vmatprep.subr.mxu0 0.0
        %1383 = vmatpush1.msra.mxu0 0.0
        %1384 = vmatprep.subr.mxu0 0.0
        %1385 = vmatpush1.msra.mxu0 0.0
        %1386 = vmatprep.subr.mxu0 0.0
        %1387 = vmatpush1.msra.mxu0 0.0
        %1388 = vmatprep.subr.mxu0 0.0
        %1389 = vmatpush1.msra.mxu0 0.0
        %1390 = vmatprep.subr.mxu0 0.0
        %1391 = vmatpush1.msra.mxu0 0.0
        %1392 = vmatprep.subr.mxu0 0.0
        %1393 = vmatpush1.msra.mxu0 0.0
        %1394 = vmatprep.subr.mxu0 0.0
        %1395 = vmatpush1.msra.mxu0 0.0
        %1396 = vmatprep.subr.mxu0 0.0
        %1397 = vmatpush1.msra.mxu0 0.0
        %1398 = vmatprep.subr.mxu0 0.0
        %1399 = vmatpush1.msra.mxu0 0.0
        %1400 = vmatprep.subr.mxu0 0.0
        %1401 = vmatpush1.msra.mxu0 0.0
        %1402 = vmatprep.subr.mxu0 0.0
        %1403 = vmatpush1.msra.mxu0 0.0
        %1404 = vmatprep.subr.mxu0 0.0
        %1405 = vmatpush1.msra.mxu0 0.0
        %1406 = vmatprep.subr.mxu0 0.0
        %1407 = vmatpush1.msra.mxu0 0.0
        %1408 = vmatprep.subr.mxu0 0.0
        %1409 = vmatpush1.msra.mxu0 0.0
        %1410 = vmatprep.subr.mxu0 0.0
        %1411 = vmatpush1.msra.mxu0 0.0
        %1412 = vmatprep.subr.mxu0 0.0
        %1413 = vmatpush1.msra.mxu0 0.0
        %1414 = vmatprep.subr.mxu0 0.0
        %1415 = vmatpush1.msra.mxu0 0.0
        %1416 = vmatprep.subr.mxu0 0.0
        %1417 = vmatpush1.msra.mxu0 0.0
        %1418 = vmatprep.subr.mxu0 0.0
        %1419 = vmatpush1.msra.mxu0 0.0
        %1420 = vmatprep.subr.mxu0 0.0
        %1421 = vmatpush1.msra.mxu0 0.0
        %1422 = vmatprep.subr.mxu0 0.0
        %1423 = vmatpush1.msra.mxu0 0.0
        %1424 = vmatprep.subr.mxu0 0.0
        %1425 = vmatpush1.msra.mxu0 0.0
        %1426 = vmatprep.subr.mxu0 0.0
        %1427 = vmatpush1.msra.mxu0 0.0
        %1428 = vmatprep.subr.mxu0 0.0
        %1429 = vmatpush1.msra.mxu0 0.0
        %1430 = vmatprep.subr.mxu0 0.0
        %1431 = vmatpush1.msra.mxu0 0.0
        %1432 = vmatprep.mubr.f32.mxu0 0.0
        %1433 = vmatmul.mubr.f32.gmra.mrb[0].mxu0 %v1366
        %v1434 = vpop.f32.mrb[0].mxu0
        %v1435 = vadd.f32 0.0, %v1434
        %v1436 = vpop.f32.mrb[0].mxu0
        %1437 = vdwg.mxu0
        %v1438 = vld [vmem:[%s3] sm:$0xff]
        %v1439 = vld [vmem:[%s3 + $0x8] sm:$0xff]
        %v1440 = vld [vmem:[%s3 + $0x10] sm:$0xff]
        %v1441 = vld [vmem:[%s3 + $0x18] sm:$0xff]
        %v1443 = vsel %vm780, %v1216, 0
        %1445 = vmatprep.subr.mxu0 0.0
        %1446 = vmatpush1.msra.mxu0 %v1438
        %1447 = vmatprep.subr.mxu0 0.0
        %1448 = vmatpush1.msra.mxu0 0.0
        %1449 = vmatprep.subr.mxu0 0.0
        %1450 = vmatpush1.msra.mxu0 0.0
        %1451 = vmatprep.subr.mxu0 0.0
        %1452 = vmatpush1.msra.mxu0 0.0
        %1453 = vmatprep.subr.mxu0 0.0
        %1454 = vmatpush1.msra.mxu0 0.0
        %1455 = vmatprep.subr.mxu0 0.0
        %1456 = vmatpush1.msra.mxu0 0.0
        %1457 = vmatprep.subr.mxu0 0.0
        %1458 = vmatpush1.msra.mxu0 0.0
        %1459 = vmatprep.subr.mxu0 0.0
        %1460 = vmatpush1.msra.mxu0 0.0
        %1461 = vmatprep.subr.mxu0 0.0
        %1462 = vmatpush1.msra.mxu0 0.0
        %1463 = vmatprep.subr.mxu0 0.0
        %1464 = vmatpush1.msra.mxu0 0.0
        %1465 = vmatprep.subr.mxu0 0.0
        %1466 = vmatpush1.msra.mxu0 0.0
        %1467 = vmatprep.subr.mxu0 0.0
        %1468 = vmatpush1.msra.mxu0 0.0
        %1469 = vmatprep.subr.mxu0 0.0
        %1470 = vmatpush1.msra.mxu0 0.0
        %1471 = vmatprep.subr.mxu0 0.0
        %1472 = vmatpush1.msra.mxu0 0.0
        %1473 = vmatprep.subr.mxu0 0.0
        %1474 = vmatpush1.msra.mxu0 0.0
        %1475 = vmatprep.subr.mxu0 0.0
        %1476 = vmatpush1.msra.mxu0 0.0
        %1477 = vmatprep.subr.mxu0 0.0
        %1478 = vmatpush1.msra.mxu0 0.0
        %1479 = vmatprep.subr.mxu0 0.0
        %1480 = vmatpush1.msra.mxu0 0.0
        %1481 = vmatprep.subr.mxu0 0.0
        %1482 = vmatpush1.msra.mxu0 0.0
        %1483 = vmatprep.subr.mxu0 0.0
        %1484 = vmatpush1.msra.mxu0 0.0
        %1485 = vmatprep.subr.mxu0 0.0
        %1486 = vmatpush1.msra.mxu0 0.0
        %1487 = vmatprep.subr.mxu0 0.0
        %1488 = vmatpush1.msra.mxu0 0.0
        %1489 = vmatprep.subr.mxu0 0.0
        %1490 = vmatpush1.msra.mxu0 0.0
        %1491 = vmatprep.subr.mxu0 0.0
        %1492 = vmatpush1.msra.mxu0 0.0
        %1493 = vmatprep.subr.mxu0 0.0
        %1494 = vmatpush1.msra.mxu0 0.0
        %1495 = vmatprep.subr.mxu0 0.0
        %1496 = vmatpush1.msra.mxu0 0.0
        %1497 = vmatprep.subr.mxu0 0.0
        %1498 = vmatpush1.msra.mxu0 0.0
        %1499 = vmatprep.subr.mxu0 0.0
        %1500 = vmatpush1.msra.mxu0 0.0
        %1501 = vmatprep.subr.mxu0 0.0
        %1502 = vmatpush1.msra.mxu0 0.0
        %1503 = vmatprep.subr.mxu0 0.0
        %1504 = vmatpush1.msra.mxu0 0.0
        %1505 = vmatprep.subr.mxu0 0.0
        %1506 = vmatpush1.msra.mxu0 0.0
        %1507 = vmatprep.subr.mxu0 0.0
        %1508 = vmatpush1.msra.mxu0 0.0
        %1509 = vmatprep.mubr.f32.mxu0 0.0
        %1510 = vmatmul.mubr.f32.gmra.mrb[0].mxu0 %v1443
        %v1511 = vpop.f32.mrb[0].mxu0
        %v1512 = vadd.f32 0.0, %v1511
        %v1513 = vpop.f32.mrb[0].mxu0
        %1514 = vdwg.mxu0
        %v1516 = vsel %vm780, %v1289, 0
        %1518 = vmatprep.subr.mxu0 0.0
        %1519 = vmatpush1.msra.mxu0 %v1439
        %1520 = vmatprep.subr.mxu0 0.0
        %1521 = vmatpush1.msra.mxu0 0.0
        %1522 = vmatprep.subr.mxu0 0.0
        %1523 = vmatpush1.msra.mxu0 0.0
        %1524 = vmatprep.subr.mxu0 0.0
        %1525 = vmatpush1.msra.mxu0 0.0
        %1526 = vmatprep.subr.mxu0 0.0
        %1527 = vmatpush1.msra.mxu0 0.0
        %1528 = vmatprep.subr.mxu0 0.0
        %1529 = vmatpush1.msra.mxu0 0.0
        %1530 = vmatprep.subr.mxu0 0.0
        %1531 = vmatpush1.msra.mxu0 0.0
        %1532 = vmatprep.subr.mxu0 0.0
        %1533 = vmatpush1.msra.mxu0 0.0
        %1534 = vmatprep.subr.mxu0 0.0
        %1535 = vmatpush1.msra.mxu0 0.0
        %1536 = vmatprep.subr.mxu0 0.0
        %1537 = vmatpush1.msra.mxu0 0.0
        %1538 = vmatprep.subr.mxu0 0.0
        %1539 = vmatpush1.msra.mxu0 0.0
        %1540 = vmatprep.subr.mxu0 0.0
        %1541 = vmatpush1.msra.mxu0 0.0
        %1542 = vmatprep.subr.mxu0 0.0
        %1543 = vmatpush1.msra.mxu0 0.0
        %1544 = vmatprep.subr.mxu0 0.0
        %1545 = vmatpush1.msra.mxu0 0.0
        %1546 = vmatprep.subr.mxu0 0.0
        %1547 = vmatpush1.msra.mxu0 0.0
        %1548 = vmatprep.subr.mxu0 0.0
        %1549 = vmatpush1.msra.mxu0 0.0
        %1550 = vmatprep.subr.mxu0 0.0
        %1551 = vmatpush1.msra.mxu0 0.0
        %1552 = vmatprep.subr.mxu0 0.0
        %1553 = vmatpush1.msra.mxu0 0.0
        %1554 = vmatprep.subr.mxu0 0.0
        %1555 = vmatpush1.msra.mxu0 0.0
        %1556 = vmatprep.subr.mxu0 0.0
        %1557 = vmatpush1.msra.mxu0 0.0
        %1558 = vmatprep.subr.mxu0 0.0
        %1559 = vmatpush1.msra.mxu0 0.0
        %1560 = vmatprep.subr.mxu0 0.0
        %1561 = vmatpush1.msra.mxu0 0.0
        %1562 = vmatprep.subr.mxu0 0.0
        %1563 = vmatpush1.msra.mxu0 0.0
        %1564 = vmatprep.subr.mxu0 0.0
        %1565 = vmatpush1.msra.mxu0 0.0
        %1566 = vmatprep.subr.mxu0 0.0
        %1567 = vmatpush1.msra.mxu0 0.0
        %1568 = vmatprep.subr.mxu0 0.0
        %1569 = vmatpush1.msra.mxu0 0.0
        %1570 = vmatprep.subr.mxu0 0.0
        %1571 = vmatpush1.msra.mxu0 0.0
        %1572 = vmatprep.subr.mxu0 0.0
        %1573 = vmatpush1.msra.mxu0 0.0
        %1574 = vmatprep.subr.mxu0 0.0
        %1575 = vmatpush1.msra.mxu0 0.0
        %1576 = vmatprep.subr.mxu0 0.0
        %1577 = vmatpush1.msra.mxu0 0.0
        %1578 = vmatprep.subr.mxu0 0.0
        %1579 = vmatpush1.msra.mxu0 0.0
        %1580 = vmatprep.subr.mxu0 0.0
        %1581 = vmatpush1.msra.mxu0 0.0
        %1582 = vmatprep.mubr.f32.mxu0 0.0
        %1583 = vmatmul.mubr.f32.gmra.mrb[0].mxu0 %v1516
        %v1584 = vpop.f32.mrb[0].mxu0
        %v1585 = vadd.f32 0.0, %v1584
        %v1586 = vpop.f32.mrb[0].mxu0
        %1587 = vdwg.mxu0
        %v1589 = vsel %vm780, %v1362, 0
        %1591 = vmatprep.subr.mxu0 0.0
        %1592 = vmatpush1.msra.mxu0 %v1440
        %1593 = vmatprep.subr.mxu0 0.0
        %1594 = vmatpush1.msra.mxu0 0.0
        %1595 = vmatprep.subr.mxu0 0.0
        %1596 = vmatpush1.msra.mxu0 0.0
        %1597 = vmatprep.subr.mxu0 0.0
        %1598 = vmatpush1.msra.mxu0 0.0
        %1599 = vmatprep.subr.mxu0 0.0
        %1600 = vmatpush1.msra.mxu0 0.0
        %1601 = vmatprep.subr.mxu0 0.0
        %1602 = vmatpush1.msra.mxu0 0.0
        %1603 = vmatprep.subr.mxu0 0.0
        %1604 = vmatpush1.msra.mxu0 0.0
        %1605 = vmatprep.subr.mxu0 0.0
        %1606 = vmatpush1.msra.mxu0 0.0
        %1607 = vmatprep.subr.mxu0 0.0
        %1608 = vmatpush1.msra.mxu0 0.0
        %1609 = vmatprep.subr.mxu0 0.0
        %1610 = vmatpush1.msra.mxu0 0.0
        %1611 = vmatprep.subr.mxu0 0.0
        %1612 = vmatpush1.msra.mxu0 0.0
        %1613 = vmatprep.subr.mxu0 0.0
        %1614 = vmatpush1.msra.mxu0 0.0
        %1615 = vmatprep.subr.mxu0 0.0
        %1616 = vmatpush1.msra.mxu0 0.0
        %1617 = vmatprep.subr.mxu0 0.0
        %1618 = vmatpush1.msra.mxu0 0.0
        %1619 = vmatprep.subr.mxu0 0.0
        %1620 = vmatpush1.msra.mxu0 0.0
        %1621 = vmatprep.subr.mxu0 0.0
        %1622 = vmatpush1.msra.mxu0 0.0
        %1623 = vmatprep.subr.mxu0 0.0
        %1624 = vmatpush1.msra.mxu0 0.0
        %1625 = vmatprep.subr.mxu0 0.0
        %1626 = vmatpush1.msra.mxu0 0.0
        %1627 = vmatprep.subr.mxu0 0.0
        %1628 = vmatpush1.msra.mxu0 0.0
        %1629 = vmatprep.subr.mxu0 0.0
        %1630 = vmatpush1.msra.mxu0 0.0
        %1631 = vmatprep.subr.mxu0 0.0
        %1632 = vmatpush1.msra.mxu0 0.0
        %1633 = vmatprep.subr.mxu0 0.0
        %1634 = vmatpush1.msra.mxu0 0.0
        %1635 = vmatprep.subr.mxu0 0.0
        %1636 = vmatpush1.msra.mxu0 0.0
        %1637 = vmatprep.subr.mxu0 0.0
        %1638 = vmatpush1.msra.mxu0 0.0
        %1639 = vmatprep.subr.mxu0 0.0
        %1640 = vmatpush1.msra.mxu0 0.0
        %1641 = vmatprep.subr.mxu0 0.0
        %1642 = vmatpush1.msra.mxu0 0.0
        %1643 = vmatprep.subr.mxu0 0.0
        %1644 = vmatpush1.msra.mxu0 0.0
        %1645 = vmatprep.subr.mxu0 0.0
        %1646 = vmatpush1.msra.mxu0 0.0
        %1647 = vmatprep.subr.mxu0 0.0
        %1648 = vmatpush1.msra.mxu0 0.0
        %1649 = vmatprep.subr.mxu0 0.0
        %1650 = vmatpush1.msra.mxu0 0.0
        %1651 = vmatprep.subr.mxu0 0.0
        %1652 = vmatpush1.msra.mxu0 0.0
        %1653 = vmatprep.subr.mxu0 0.0
        %1654 = vmatpush1.msra.mxu0 0.0
        %1655 = vmatprep.mubr.f32.mxu0 0.0
        %1656 = vmatmul.mubr.f32.gmra.mrb[0].mxu0 %v1589
        %v1657 = vpop.f32.mrb[0].mxu0
        %v1658 = vadd.f32 0.0, %v1657
        %v1659 = vpop.f32.mrb[0].mxu0
        %1660 = vdwg.mxu0
        %v1662 = vsel %vm780, %v1435, 0
        %1664 = vmatprep.subr.mxu0 0.0
        %1665 = vmatpush1.msra.mxu0 %v1441
        %1666 = vmatprep.subr.mxu0 0.0
        %1667 = vmatpush1.msra.mxu0 0.0
        %1668 = vmatprep.subr.mxu0 0.0
        %1669 = vmatpush1.msra.mxu0 0.0
        %1670 = vmatprep.subr.mxu0 0.0
        %1671 = vmatpush1.msra.mxu0 0.0
        %1672 = vmatprep.subr.mxu0 0.0
        %1673 = vmatpush1.msra.mxu0 0.0
        %1674 = vmatprep.subr.mxu0 0.0
        %1675 = vmatpush1.msra.mxu0 0.0
        %1676 = vmatprep.subr.mxu0 0.0
        %1677 = vmatpush1.msra.mxu0 0.0
        %1678 = vmatprep.subr.mxu0 0.0
        %1679 = vmatpush1.msra.mxu0 0.0
        %1680 = vmatprep.subr.mxu0 0.0
        %1681 = vmatpush1.msra.mxu0 0.0
        %1682 = vmatprep.subr.mxu0 0.0
        %1683 = vmatpush1.msra.mxu0 0.0
        %1684 = vmatprep.subr.mxu0 0.0
        %1685 = vmatpush1.msra.mxu0 0.0
        %1686 = vmatprep.subr.mxu0 0.0
        %1687 = vmatpush1.msra.mxu0 0.0
        %1688 = vmatprep.subr.mxu0 0.0
        %1689 = vmatpush1.msra.mxu0 0.0
        %1690 = vmatprep.subr.mxu0 0.0
        %1691 = vmatpush1.msra.mxu0 0.0
        %1692 = vmatprep.subr.mxu0 0.0
        %1693 = vmatpush1.msra.mxu0 0.0
        %1694 = vmatprep.subr.mxu0 0.0
        %1695 = vmatpush1.msra.mxu0 0.0
        %1696 = vmatprep.subr.mxu0 0.0
        %1697 = vmatpush1.msra.mxu0 0.0
        %1698 = vmatprep.subr.mxu0 0.0
        %1699 = vmatpush1.msra.mxu0 0.0
        %1700 = vmatprep.subr.mxu0 0.0
        %1701 = vmatpush1.msra.mxu0 0.0
        %1702 = vmatprep.subr.mxu0 0.0
        %1703 = vmatpush1.msra.mxu0 0.0
        %1704 = vmatprep.subr.mxu0 0.0
        %1705 = vmatpush1.msra.mxu0 0.0
        %1706 = vmatprep.subr.mxu0 0.0
        %1707 = vmatpush1.msra.mxu0 0.0
        %1708 = vmatprep.subr.mxu0 0.0
        %1709 = vmatpush1.msra.mxu0 0.0
        %1710 = vmatprep.subr.mxu0 0.0
        %1711 = vmatpush1.msra.mxu0 0.0
        %1712 = vmatprep.subr.mxu0 0.0
        %1713 = vmatpush1.msra.mxu0 0.0
        %1714 = vmatprep.subr.mxu0 0.0
        %1715 = vmatpush1.msra.mxu0 0.0
        %1716 = vmatprep.subr.mxu0 0.0
        %1717 = vmatpush1.msra.mxu0 0.0
        %1718 = vmatprep.subr.mxu0 0.0
        %1719 = vmatpush1.msra.mxu0 0.0
        %1720 = vmatprep.subr.mxu0 0.0
        %1721 = vmatpush1.msra.mxu0 0.0
        %1722 = vmatprep.subr.mxu0 0.0
        %1723 = vmatpush1.msra.mxu0 0.0
        %1724 = vmatprep.subr.mxu0 0.0
        %1725 = vmatpush1.msra.mxu0 0.0
        %1726 = vmatprep.subr.mxu0 0.0
        %1727 = vmatpush1.msra.mxu0 0.0
        %1728 = vmatprep.mubr.f32.mxu0 0.0
        %1729 = vmatmul.mubr.f32.gmra.mrb[0].mxu0 %v1662
        %v1730 = vpop.f32.mrb[0].mxu0
        %v1731 = vadd.f32 0.0, %v1730
        %v1732 = vpop.f32.mrb[0].mxu0
        %1733 = vdwg.mxu0
        %vm1734 = vcmask 261120
        %v1735 = vsel %vm1734, %v1512, 0.0
        %v1736 = vsel %vm1734, %v1585, 0.0
        %v1737 = vadd.f32 %v1735, %v1736
        %v1738 = vsel %vm1734, %v1658, 0.0
        %v1739 = vadd.f32 %v1737, %v1738
        %v1740 = vsel %vm1734, %v1731, 0.0
        %v1741 = vadd.f32 %v1739, %v1740
        %v1742 = vld [vmem:[%s4] sm:$0x1]
        %v1744 = vlaneseq
        %v1745 = vshrl.u32 %v1744, 7
        %v1746 = vsub.s32 0, %v1745
        %v1747 = vrot.slane %v1742, %v1746
        %v1749 = vadd.f32 %v1741, %v1747
        %s1750 = scalar_lea.vmem %s507, %s758
        %v1751 = vld [vmem:[%s1750] sm:$0xff]
        %v1752 = vadd.f32 %v1749, %v1751
        %v1753 = vld [vmem:[%s7] sm:$0x1]
        %v1754 = vld [vmem:[%s8] sm:$0x1]
        %v1755 = vsel %vm1734, %v1752, 0.0
        %1756 = vadd.xlane.f32.xlu0 %v1755
        %v1757 = vpop.xlane.xlu0 %1756
        %v1758 = vrcp.pop 32.0
        %v1759 = vmul.f32 %v1757, %v1758
        %v1760 = vsub.f32 %v1752, %v1759
        %v1761 = vmul.f32 %v1760, %v1760
        %v1762 = vsel %vm1734, %v1761, 0.0
        %1763 = vadd.xlane.f32.xlu0 %v1762
        %v1764 = vpop.xlane.xlu0 %1763
        %v1765 = vmul.f32 %v1764, %v1758
        %v1766 = vadd.f32 %v1765, 1e-06
        %v1767 = vrsqrt.pop %v1766
        %v1768 = vmul.f32 %v1760, %v1767
        %v1770 = vlaneseq
        %v1771 = vshrl.u32 %v1770, 7
        %v1772 = vsub.s32 0, %v1771
        %v1773 = vrot.slane %v1753, %v1772
        %v1775 = vmul.f32 %v1768, %v1773
        %v1777 = vlaneseq
        %v1778 = vshrl.u32 %v1777, 7
        %v1779 = vsub.s32 0, %v1778
        %v1780 = vrot.slane %v1754, %v1779
        %v1782 = vadd.f32 %v1775, %v1780
        %v1783 = vld [vmem:[#allocation5] sm:$0xff]
        %v1784 = vld [vmem:[#allocation5 + $0x8] sm:$0xff]
        %v1785 = vld [vmem:[#allocation5 + $0x10] sm:$0xff]
        %v1786 = vld [vmem:[#allocation5 + $0x18] sm:$0xff]
        %v1787 = vld [vmem:[%s10] sm:$0x1]
        %v1789 = vlaneseq
        %v1790 = vshrl.u32 %v1789, 7
        %v1791 = vsub.s32 0, %v1790
        %v1792 = vrot.slane %v1787, %v1791
        %v1795 = vsel %vm1734, %v1782, 0
        %1797 = vmatprep.subr.mxu0 0.0
        %1798 = vmatpush1.msra.mxu0 %v1783
        %1799 = vmatprep.subr.mxu0 0.0
        %1800 = vmatpush1.msra.mxu0 %v1784
        %1801 = vmatprep.subr.mxu0 0.0
        %1802 = vmatpush1.msra.mxu0 %v1785
        %1803 = vmatprep.subr.mxu0 0.0
        %1804 = vmatpush1.msra.mxu0 %v1786
        %1805 = vmatprep.subr.mxu0 0.0
        %1806 = vmatpush1.msra.mxu0 0.0
        %1807 = vmatprep.subr.mxu0 0.0
        %1808 = vmatpush1.msra.mxu0 0.0
        %1809 = vmatprep.subr.mxu0 0.0
        %1810 = vmatpush1.msra.mxu0 0.0
        %1811 = vmatprep.subr.mxu0 0.0
        %1812 = vmatpush1.msra.mxu0 0.0
        %1813 = vmatprep.subr.mxu0 0.0
        %1814 = vmatpush1.msra.mxu0 0.0
        %1815 = vmatprep.subr.mxu0 0.0
        %1816 = vmatpush1.msra.mxu0 0.0
        %1817 = vmatprep.subr.mxu0 0.0
        %1818 = vmatpush1.msra.mxu0 0.0
        %1819 = vmatprep.subr.mxu0 0.0
        %1820 = vmatpush1.msra.mxu0 0.0
        %1821 = vmatprep.subr.mxu0 0.0
        %1822 = vmatpush1.msra.mxu0 0.0
        %1823 = vmatprep.subr.mxu0 0.0
        %1824 = vmatpush1.msra.mxu0 0.0
        %1825 = vmatprep.subr.mxu0 0.0
        %1826 = vmatpush1.msra.mxu0 0.0
        %1827 = vmatprep.subr.mxu0 0.0
        %1828 = vmatpush1.msra.mxu0 0.0
        %1829 = vmatprep.subr.mxu0 0.0
        %1830 = vmatpush1.msra.mxu0 0.0
        %1831 = vmatprep.subr.mxu0 0.0
        %1832 = vmatpush1.msra.mxu0 0.0
        %1833 = vmatprep.subr.mxu0 0.0
        %1834 = vmatpush1.msra.mxu0 0.0
        %1835 = vmatprep.subr.mxu0 0.0
        %1836 = vmatpush1.msra.mxu0 0.0
        %1837 = vmatprep.subr.mxu0 0.0
        %1838 = vmatpush1.msra.mxu0 0.0
        %1839 = vmatprep.subr.mxu0 0.0
        %1840 = vmatpush1.msra.mxu0 0.0
        %1841 = vmatprep.subr.mxu0 0.0
        %1842 = vmatpush1.msra.mxu0 0.0
        %1843 = vmatprep.subr.mxu0 0.0
        %1844 = vmatpush1.msra.mxu0 0.0
        %1845 = vmatprep.subr.mxu0 0.0
        %1846 = vmatpush1.msra.mxu0 0.0
        %1847 = vmatprep.subr.mxu0 0.0
        %1848 = vmatpush1.msra.mxu0 0.0
        %1849 = vmatprep.subr.mxu0 0.0
        %1850 = vmatpush1.msra.mxu0 0.0
        %1851 = vmatprep.subr.mxu0 0.0
        %1852 = vmatpush1.msra.mxu0 0.0
        %1853 = vmatprep.subr.mxu0 0.0
        %1854 = vmatpush1.msra.mxu0 0.0
        %1855 = vmatprep.subr.mxu0 0.0
        %1856 = vmatpush1.msra.mxu0 0.0
        %1857 = vmatprep.subr.mxu0 0.0
        %1858 = vmatpush1.msra.mxu0 0.0
        %1859 = vmatprep.subr.mxu0 0.0
        %1860 = vmatpush1.msra.mxu0 0.0
        %1861 = vmatprep.mubr.f32.mxu0 0.0
        %1862 = vmatmul.mubr.f32.gmra.mrb[0].mxu0 %v1795
        %v1863 = vpop.f32.mrb[0].mxu0
        %v1864 = vadd.f32 %v1792, %v1863
        %v1865 = vpop.f32.mrb[0].mxu0
        %1866 = vdwg.mxu0
        %v1867 = vmul.f32 %v1864, 0.5
        %v1868 = vmul.f32 %v1864, 0.70710677
        %v1869 = verf.f32.pop %v1868
        %v1870 = vadd.f32 %v1869, 1.0
        %v1871 = vmul.f32 %v1867, %v1870
        %v1872 = vld [vmem:[%s11] sm:$0xff]
        %v1873 = vld [vmem:[%s11 + $0x8] sm:$0xff]
        %v1874 = vld [vmem:[%s11 + $0x10] sm:$0xff]
        %v1875 = vld [vmem:[%s11 + $0x18] sm:$0xff]
        %v1876 = vld [vmem:[%s11 + $0x20] sm:$0xff]
        %v1877 = vld [vmem:[%s11 + $0x28] sm:$0xff]
        %v1878 = vld [vmem:[%s11 + $0x30] sm:$0xff]
        %v1879 = vld [vmem:[%s11 + $0x38] sm:$0xff]
        %v1880 = vld [vmem:[%s12] sm:$0x1]
        %v1882 = vlaneseq
        %v1883 = vshrl.u32 %v1882, 7
        %v1884 = vsub.s32 0, %v1883
        %v1885 = vrot.slane %v1880, %v1884
        %vm1887 = vcmask 523264
        %v1889 = vsel %vm1887, %v1871, 0
        %1891 = vmatprep.subr.mxu0 0.0
        %1892 = vmatpush1.msra.mxu0 %v1872
        %1893 = vmatprep.subr.mxu0 0.0
        %1894 = vmatpush1.msra.mxu0 %v1873
        %1895 = vmatprep.subr.mxu0 0.0
        %1896 = vmatpush1.msra.mxu0 %v1874
        %1897 = vmatprep.subr.mxu0 0.0
        %1898 = vmatpush1.msra.mxu0 %v1875
        %1899 = vmatprep.subr.mxu0 0.0
        %1900 = vmatpush1.msra.mxu0 %v1876
        %1901 = vmatprep.subr.mxu0 0.0
        %1902 = vmatpush1.msra.mxu0 %v1877
        %1903 = vmatprep.subr.mxu0 0.0
        %1904 = vmatpush1.msra.mxu0 %v1878
        %1905 = vmatprep.subr.mxu0 0.0
        %1906 = vmatpush1.msra.mxu0 %v1879
        %1907 = vmatprep.subr.mxu0 0.0
        %1908 = vmatpush1.msra.mxu0 0.0
        %1909 = vmatprep.subr.mxu0 0.0
        %1910 = vmatpush1.msra.mxu0 0.0
        %1911 = vmatprep.subr.mxu0 0.0
        %1912 = vmatpush1.msra.mxu0 0.0
        %1913 = vmatprep.subr.mxu0 0.0
        %1914 = vmatpush1.msra.mxu0 0.0
        %1915 = vmatprep.subr.mxu0 0.0
        %1916 = vmatpush1.msra.mxu0 0.0
        %1917 = vmatprep.subr.mxu0 0.0
        %1918 = vmatpush1.msra.mxu0 0.0
        %1919 = vmatprep.subr.mxu0 0.0
        %1920 = vmatpush1.msra.mxu0 0.0
        %1921 = vmatprep.subr.mxu0 0.0
        %1922 = vmatpush1.msra.mxu0 0.0
        %1923 = vmatprep.subr.mxu0 0.0
        %1924 = vmatpush1.msra.mxu0 0.0
        %1925 = vmatprep.subr.mxu0 0.0
        %1926 = vmatpush1.msra.mxu0 0.0
        %1927 = vmatprep.subr.mxu0 0.0
        %1928 = vmatpush1.msra.mxu0 0.0
        %1929 = vmatprep.subr.mxu0 0.0
        %1930 = vmatpush1.msra.mxu0 0.0
        %1931 = vmatprep.subr.mxu0 0.0
        %1932 = vmatpush1.msra.mxu0 0.0
        %1933 = vmatprep.subr.mxu0 0.0
        %1934 = vmatpush1.msra.mxu0 0.0
        %1935 = vmatprep.subr.mxu0 0.0
        %1936 = vmatpush1.msra.mxu0 0.0
        %1937 = vmatprep.subr.mxu0 0.0
        %1938 = vmatpush1.msra.mxu0 0.0
        %1939 = vmatprep.subr.mxu0 0.0
        %1940 = vmatpush1.msra.mxu0 0.0
        %1941 = vmatprep.subr.mxu0 0.0
        %1942 = vmatpush1.msra.mxu0 0.0
        %1943 = vmatprep.subr.mxu0 0.0
        %1944 = vmatpush1.msra.mxu0 0.0
        %1945 = vmatprep.subr.mxu0 0.0
        %1946 = vmatpush1.msra.mxu0 0.0
        %1947 = vmatprep.subr.mxu0 0.0
        %1948 = vmatpush1.msra.mxu0 0.0
        %1949 = vmatprep.subr.mxu0 0.0
        %1950 = vmatpush1.msra.mxu0 0.0
        %1951 = vmatprep.subr.mxu0 0.0
        %1952 = vmatpush1.msra.mxu0 0.0
        %1953 = vmatprep.subr.mxu0 0.0
        %1954 = vmatpush1.msra.mxu0 0.0
        %1955 = vmatprep.mubr.f32.mxu0 0.0
        %1956 = vmatmul.mubr.f32.gmra.mrb[0].mxu0 %v1889
        %v1957 = vpop.f32.mrb[0].mxu0
        %v1958 = vadd.f32 %v1885, %v1957
        %v1959 = vpop.f32.mrb[0].mxu0
        %1960 = vdwg.mxu0
        %v1961 = vadd.f32 %v1958, %v1752
        %1962 = vst.msk [vmem:[%s495] sm:$0xff] %vm1734, %v1961
        %s1963 = sand.u32 %s333, 1
        %s1964 = scalar_lea.sflag [#allocation7], %s1963
        %s1965 = sand.u32 %s333, 1
        %s1966 = smul.addr %s1965, 8
        %s1967 = scalar_lea.vmem [#allocation8], %s1966
        %s1968 = sand.u32 %s361, 1
        %s1969 = scalar_lea.sflag [#allocation10], %s1968
        %s1970 = sand.u32 %s361, 1
        %s1971 = smul.addr %s1970, 32
        %s1972 = scalar_lea.vmem [#allocation9], %s1971
        // Predicated region
        $region81: #{tpu_custom_call.1} parent=71 // pred_check
          %p1973 = pneg %p343
        $region82: #{tpu_custom_call.1} parent=71 // pred_check_branch
          %1975 = sbr.rel (%p1973) target = $region84
        $region83: #{tpu_custom_call.1} parent=71 // pred_region
          %s1977 = ssub.s32 128, 128
          %1978 = vsyncadd %s1964, %s1977
          %s1979 = smul.addr %s37, 2
          %s1980 = sadd.s32 %s38, %s1979
          %s1981 = smul.addr %s1980, 128
          %s1982 = scalar_lea.hbm %s13, %s1981
          %s1984 = sshll.u32 %s1967, 4
          %s1985 = int_to_ptr.vmem [resolvable:$true] %s1984
          %1987 = dma.vmem_to_hbm [thread:$0]  %s1985, 128, %s1982, %s1964
        $region84: #{tpu_custom_call.1} parent=71 // pred_fallthru
          _
        // Predicated region
        $region85: #{tpu_custom_call.1} parent=71 // pred_check
          %p1988 = pneg %p371
        $region86: #{tpu_custom_call.1} parent=71 // pred_check_branch
          %1990 = sbr.rel (%p1988) target = $region88
        $region87: #{tpu_custom_call.1} parent=71 // pred_region
          %s1992 = ssub.s32 512, 512
          %1993 = vsyncadd %s1969, %s1992
          %s1994 = smul.addr %s37, 8
          %s1995 = sadd.s32 %s38, %s1994
          %s1996 = smul.addr %s1995, 128
          %s1997 = scalar_lea.hbm %s14, %s1996
          %s1998 = sshll.u32 %s1972, 4
          %s1999 = int_to_ptr.vmem [resolvable:$true] %s1998
          %2004 = dma.vmem_to_hbm [thread:$0]  %s1999, 512, %s1997, %s1969, 128, 256, 8
        $region88: #{tpu_custom_call.1} parent=71 // pred_fallthru
          _
      $region72: #{tpu_custom_call.1} parent=5 // pred_fallthru
        _
      %p2005 = scmp.le.s32.totalorder 2, %s28
      // Predicated region
      $region89: #{tpu_custom_call.1} parent=5 // pred_check
        %p2006 = pneg %p2005
      $region90: #{tpu_custom_call.1} parent=5 // pred_check_branch
        %2008 = sbr.rel (%p2006) target = $region92
      $region91: #{tpu_custom_call.1} parent=5 // pred_region
        %s2009 = ssub.s32 %s28, 2
        // Predicated region
        $region93: #{tpu_custom_call.1} parent=91 // pred_check
          %p2010 = pneg %p349
        $region94: #{tpu_custom_call.1} parent=91 // pred_check_branch
          %2012 = sbr.rel (%p2010) target = $region96
        $region95: #{tpu_custom_call.1} parent=91 // pred_region
          %s2013 = sand.u32 %s334, 1
          %s2014 = scalar_lea.sflag [#allocation7], %s2013
          %s2015 = sand.u32 %s334, 1
          %s2016 = smul.addr %s2015, 8
          %s2017 = scalar_lea.vmem [#allocation8], %s2016
          %2018 = dma.done %s2014, 128
        $region96: #{tpu_custom_call.1} parent=91 // pred_fallthru
          _
        // Predicated region
        $region97: #{tpu_custom_call.1} parent=91 // pred_check
          %p2019 = pneg %p377
        $region98: #{tpu_custom_call.1} parent=91 // pred_check_branch
          %2021 = sbr.rel (%p2019) target = $region100
        $region99: #{tpu_custom_call.1} parent=91 // pred_region
          %s2022 = sand.u32 %s362, 1
          %s2023 = scalar_lea.sflag [#allocation10], %s2022
          %s2024 = sand.u32 %s362, 1
          %s2025 = smul.addr %s2024, 32
          %s2026 = scalar_lea.vmem [#allocation9], %s2025
          %2027 = dma.done %s2023, 512
        $region100: #{tpu_custom_call.1} parent=91 // pred_fallthru
          _
      $region92: #{tpu_custom_call.1} parent=5 // pred_fallthru
        _
    $region6: #{tpu_custom_call.1} parent=1 // loop_footer
      %s32 = sadd.s32 1, %s28
    $region7: #{tpu_custom_call.1} parent=1 // loop_footer_branch
      %27 = sbr.rel target = $region3
    $region8: #{tpu_custom_call.1} parent=1 // loop_exit
      _
    %2028 = vsyncpa [#allocation6], 1
    %s2029 = scalar_lea.sflag [#allocation6], 1
    %2030 = vsyncpa %s2029, 1
    %2031 = vsyncpa [#allocation7], 1
    %s2032 = scalar_lea.sflag [#allocation7], 1
    %2033 = vsyncpa %s2032, 1
    %2034 = vsyncpa [#allocation10], 1
    %s2035 = scalar_lea.sflag [#allocation10], 1
    %2036 = vsyncpa %s2035, 1

// kernel: tpu_custom_call.1
$region0: #{tpu_custom_call.1}
  #allocation0 [shape = 'u32[]', space=smem, size = 0x4, offset = 0x4, fixed_abs, tag = 'smem constant byte address 0x4 - core index']
  #allocation1 [shape = 'u32[144,128]{1,0:T(1,128)}', space=vmem, size = 0x12000, scoped, tag = 'internal scratch']
  #allocation2 [shape = 'f32[4,16,8]{2,1,0:T(8,128)}', space=vmem, size = 0x8000, scoped, tag = 'scratch operand']
  #allocation3 [shape = 'f32[4,16,8]{2,1,0:T(8,128)}', space=vmem, size = 0x8000, scoped, tag = 'scratch operand']
  #allocation4 [shape = 'f32[4,16,8]{2,1,0:T(8,128)}', space=vmem, size = 0x8000, scoped, tag = 'scratch operand']
  %s0 = inlined_call_operand.vmem [shape: f32[2,16,32], index: 0, kind: input, shape index: {}]
  %s1 = inlined_call_operand.vmem [shape: f32[32,96], index: 1, kind: input, shape index: {}]
  %s2 = inlined_call_operand.vmem [shape: f32[1,96], index: 2, kind: input, shape index: {}]
  %s3 = inlined_call_operand.vmem [shape: f32[4,8,32], index: 3, kind: input, shape index: {}]
  %s4 = inlined_call_operand.vmem [shape: f32[1,32], index: 4, kind: input, shape index: {}]
  %s5 = inlined_call_operand.vmem [shape: f32[1,32], index: 5, kind: input, shape index: {}]
  %s6 = inlined_call_operand.vmem [shape: f32[1,32], index: 6, kind: input, shape index: {}]
  %s7 = inlined_call_operand.vmem [shape: f32[1,32], index: 7, kind: input, shape index: {}]
  %s8 = inlined_call_operand.vmem [shape: f32[1,32], index: 8, kind: input, shape index: {}]
  %s9 = inlined_call_operand.hbm [shape: f32[32,64], index: 9, kind: input, shape index: {}]
  %s10 = inlined_call_operand.vmem [shape: f32[1,64], index: 10, kind: input, shape index: {}]
  %s11 = inlined_call_operand.vmem [shape: f32[64,32], index: 11, kind: input, shape index: {}]
  %s12 = inlined_call_operand.vmem [shape: f32[1,32], index: 12, kind: input, shape index: {}]
  %s13 = inlined_call_operand.hbm [shape: f32[2,16,32], index: 13, kind: output, shape index: {0}]
  %s14 = inlined_call_operand.hbm [shape: f32[2,4,16,16], index: 14, kind: output, shape index: {1}]
  %15 = xla_tuple %s13, %s14
  %s16 = sld [smem:[#allocation0]]
  $region101: #{tpu_custom_call.1} parent=0
    _
  %s18 = ssub.s32 1, %s16
  %s19 = scalar_select 0, %s18, %s16
  $region1: #{tpu_custom_call.1} parent=0
    #allocation5 [shape = 'u8[16384]{0}', space=vmem, size = 0x4000, scoped, tag = 'input window, operand 9, single buffered']
    #allocation6 [shape = 's32[2]{0}', space=sflag, size = 0x8, scoped, tag = 'scoped memory for tpu_custom_call.1']
    #allocation7 [shape = 's32[2]{0}', space=sflag, size = 0x8, scoped, tag = 'scoped memory for tpu_custom_call.1']
    #allocation8 [shape = 'u8[8192]{0}', space=vmem, size = 0x2000, scoped, tag = 'output window, operand 0']
    #allocation9 [shape = 'u8[32768]{0}', space=vmem, size = 0x8000, scoped, tag = 'output window, operand 1']
    #allocation10 [shape = 's32[2]{0}', space=sflag, size = 0x8, scoped, tag = 'scoped memory for tpu_custom_call.1']
    %20 = vsyncpa [#allocation6], 0
    %21 = vsyncpa [#allocation7], 0
    %s22 = scalar_lea.sflag [#allocation7], 1
    %23 = vsyncpa %s22, 0
    %24 = vsyncpa [#allocation10], 0
    %s25 = scalar_lea.sflag [#allocation10], 1
    %26 = vsyncpa %s25, 0
    loop: start=0, step=1, limit=6
    $region2: #{tpu_custom_call.1} parent=1 // loop_pre_header
      _
    $region3: #{tpu_custom_call.1} parent=1 // loop_header
      %s28 = sphi 0, %s32
      %p29 = scmp.ge.s32.totalorder %s28, 6
      %s35 = sphi 0, %s47
      %s36 = sphi 0, %s43
      %s37 = sphi 0, %s35
      %s38 = sphi 0, %s36
      %s39 = sphi 0, %s37
      %s40 = sphi 0, %s38
      %s50 = sphi 0, %s52
      %s53 = sphi 0, %s50
      %s54 = sphi 0, %s53
      %s70 = sphi 0, %s54
      %s74 = sphi 0, %s74
      %s76 = sphi 0, %s74
      %s77 = sphi 0, %s76
      %s91 = sphi 0, %s77
      %s95 = sphi 0, %s95
      %s97 = sphi 0, %s95
      %s98 = sphi 0, %s97
      %s112 = sphi 0, %s98
      %s116 = sphi 0, %s116
      %s118 = sphi 0, %s116
      %s119 = sphi 0, %s118
      %s133 = sphi 0, %s119
      %s137 = sphi 0, %s137
      %s139 = sphi 0, %s137
      %s140 = sphi 0, %s139
      %s154 = sphi 0, %s140
      %s158 = sphi 0, %s158
      %s160 = sphi 0, %s158
      %s161 = sphi 0, %s160
      %s175 = sphi 0, %s161
      %s179 = sphi 0, %s179
      %s181 = sphi 0, %s179
      %s182 = sphi 0, %s181
      %s196 = sphi 0, %s182
      %s200 = sphi 0, %s200
      %s202 = sphi 0, %s200
      %s203 = sphi 0, %s202
      %s217 = sphi 0, %s203
      %s221 = sphi 0, %s221
      %s223 = sphi 0, %s221
      %s224 = sphi 0, %s223
      %s238 = sphi 0, %s224
      %s242 = sphi 0, %s242
      %s244 = sphi 0, %s242
      %s245 = sphi 0, %s244
      %s259 = sphi 0, %s245
      %s263 = sphi 0, %s263
      %s265 = sphi 0, %s263
      %s266 = sphi 0, %s265
      %s280 = sphi 0, %s266
      %s284 = sphi 0, %s284
      %s286 = sphi 0, %s284
      %s287 = sphi 0, %s286
      %s301 = sphi 0, %s287
      %s305 = sphi 0, %s305
      %s307 = sphi 0, %s305
      %s308 = sphi 0, %s307
      %s322 = sphi 0, %s308
      %s330 = sphi 0, %s332
      %s333 = sphi 0, %s330
      %s334 = sphi 0, %s333
      %s350 = sphi 0, %s334
      %s358 = sphi 0, %s360
      %s361 = sphi 0, %s358
      %s362 = sphi 0, %s361
      %s378 = sphi 0, %s362
    $region4: #{tpu_custom_call.1} parent=1 // loop_header_branch
      %31 = sbr.rel (%p29) target = $region8
    $region5: #{tpu_custom_call.1} parent=1 // loop_body
      %s33 = ssub.s32 %s28, 1
      %s34 = ssub.s32 %s28, 2
      %s41 = sadd.s32 1, %s36
      %p42 = scmp.ge.s32.totalorder %s41, 2
      %s43 = scalar_select %p42, 0, %s41
      %s44 = sadd.s32 1, %s35
      %s45 = scalar_select %p42, %s44, %s35
      %p46 = scmp.ge.s32.totalorder %s45, 2
      %s47 = scalar_select %p46, 0, %s45
      %s48 = ssub.s32 %s35, %s47
      %p49 = scmp.eq.s32.totalorder %s48, 0
      %s51 = sadd.s32 %s50, 1
      %s52 = scalar_select %p49, %s50, %s51
      %p55 = pneg %p49
      %p56 = scmp.eq.s32.totalorder %s28, 3
      %p57 = por %p55, %p56
      %p58 = scmp.ne.s32.totalorder %s50, %s53
      %p59 = scmp.eq.s32.totalorder %s28, 0
      %p60 = por %p58, %p59
      %p61 = scmp.ne.s32.totalorder %s50, %s53
      %p62 = scmp.eq.s32.totalorder %s33, 3
      %p63 = por %p61, %p62
      %p64 = scmp.ne.s32.totalorder %s53, %s54
      %p65 = scmp.eq.s32.totalorder %s33, 0
      %p66 = por %p64, %p65
      %p67 = scmp.ne.s32.totalorder %s53, %s54
      %p68 = scmp.eq.s32.totalorder %s34, 3
      %p69 = por %p67, %p68
      %p71 = scmp.ne.s32.totalorder %s54, %s70
      %p72 = scmp.eq.s32.totalorder %s34, 0
      %p73 = por %p71, %p72
      %s75 = sadd.s32 %s74, 1
      %p78 = scmp.eq.s32.totalorder %s28, 3
      %p79 = scmp.ne.s32.totalorder %s74, %s76
      %p80 = scmp.eq.s32.totalorder %s28, 0
      %p81 = por %p79, %p80
      %p82 = scmp.ne.s32.totalorder %s74, %s76
      %p83 = scmp.eq.s32.totalorder %s33, 3
      %p84 = por %p82, %p83
      %p85 = scmp.ne.s32.totalorder %s76, %s77
      %p86 = scmp.eq.s32.totalorder %s33, 0
      %p87 = por %p85, %p86
      %p88 = scmp.ne.s32.totalorder %s76, %s77
      %p89 = scmp.eq.s32.totalorder %s34, 3
      %p90 = por %p88, %p89
      %p92 = scmp.ne.s32.totalorder %s77, %s91
      %p93 = scmp.eq.s32.totalorder %s34, 0
      %p94 = por %p92, %p93
      %s96 = sadd.s32 %s95, 1
      %p99 = scmp.eq.s32.totalorder %s28, 3
      %p100 = scmp.ne.s32.totalorder %s95, %s97
      %p101 = scmp.eq.s32.totalorder %s28, 0
      %p102 = por %p100, %p101
      %p103 = scmp.ne.s32.totalorder %s95, %s97
      %p104 = scmp.eq.s32.totalorder %s33, 3
      %p105 = por %p103, %p104
      %p106 = scmp.ne.s32.totalorder %s97, %s98
      %p107 = scmp.eq.s32.totalorder %s33, 0
      %p108 = por %p106, %p107
      %p109 = scmp.ne.s32.totalorder %s97, %s98
      %p110 = scmp.eq.s32.totalorder %s34, 3
      %p111 = por %p109, %p110
      %p113 = scmp.ne.s32.totalorder %s98, %s112
      %p114 = scmp.eq.s32.totalorder %s34, 0
      %p115 = por %p113, %p114
      %s117 = sadd.s32 %s116, 1
      %p120 = scmp.eq.s32.totalorder %s28, 3
      %p121 = scmp.ne.s32.totalorder %s116, %s118
      %p122 = scmp.eq.s32.totalorder %s28, 0
      %p123 = por %p121, %p122
      %p124 = scmp.ne.s32.totalorder %s116, %s118
      %p125 = scmp.eq.s32.totalorder %s33, 3
      %p126 = por %p124, %p125
      %p127 = scmp.ne.s32.totalorder %s118, %s119
      %p128 = scmp.eq.s32.totalorder %s33, 0
      %p129 = por %p127, %p128
      %p130 = scmp.ne.s32.totalorder %s118, %s119
      %p131 = scmp.eq.s32.totalorder %s34, 3
      %p132 = por %p130, %p131
      %p134 = scmp.ne.s32.totalorder %s119, %s133
      %p135 = scmp.eq.s32.totalorder %s34, 0
      %p136 = por %p134, %p135
      %s138 = sadd.s32 %s137, 1
      %p141 = scmp.eq.s32.totalorder %s28, 3
      %p142 = scmp.ne.s32.totalorder %s137, %s139
      %p143 = scmp.eq.s32.totalorder %s28, 0
      %p144 = por %p142, %p143
      %p145 = scmp.ne.s32.totalorder %s137, %s139
      %p146 = scmp.eq.s32.totalorder %s33, 3
      %p147 = por %p145, %p146
      %p148 = scmp.ne.s32.totalorder %s139, %s140
      %p149 = scmp.eq.s32.totalorder %s33, 0
      %p150 = por %p148, %p149
      %p151 = scmp.ne.s32.totalorder %s139, %s140
      %p152 = scmp.eq.s32.totalorder %s34, 3
      %p153 = por %p151, %p152
      %p155 = scmp.ne.s32.totalorder %s140, %s154
      %p156 = scmp.eq.s32.totalorder %s34, 0
      %p157 = por %p155, %p156
      %s159 = sadd.s32 %s158, 1
      %p162 = scmp.eq.s32.totalorder %s28, 3
      %p163 = scmp.ne.s32.totalorder %s158, %s160
      %p164 = scmp.eq.s32.totalorder %s28, 0
      %p165 = por %p163, %p164
      %p166 = scmp.ne.s32.totalorder %s158, %s160
      %p167 = scmp.eq.s32.totalorder %s33, 3
      %p168 = por %p166, %p167
      %p169 = scmp.ne.s32.totalorder %s160, %s161
      %p170 = scmp.eq.s32.totalorder %s33, 0
      %p171 = por %p169, %p170
      %p172 = scmp.ne.s32.totalorder %s160, %s161
      %p173 = scmp.eq.s32.totalorder %s34, 3
      %p174 = por %p172, %p173
      %p176 = scmp.ne.s32.totalorder %s161, %s175
      %p177 = scmp.eq.s32.totalorder %s34, 0
      %p178 = por %p176, %p177
      %s180 = sadd.s32 %s179, 1
      %p183 = scmp.eq.s32.totalorder %s28, 3
      %p184 = scmp.ne.s32.totalorder %s179, %s181
      %p185 = scmp.eq.s32.totalorder %s28, 0
      %p186 = por %p184, %p185
      %p187 = scmp.ne.s32.totalorder %s179, %s181
      %p188 = scmp.eq.s32.totalorder %s33, 3
      %p189 = por %p187, %p188
      %p190 = scmp.ne.s32.totalorder %s181, %s182
      %p191 = scmp.eq.s32.totalorder %s33, 0
      %p192 = por %p190, %p191
      %p193 = scmp.ne.s32.totalorder %s181, %s182
      %p194 = scmp.eq.s32.totalorder %s34, 3
      %p195 = por %p193, %p194
      %p197 = scmp.ne.s32.totalorder %s182, %s196
      %p198 = scmp.eq.s32.totalorder %s34, 0
      %p199 = por %p197, %p198
      %s201 = sadd.s32 %s200, 1
      %p204 = scmp.eq.s32.totalorder %s28, 3
      %p205 = scmp.ne.s32.totalorder %s200, %s202
      %p206 = scmp.eq.s32.totalorder %s28, 0
      %p207 = por %p205, %p206
      %p208 = scmp.ne.s32.totalorder %s200, %s202
      %p209 = scmp.eq.s32.totalorder %s33, 3
      %p210 = por %p208, %p209
      %p211 = scmp.ne.s32.totalorder %s202, %s203
      %p212 = scmp.eq.s32.totalorder %s33, 0
      %p213 = por %p211, %p212
      %p214 = scmp.ne.s32.totalorder %s202, %s203
      %p215 = scmp.eq.s32.totalorder %s34, 3
      %p216 = por %p214, %p215
      %p218 = scmp.ne.s32.totalorder %s203, %s217
      %p219 = scmp.eq.s32.totalorder %s34, 0
      %p220 = por %p218, %p219
      %s222 = sadd.s32 %s221, 1
      %p225 = scmp.eq.s32.totalorder %s28, 3
      %p226 = scmp.ne.s32.totalorder %s221, %s223
      %p227 = scmp.eq.s32.totalorder %s28, 0
      %p228 = por %p226, %p227
      %p229 = scmp.ne.s32.totalorder %s221, %s223
      %p230 = scmp.eq.s32.totalorder %s33, 3
      %p231 = por %p229, %p230
      %p232 = scmp.ne.s32.totalorder %s223, %s224
      %p233 = scmp.eq.s32.totalorder %s33, 0
      %p234 = por %p232, %p233
      %p235 = scmp.ne.s32.totalorder %s223, %s224
      %p236 = scmp.eq.s32.totalorder %s34, 3
      %p237 = por %p235, %p236
      %p239 = scmp.ne.s32.totalorder %s224, %s238
      %p240 = scmp.eq.s32.totalorder %s34, 0
      %p241 = por %p239, %p240
      %s243 = sadd.s32 %s242, 1
      %p246 = scmp.eq.s32.totalorder %s28, 3
      %p247 = scmp.ne.s32.totalorder %s242, %s244
      %p248 = scmp.eq.s32.totalorder %s28, 0
      %p249 = por %p247, %p248
      %p250 = scmp.ne.s32.totalorder %s242, %s244
      %p251 = scmp.eq.s32.totalorder %s33, 3
      %p252 = por %p250, %p251
      %p253 = scmp.ne.s32.totalorder %s244, %s245
      %p254 = scmp.eq.s32.totalorder %s33, 0
      %p255 = por %p253, %p254
      %p256 = scmp.ne.s32.totalorder %s244, %s245
      %p257 = scmp.eq.s32.totalorder %s34, 3
      %p258 = por %p256, %p257
      %p260 = scmp.ne.s32.totalorder %s245, %s259
      %p261 = scmp.eq.s32.totalorder %s34, 0
      %p262 = por %p260, %p261
      %s264 = sadd.s32 %s263, 1
      %p267 = scmp.eq.s32.totalorder %s28, 3
      %p268 = scmp.ne.s32.totalorder %s263, %s265
      %p269 = scmp.eq.s32.totalorder %s28, 0
      %p270 = por %p268, %p269
      %p271 = scmp.ne.s32.totalorder %s263, %s265
      %p272 = scmp.eq.s32.totalorder %s33, 3
      %p273 = por %p271, %p272
      %p274 = scmp.ne.s32.totalorder %s265, %s266
      %p275 = scmp.eq.s32.totalorder %s33, 0
      %p276 = por %p274, %p275
      %p277 = scmp.ne.s32.totalorder %s265, %s266
      %p278 = scmp.eq.s32.totalorder %s34, 3
      %p279 = por %p277, %p278
      %p281 = scmp.ne.s32.totalorder %s266, %s280
      %p282 = scmp.eq.s32.totalorder %s34, 0
      %p283 = por %p281, %p282
      %s285 = sadd.s32 %s284, 1
      %p288 = scmp.eq.s32.totalorder %s28, 3
      %p289 = scmp.ne.s32.totalorder %s284, %s286
      %p290 = scmp.eq.s32.totalorder %s28, 0
      %p291 = por %p289, %p290
      %p292 = scmp.ne.s32.totalorder %s284, %s286
      %p293 = scmp.eq.s32.totalorder %s33, 3
      %p294 = por %p292, %p293
      %p295 = scmp.ne.s32.totalorder %s286, %s287
      %p296 = scmp.eq.s32.totalorder %s33, 0
      %p297 = por %p295, %p296
      %p298 = scmp.ne.s32.totalorder %s286, %s287
      %p299 = scmp.eq.s32.totalorder %s34, 3
      %p300 = por %p298, %p299
      %p302 = scmp.ne.s32.totalorder %s287, %s301
      %p303 = scmp.eq.s32.totalorder %s34, 0
      %p304 = por %p302, %p303
      %s306 = sadd.s32 %s305, 1
      %p309 = scmp.eq.s32.totalorder %s28, 3
      %p310 = scmp.ne.s32.totalorder %s305, %s307
      %p311 = scmp.eq.s32.totalorder %s28, 0
      %p312 = por %p310, %p311
      %p313 = scmp.ne.s32.totalorder %s305, %s307
      %p314 = scmp.eq.s32.totalorder %s33, 3
      %p315 = por %p313, %p314
      %p316 = scmp.ne.s32.totalorder %s307, %s308
      %p317 = scmp.eq.s32.totalorder %s33, 0
      %p318 = por %p316, %p317
      %p319 = scmp.ne.s32.totalorder %s307, %s308
      %p320 = scmp.eq.s32.totalorder %s34, 3
      %p321 = por %p319, %p320
      %p323 = scmp.ne.s32.totalorder %s308, %s322
      %p324 = scmp.eq.s32.totalorder %s34, 0
      %p325 = por %p323, %p324
      %s326 = ssub.s32 %s35, %s47
      %s327 = ssub.s32 %s36, %s43
      %s328 = sor.u32 %s326, %s327
      %p329 = scmp.eq.s32.totalorder %s328, 0
      %s331 = sadd.s32 %s330, 1
      %s332 = scalar_select %p329, %s330, %s331
      %p335 = pneg %p329
      %p336 = scmp.eq.s32.totalorder %s28, 3
      %p337 = por %p335, %p336
      %p338 = scmp.ne.s32.totalorder %s330, %s333
      %p339 = scmp.eq.s32.totalorder %s28, 0
      %p340 = por %p338, %p339
      %p341 = scmp.ne.s32.totalorder %s330, %s333
      %p342 = scmp.eq.s32.totalorder %s33, 3
      %p343 = por %p341, %p342
      %p344 = scmp.ne.s32.totalorder %s333, %s334
      %p345 = scmp.eq.s32.totalorder %s33, 0
      %p346 = por %p344, %p345
      %p347 = scmp.ne.s32.totalorder %s333, %s334
      %p348 = scmp.eq.s32.totalorder %s34, 3
      %p349 = por %p347, %p348
      %p351 = scmp.ne.s32.totalorder %s334, %s350
      %p352 = scmp.eq.s32.totalorder %s34, 0
      %p353 = por %p351, %p352
      %s354 = ssub.s32 %s35, %s47
      %s355 = ssub.s32 %s36, %s43
      %s356 = sor.u32 %s354, %s355
      %p357 = scmp.eq.s32.totalorder %s356, 0
      %s359 = sadd.s32 %s358, 1
      %s360 = scalar_select %p357, %s358, %s359
      %p363 = pneg %p357
      %p364 = scmp.eq.s32.totalorder %s28, 3
      %p365 = por %p363, %p364
      %p366 = scmp.ne.s32.totalorder %s358, %s361
      %p367 = scmp.eq.s32.totalorder %s28, 0
      %p368 = por %p366, %p367
      %p369 = scmp.ne.s32.totalorder %s358, %s361
      %p370 = scmp.eq.s32.totalorder %s33, 3
      %p371 = por %p369, %p370
      %p372 = scmp.ne.s32.totalorder %s361, %s362
      %p373 = scmp.eq.s32.totalorder %s33, 0
      %p374 = por %p372, %p373
      %p375 = scmp.ne.s32.totalorder %s361, %s362
      %p376 = scmp.eq.s32.totalorder %s34, 3
      %p377 = por %p375, %p376
      %p379 = scmp.ne.s32.totalorder %s362, %s378
      %p380 = scmp.eq.s32.totalorder %s34, 0
      %p381 = por %p379, %p380
      %p382 = scmp.le.s32.totalorder 1, %s28
      %p383 = scmp.lt.s32.totalorder %s28, 5
      %p384 = pnand %p382, %p383
      %p385 = pneg %p384
      // Predicated region
      $region9: #{tpu_custom_call.1} parent=5 // pred_check
        _
      $region10: #{tpu_custom_call.1} parent=5 // pred_check_branch
        %387 = sbr.rel (%p384) target = $region12
      $region11: #{tpu_custom_call.1} parent=5 // pred_region
        %s388 = ssub.s32 %s28, 1
        // Predicated region
        $region13: #{tpu_custom_call.1} parent=11 // pred_check
          %p389 = pneg %p87
        $region14: #{tpu_custom_call.1} parent=11 // pred_check_branch
          %391 = sbr.rel (%p389) target = $region16
        $region15: #{tpu_custom_call.1} parent=11 // pred_region
          _
        $region16: #{tpu_custom_call.1} parent=11 // pred_fallthru
          _
        // Predicated region
        $region17: #{tpu_custom_call.1} parent=11 // pred_check
          %p392 = pneg %p108
        $region18: #{tpu_custom_call.1} parent=11 // pred_check_branch
          %394 = sbr.rel (%p392) target = $region20
        $region19: #{tpu_custom_call.1} parent=11 // pred_region
          _
        $region20: #{tpu_custom_call.1} parent=11 // pred_fallthru
          _
        // Predicated region
        $region21: #{tpu_custom_call.1} parent=11 // pred_check
          %p395 = pneg %p129
        $region22: #{tpu_custom_call.1} parent=11 // pred_check_branch
          %397 = sbr.rel (%p395) target = $region24
        $region23: #{tpu_custom_call.1} parent=11 // pred_region
          _
        $region24: #{tpu_custom_call.1} parent=11 // pred_fallthru
          _
        // Predicated region
        $region25: #{tpu_custom_call.1} parent=11 // pred_check
          %p398 = pneg %p150
        $region26: #{tpu_custom_call.1} parent=11 // pred_check_branch
          %400 = sbr.rel (%p398) target = $region28
        $region27: #{tpu_custom_call.1} parent=11 // pred_region
          _
        $region28: #{tpu_custom_call.1} parent=11 // pred_fallthru
          _
        // Predicated region
        $region29: #{tpu_custom_call.1} parent=11 // pred_check
          %p401 = pneg %p171
        $region30: #{tpu_custom_call.1} parent=11 // pred_check_branch
          %403 = sbr.rel (%p401) target = $region32
        $region31: #{tpu_custom_call.1} parent=11 // pred_region
          _
        $region32: #{tpu_custom_call.1} parent=11 // pred_fallthru
          _
        // Predicated region
        $region33: #{tpu_custom_call.1} parent=11 // pred_check
          %p404 = pneg %p192
        $region34: #{tpu_custom_call.1} parent=11 // pred_check_branch
          %406 = sbr.rel (%p404) target = $region36
        $region35: #{tpu_custom_call.1} parent=11 // pred_region
          _
        $region36: #{tpu_custom_call.1} parent=11 // pred_fallthru
          _
        // Predicated region
        $region37: #{tpu_custom_call.1} parent=11 // pred_check
          %p407 = pneg %p213
        $region38: #{tpu_custom_call.1} parent=11 // pred_check_branch
          %409 = sbr.rel (%p407) target = $region40
        $region39: #{tpu_custom_call.1} parent=11 // pred_region
          _
        $region40: #{tpu_custom_call.1} parent=11 // pred_fallthru
          _
        // Predicated region
        $region41: #{tpu_custom_call.1} parent=11 // pred_check
          %p410 = pneg %p234
        $region42: #{tpu_custom_call.1} parent=11 // pred_check_branch
          %412 = sbr.rel (%p410) target = $region44
        $region43: #{tpu_custom_call.1} parent=11 // pred_region
          _
        $region44: #{tpu_custom_call.1} parent=11 // pred_fallthru
          _
        // Predicated region
        $region45: #{tpu_custom_call.1} parent=11 // pred_check
          %p413 = pneg %p255
        $region46: #{tpu_custom_call.1} parent=11 // pred_check_branch
          %415 = sbr.rel (%p413) target = $region48
        $region47: #{tpu_custom_call.1} parent=11 // pred_region
          %s417 = ssub.s32 512, 512
          %418 = vsyncadd [#allocation6], %s417
          %s419 = sshll.u32 [#allocation5], 4
          %s420 = int_to_ptr.vmem [resolvable:$true] %s419
          %425 = dma.hbm_to_vmem [thread:$0]  %s9, 512, %s420, [#allocation6], 128, 128, 8
        $region48: #{tpu_custom_call.1} parent=11 // pred_fallthru
          _
        // Predicated region
        $region49: #{tpu_custom_call.1} parent=11 // pred_check
          %p426 = pneg %p276
        $region50: #{tpu_custom_call.1} parent=11 // pred_check_branch
          %428 = sbr.rel (%p426) target = $region52
        $region51: #{tpu_custom_call.1} parent=11 // pred_region
          _
        $region52: #{tpu_custom_call.1} parent=11 // pred_fallthru
          _
        // Predicated region
        $region53: #{tpu_custom_call.1} parent=11 // pred_check
          %p429 = pneg %p297
        $region54: #{tpu_custom_call.1} parent=11 // pred_check_branch
          %431 = sbr.rel (%p429) target = $region56
        $region55: #{tpu_custom_call.1} parent=11 // pred_region
          _
        $region56: #{tpu_custom_call.1} parent=11 // pred_fallthru
          _
        // Predicated region
        $region57: #{tpu_custom_call.1} parent=11 // pred_check
          %p432 = pneg %p318
        $region58: #{tpu_custom_call.1} parent=11 // pred_check_branch
          %434 = sbr.rel (%p432) target = $region60
        $region59: #{tpu_custom_call.1} parent=11 // pred_region
          _
        $region60: #{tpu_custom_call.1} parent=11 // pred_fallthru
          _
      $region12: #{tpu_custom_call.1} parent=5 // pred_fallthru
        _
      %p435 = scmp.lt.s32.totalorder %s28, 4
      // Predicated region
      $region61: #{tpu_custom_call.1} parent=5 // pred_check
        %p436 = pneg %p435
      $region62: #{tpu_custom_call.1} parent=5 // pred_check_branch
        %438 = sbr.rel (%p436) target = $region64
      $region63: #{tpu_custom_call.1} parent=5 // pred_region
        // Predicated region
        $region65: #{tpu_custom_call.1} parent=63 // pred_check
          %p439 = pneg %p60
        $region66: #{tpu_custom_call.1} parent=63 // pred_check_branch
          %441 = sbr.rel (%p439) target = $region68
        $region67: #{tpu_custom_call.1} parent=63 // pred_region
          %p442 = scmp.lt.s32.totalorder %s35, 1
          %s443 = scalar_select %p442, %s35, 1
          %s444 = smul.addr %s443, 2
          %s445 = smul.addr %s444, 8
          %s446 = scalar_lea.vmem %s0, %s445
        $region68: #{tpu_custom_call.1} parent=63 // pred_fallthru
          _
      $region64: #{tpu_custom_call.1} parent=5 // pred_fallthru
        _
      %p447 = scmp.le.s32.totalorder 1, %s28
      %p448 = scmp.lt.s32.totalorder %s28, 5
      %p449 = pnand %p447, %p448
      %p450 = pneg %p449
      // Predicated region
      $region69: #{tpu_custom_call.1} parent=5 // pred_check
        _
      $region70: #{tpu_custom_call.1} parent=5 // pred_check_branch
        %452 = sbr.rel (%p449) target = $region72
      $region71: #{tpu_custom_call.1} parent=5 // pred_region
        %s453 = ssub.s32 %s28, 1
        // Predicated region
        $region73: #{tpu_custom_call.1} parent=71 // pred_check
          %p454 = pneg %p255
        $region74: #{tpu_custom_call.1} parent=71 // pred_check_branch
          %456 = sbr.rel (%p454) target = $region76
        $region75: #{tpu_custom_call.1} parent=71 // pred_region
          %457 = dma.done [#allocation6], 512
        $region76: #{tpu_custom_call.1} parent=71 // pred_fallthru
          _
        %p458 = scmp.lt.s32.totalorder %s37, 1
        %s459 = scalar_select %p458, %s37, 1
        %s460 = smul.addr %s459, 2
        %s461 = smul.addr %s460, 8
        %s462 = scalar_lea.vmem %s0, %s461
        %p463 = pneg %p66
        %p464 = pneg %p63
        %p465 = pneg %p87
        %p466 = pneg %p84
        %p467 = pneg %p108
        %p468 = pneg %p105
        %p469 = pneg %p129
        %p470 = pneg %p126
        %p471 = pneg %p150
        %p472 = pneg %p147
        %p473 = pneg %p171
        %p474 = pneg %p168
        %p475 = pneg %p192
        %p476 = pneg %p189
        %p477 = pneg %p213
        %p478 = pneg %p210
        %p479 = pneg %p234
        %p480 = pneg %p231
        %p481 = pneg %p255
        %p482 = pneg %p252
        %p483 = pneg %p276
        %p484 = pneg %p273
        %p485 = pneg %p297
        %p486 = pneg %p294
        %p487 = pneg %p318
        %p488 = pneg %p315
        %p489 = pneg %p346
        %p490 = pneg %p343
        %s491 = sand.u32 %s333, 1
        %s492 = scalar_lea.sflag [#allocation7], %s491
        %s493 = sand.u32 %s333, 1
        %s494 = smul.addr %s493, 8
        %s495 = scalar_lea.vmem [#allocation8], %s494
        %p496 = pneg %p374
        %p497 = pneg %p371
        %s498 = sand.u32 %s361, 1
        %s499 = scalar_lea.sflag [#allocation10], %s498
        %s500 = sand.u32 %s361, 1
        %s501 = smul.addr %s500, 32
        %s502 = scalar_lea.vmem [#allocation9], %s501
        %p503 = scmp.lt.s32.totalorder %s37, 1
        %s504 = scalar_select %p503, %s37, 1
        %s505 = smul.addr %s504, 2
        %s506 = smul.addr %s505, 8
        %s507 = scalar_lea.vmem %s0, %s506
        %p508 = scmp.eq.s32.totalorder %s38, 0
        // Predicated region
        $region77: #{tpu_custom_call.1} parent=71 // pred_check
          %p509 = pneg %p508
        $region78: #{tpu_custom_call.1} parent=71 // pred_check_branch
          %511 = sbr.rel (%p509) target = $region80
        $region79: #{tpu_custom_call.1} parent=71 // pred_region
          %v512 = vld [vmem:[%s507] sm:$0xff]
          %v513 = vld [vmem:[%s507 + $0x8] sm:$0xff]
          %v514 = vld [vmem:[%s5] sm:$0x1]
          %v515 = vld [vmem:[%s6] sm:$0x1]
          %vm516 = vcmask 261120
          %v517 = vsel %vm516, %v512, 0.0
          %518 = vadd.xlane.f32.xlu0 %v517
          %v519 = vpop.xlane.xlu0 %518
          %v520 = vsel %vm516, %v513, 0.0
          %521 = vadd.xlane.f32.xlu0 %v520
          %v522 = vpop.xlane.xlu0 %521
          %v523 = vrcp.pop 32.0
          %v524 = vmul.f32 %v519, %v523
          %v525 = vmul.f32 %v522, %v523
          %v526 = vsub.f32 %v512, %v524
          %v527 = vsub.f32 %v513, %v525
          %v528 = vmul.f32 %v526, %v526
          %v529 = vmul.f32 %v527, %v527
          %v530 = vsel %vm516, %v528, 0.0
          %531 = vadd.xlane.f32.xlu0 %v530
          %v532 = vpop.xlane.xlu0 %531
          %v533 = vsel %vm516, %v529, 0.0
          %534 = vadd.xlane.f32.xlu0 %v533
          %v535 = vpop.xlane.xlu0 %534
          %v536 = vmul.f32 %v532, %v523
          %v537 = vmul.f32 %v535, %v523
          %v538 = vadd.f32 %v536, 1e-06
          %v539 = vadd.f32 %v537, 1e-06
          %v540 = vrsqrt.pop %v538
          %v541 = vrsqrt.pop %v539
          %v542 = vmul.f32 %v526, %v540
          %v543 = vmul.f32 %v527, %v541
          %v545 = vlaneseq
          %v546 = vshrl.u32 %v545, 7
          %v547 = vsub.s32 0, %v546
          %v548 = vrot.slane %v514, %v547
          %v550 = vmul.f32 %v542, %v548
          %v551 = vmul.f32 %v543, %v548
          %v553 = vlaneseq
          %v554 = vshrl.u32 %v553, 7
          %v555 = vsub.s32 0, %v554
          %v556 = vrot.slane %v515, %v555
          %v558 = vadd.f32 %v550, %v556
          %v559 = vadd.f32 %v551, %v556
          %v560 = vld [vmem:[%s1] sm:$0xff]
          %v561 = vld [vmem:[%s1 + $0x8] sm:$0xff]
          %v562 = vld [vmem:[%s1 + $0x10] sm:$0xff]
          %v563 = vld [vmem:[%s1 + $0x18] sm:$0xff]
          %v564 = vld [vmem:[%s2] sm:$0x1]
          %v566 = vlaneseq
          %v567 = vshrl.u32 %v566, 7
          %v568 = vsub.s32 0, %v567
          %v569 = vrot.slane %v564, %v568
          %v572 = vsel %vm516, %v558, 0
          %v575 = vsel %vm516, %v559, 0
          %577 = vmatprep.subr.mxu0 0.0
          %578 = vmatpush1.msra.mxu0 %v560
          %579 = vmatprep.subr.mxu0 0.0
          %580 = vmatpush1.msra.mxu0 %v561
          %581 = vmatprep.subr.mxu0 0.0
          %582 = vmatpush1.msra.mxu0 %v562
          %583 = vmatprep.subr.mxu0 0.0
          %584 = vmatpush1.msra.mxu0 %v563
          %585 = vmatprep.subr.mxu0 0.0
          %586 = vmatpush1.msra.mxu0 0.0
          %587 = vmatprep.subr.mxu0 0.0
          %588 = vmatpush1.msra.mxu0 0.0
          %589 = vmatprep.subr.mxu0 0.0
          %590 = vmatpush1.msra.mxu0 0.0
          %591 = vmatprep.subr.mxu0 0.0
          %592 = vmatpush1.msra.mxu0 0.0
          %593 = vmatprep.subr.mxu0 0.0
          %594 = vmatpush1.msra.mxu0 0.0
          %595 = vmatprep.subr.mxu0 0.0
          %596 = vmatpush1.msra.mxu0 0.0
          %597 = vmatprep.subr.mxu0 0.0
          %598 = vmatpush1.msra.mxu0 0.0
          %599 = vmatprep.subr.mxu0 0.0
          %600 = vmatpush1.msra.mxu0 0.0
          %601 = vmatprep.subr.mxu0 0.0
          %602 = vmatpush1.msra.mxu0 0.0
          %603 = vmatprep.subr.mxu0 0.0
          %604 = vmatpush1.msra.mxu0 0.0
          %605 = vmatprep.subr.mxu0 0.0
          %606 = vmatpush1.msra.mxu0 0.0
          %607 = vmatprep.subr.mxu0 0.0
          %608 = vmatpush1.msra.mxu0 0.0
          %609 = vmatprep.subr.mxu0 0.0
          %610 = vmatpush1.msra.mxu0 0.0
          %611 = vmatprep.subr.mxu0 0.0
          %612 = vmatpush1.msra.mxu0 0.0
          %613 = vmatprep.subr.mxu0 0.0
          %614 = vmatpush1.msra.mxu0 0.0
          %615 = vmatprep.subr.mxu0 0.0
          %616 = vmatpush1.msra.mxu0 0.0
          %617 = vmatprep.subr.mxu0 0.0
          %618 = vmatpush1.msra.mxu0 0.0
          %619 = vmatprep.subr.mxu0 0.0
          %620 = vmatpush1.msra.mxu0 0.0
          %621 = vmatprep.subr.mxu0 0.0
          %622 = vmatpush1.msra.mxu0 0.0
          %623 = vmatprep.subr.mxu0 0.0
          %624 = vmatpush1.msra.mxu0 0.0
          %625 = vmatprep.subr.mxu0 0.0
          %626 = vmatpush1.msra.mxu0 0.0
          %627 = vmatprep.subr.mxu0 0.0
          %628 = vmatpush1.msra.mxu0 0.0
          %629 = vmatprep.subr.mxu0 0.0
          %630 = vmatpush1.msra.mxu0 0.0
          %631 = vmatprep.subr.mxu0 0.0
          %632 = vmatpush1.msra.mxu0 0.0
          %633 = vmatprep.subr.mxu0 0.0
          %634 = vmatpush1.msra.mxu0 0.0
          %635 = vmatprep.subr.mxu0 0.0
          %636 = vmatpush1.msra.mxu0 0.0
          %637 = vmatprep.subr.mxu0 0.0
          %638 = vmatpush1.msra.mxu0 0.0
          %639 = vmatprep.subr.mxu0 0.0
          %640 = vmatpush1.msra.mxu0 0.0
          %641 = vmatprep.mubr.f32.mxu0 0.0
          %642 = vmatmul.mubr.f32.gmra.mrb[0].mxu0 %v572
          %v643 = vpop.f32.mrb[0].mxu0
          %v644 = vadd.f32 %v569, %v643
          %v645 = vpop.f32.mrb[0].mxu0
          %646 = vmatprep.mubr.f32.mxu0 0.0
          %647 = vmatmul.mubr.f32.gmra.mrb[0].mxu0 %v575
          %v648 = vpop.f32.mrb[0].mxu0
          %v649 = vadd.f32 %v569, %v648
          %v650 = vpop.f32.mrb[0].mxu0
          %651 = vdwg.mxu0
          %v652 = vmul.f32 %v644, 0.35355338
          %v653 = vmul.f32 %v649, 0.35355338
          %vm654 = vcmask 64512
          %655 = vst.msk [vmem:[#allocation2] sm:$0xff] %vm654, %v652
          %656 = vst.msk [vmem:[#allocation2 + $0x8] sm:$0xff] %vm654, %v653
          %659 = vrot.lane.b32.xlu0 %v644, 96
          %v660 = vpop.permute.xlu0 %659
          %661 = vrot.lane.b32.xlu0 %v649, 96
          %v662 = vpop.permute.xlu0 %661
          %665 = vst.msk [vmem:[#allocation3] sm:$0xff] %vm654, %v660
          %666 = vst.msk [vmem:[#allocation3 + $0x8] sm:$0xff] %vm654, %v662
          %667 = vrot.lane.b32.xlu0 %v644, 64
          %v668 = vpop.permute.xlu0 %667
          %669 = vrot.lane.b32.xlu0 %v649, 64
          %v670 = vpop.permute.xlu0 %669
          %673 = vst.msk [vmem:[#allocation4] sm:$0xff] %vm654, %v668
          %674 = vst.msk [vmem:[#allocation4 + $0x8] sm:$0xff] %vm654, %v670
          %677 = vrot.lane.b32.xlu0 %v652, 120
          %v678 = vpop.permute.xlu0 %677
          %679 = vrot.lane.b32.xlu0 %v653, 120
          %v680 = vpop.permute.xlu0 %679
          %s683 = scalar_lea.vmem [#allocation2], 16
          %684 = vst.msk [vmem:[%s683] sm:$0xff] %vm654, %v678
          %685 = vst.msk [vmem:[%s683 + $0x8] sm:$0xff] %vm654, %v680
          %686 = vrot.lane.b32.xlu0 %v644, 88
          %v687 = vpop.permute.xlu0 %686
          %688 = vrot.lane.b32.xlu0 %v649, 88
          %v689 = vpop.permute.xlu0 %688
          %s692 = scalar_lea.vmem [#allocation3], 16
          %693 = vst.msk [vmem:[%s692] sm:$0xff] %vm654, %v687
          %694 = vst.msk [vmem:[%s692 + $0x8] sm:$0xff] %vm654, %v689
          %695 = vrot.lane.b32.xlu0 %v644, 56
          %v696 = vpop.permute.xlu0 %695
          %697 = vrot.lane.b32.xlu0 %v649, 56
          %v698 = vpop.permute.xlu0 %697
          %s701 = scalar_lea.vmem [#allocation4], 16
          %702 = vst.msk [vmem:[%s701] sm:$0xff] %vm654, %v696
          %703 = vst.msk [vmem:[%s701 + $0x8] sm:$0xff] %vm654, %v698
          %704 = vrot.lane.b32.xlu0 %v652, 112
          %v705 = vpop.permute.xlu0 %704
          %706 = vrot.lane.b32.xlu0 %v653, 112
          %v707 = vpop.permute.xlu0 %706
          %s710 = scalar_lea.vmem [#allocation2], 32
          %711 = vst.msk [vmem:[%s710] sm:$0xff] %vm654, %v705
          %712 = vst.msk [vmem:[%s710 + $0x8] sm:$0xff] %vm654, %v707
          %713 = vrot.lane.b32.xlu0 %v644, 80
          %v714 = vpop.permute.xlu0 %713
          %715 = vrot.lane.b32.xlu0 %v649, 80
          %v716 = vpop.permute.xlu0 %715
          %s719 = scalar_lea.vmem [#allocation3], 32
          %720 = vst.msk [vmem:[%s719] sm:$0xff] %vm654, %v714
          %721 = vst.msk [vmem:[%s719 + $0x8] sm:$0xff] %vm654, %v716
          %722 = vrot.lane.b32.xlu0 %v644, 48
          %v723 = vpop.permute.xlu0 %722
          %724 = vrot.lane.b32.xlu0 %v649, 48
          %v725 = vpop.permute.xlu0 %724
          %s728 = scalar_lea.vmem [#allocation4], 32
          %729 = vst.msk [vmem:[%s728] sm:$0xff] %vm654, %v723
          %730 = vst.msk [vmem:[%s728 + $0x8] sm:$0xff] %vm654, %v725
          %731 = vrot.lane.b32.xlu0 %v652, 104
          %v732 = vpop.permute.xlu0 %731
          %733 = vrot.lane.b32.xlu0 %v653, 104
          %v734 = vpop.permute.xlu0 %733
          %s737 = scalar_lea.vmem [#allocation2], 48
          %738 = vst.msk [vmem:[%s737] sm:$0xff] %vm654, %v732
          %739 = vst.msk [vmem:[%s737 + $0x8] sm:$0xff] %vm654, %v734
          %740 = vrot.lane.b32.xlu0 %v644, 72
          %v741 = vpop.permute.xlu0 %740
          %742 = vrot.lane.b32.xlu0 %v649, 72
          %v743 = vpop.permute.xlu0 %742
          %s746 = scalar_lea.vmem [#allocation3], 48
          %747 = vst.msk [vmem:[%s746] sm:$0xff] %vm654, %v741
          %748 = vst.msk [vmem:[%s746 + $0x8] sm:$0xff] %vm654, %v743
          %749 = vrot.lane.b32.xlu0 %v644, 40
          %v750 = vpop.permute.xlu0 %749
          %751 = vrot.lane.b32.xlu0 %v649, 40
          %v752 = vpop.permute.xlu0 %751
          %s755 = scalar_lea.vmem [#allocation4], 48
          %756 = vst.msk [vmem:[%s755] sm:$0xff] %vm654, %v750
          %757 = vst.msk [vmem:[%s755 + $0x8] sm:$0xff] %vm654, %v752
        $region80: #{tpu_custom_call.1} parent=71 // pred_fallthru
          _
        %s758 = smul.u32 %s38, 8
        %s759 = scalar_lea.vmem [#allocation2], %s758
        %v760 = vld [vmem:[%s759] sm:$0xff]
        %v761 = vld [vmem:[%s759 + $0x10] sm:$0xff]
        %v762 = vld [vmem:[%s759 + $0x20] sm:$0xff]
        %v763 = vld [vmem:[%s759 + $0x30] sm:$0xff]
        %v764 = vld [vmem:[#allocation3] sm:$0xff]
        %v765 = vld [vmem:[#allocation3 + $0x8] sm:$0xff]
        %v766 = vld [vmem:[#allocation3 + $0x10] sm:$0xff]
        %v767 = vld [vmem:[#allocation3 + $0x18] sm:$0xff]
        %v768 = vld [vmem:[#allocation3 + $0x20] sm:$0xff]
        %v769 = vld [vmem:[#allocation3 + $0x28] sm:$0xff]
        %v770 = vld [vmem:[#allocation3 + $0x30] sm:$0xff]
        %v771 = vld [vmem:[#allocation3 + $0x38] sm:$0xff]
        %v772 = vld [vmem:[#allocation4] sm:$0xff]
        %v773 = vld [vmem:[#allocation4 + $0x8] sm:$0xff]
        %v774 = vld [vmem:[#allocation4 + $0x10] sm:$0xff]
        %v775 = vld [vmem:[#allocation4 + $0x18] sm:$0xff]
        %v776 = vld [vmem:[#allocation4 + $0x20] sm:$0xff]
        %v777 = vld [vmem:[#allocation4 + $0x28] sm:$0xff]
        %v778 = vld [vmem:[#allocation4 + $0x30] sm:$0xff]
        %v779 = vld [vmem:[#allocation4 + $0x38] sm:$0xff]
        %vm780 = vcmask 64512
        %v782 = vsel %vm780, %v760, 0
        %v785 = vsel %vm780, %v764, 0
        %v788 = vsel %vm780, %v765, 0
        %790 = vmatprep.subr.mxu0 0.0
        %791 = vmatpush1.xpose.msra.mxu0 %v785
        %792 = vmatprep.subr.mxu0 0.0
        %793 = vmatpush1.xpose.msra.mxu0 %v788
        %794 = vmatprep.subr.mxu0 0.0
        %795 = vmatpush1.xpose.msra.mxu0 0.0
        %796 = vmatprep.subr.mxu0 0.0
        %797 = vmatpush1.xpose.msra.mxu0 0.0
        %798 = vmatprep.subr.mxu0 0.0
        %799 = vmatpush1.xpose.msra.mxu0 0.0
        %800 = vmatprep.subr.mxu0 0.0
        %801 = vmatpush1.xpose.msra.mxu0 0.0
        %802 = vmatprep.subr.mxu0 0.0
        %803 = vmatpush1.xpose.msra.mxu0 0.0
        %804 = vmatprep.subr.mxu0 0.0
        %805 = vmatpush1.xpose.msra.mxu0 0.0
        %806 = vmatprep.subr.mxu0 0.0
        %807 = vmatpush1.xpose.msra.mxu0 0.0
        %808 = vmatprep.subr.mxu0 0.0
        %809 = vmatpush1.xpose.msra.mxu0 0.0
        %810 = vmatprep.subr.mxu0 0.0
        %811 = vmatpush1.xpose.msra.mxu0 0.0
        %812 = vmatprep.subr.mxu0 0.0
        %813 = vmatpush1.xpose.msra.mxu0 0.0
        %814 = vmatprep.subr.mxu0 0.0
        %815 = vmatpush1.xpose.msra.mxu0 0.0
        %816 = vmatprep.subr.mxu0 0.0
        %817 = vmatpush1.xpose.msra.mxu0 0.0
        %818 = vmatprep.subr.mxu0 0.0
        %819 = vmatpush1.xpose.msra.mxu0 0.0
        %820 = vmatprep.subr.mxu0 0.0
        %821 = vmatpush1.xpose.msra.mxu0 0.0
        %822 = vmatprep.subr.mxu0 0.0
        %823 = vmatpush1.xpose.msra.mxu0 0.0
        %824 = vmatprep.subr.mxu0 0.0
        %825 = vmatpush1.xpose.msra.mxu0 0.0
        %826 = vmatprep.subr.mxu0 0.0
        %827 = vmatpush1.xpose.msra.mxu0 0.0
        %828 = vmatprep.subr.mxu0 0.0
        %829 = vmatpush1.xpose.msra.mxu0 0.0
        %830 = vmatprep.subr.mxu0 0.0
        %831 = vmatpush1.xpose.msra.mxu0 0.0
        %832 = vmatprep.subr.mxu0 0.0
        %833 = vmatpush1.xpose.msra.mxu0 0.0
        %834 = vmatprep.subr.mxu0 0.0
        %835 = vmatpush1.xpose.msra.mxu0 0.0
        %836 = vmatprep.subr.mxu0 0.0
        %837 = vmatpush1.xpose.msra.mxu0 0.0
        %838 = vmatprep.subr.mxu0 0.0
        %839 = vmatpush1.xpose.msra.mxu0 0.0
        %840 = vmatprep.subr.mxu0 0.0
        %841 = vmatpush1.xpose.msra.mxu0 0.0
        %842 = vmatprep.subr.mxu0 0.0
        %843 = vmatpush1.xpose.msra.mxu0 0.0
        %844 = vmatprep.subr.mxu0 0.0
        %845 = vmatpush1.xpose.msra.mxu0 0.0
        %846 = vmatprep.subr.mxu0 0.0
        %847 = vmatpush1.xpose.msra.mxu0 0.0
        %848 = vmatprep.subr.mxu0 0.0
        %849 = vmatpush1.xpose.msra.mxu0 0.0
        %850 = vmatprep.subr.mxu0 0.0
        %851 = vmatpush1.xpose.msra.mxu0 0.0
        %852 = vmatprep.subr.mxu0 0.0
        %853 = vmatpush1.xpose.msra.mxu0 0.0
        %854 = vmatprep.mubr.f32.mxu0 0.0
        %855 = vmatmul.mubr.f32.gmra.mrb[0].mxu0 %v782
        %v856 = vpop.f32.mrb[0].mxu0
        %v857 = vadd.f32 0.0, %v856
        %v858 = vpop.f32.mrb[0].mxu0
        %859 = vdwg.mxu0
        %v861 = vsel %vm780, %v761, 0
        %v864 = vsel %vm780, %v766, 0
        %v867 = vsel %vm780, %v767, 0
        %869 = vmatprep.subr.mxu0 0.0
        %870 = vmatpush1.xpose.msra.mxu0 %v864
        %871 = vmatprep.subr.mxu0 0.0
        %872 = vmatpush1.xpose.msra.mxu0 %v867
        %873 = vmatprep.subr.mxu0 0.0
        %874 = vmatpush1.xpose.msra.mxu0 0.0
        %875 = vmatprep.subr.mxu0 0.0
        %876 = vmatpush1.xpose.msra.mxu0 0.0
        %877 = vmatprep.subr.mxu0 0.0
        %878 = vmatpush1.xpose.msra.mxu0 0.0
        %879 = vmatprep.subr.mxu0 0.0
        %880 = vmatpush1.xpose.msra.mxu0 0.0
        %881 = vmatprep.subr.mxu0 0.0
        %882 = vmatpush1.xpose.msra.mxu0 0.0
        %883 = vmatprep.subr.mxu0 0.0
        %884 = vmatpush1.xpose.msra.mxu0 0.0
        %885 = vmatprep.subr.mxu0 0.0
        %886 = vmatpush1.xpose.msra.mxu0 0.0
        %887 = vmatprep.subr.mxu0 0.0
        %888 = vmatpush1.xpose.msra.mxu0 0.0
        %889 = vmatprep.subr.mxu0 0.0
        %890 = vmatpush1.xpose.msra.mxu0 0.0
        %891 = vmatprep.subr.mxu0 0.0
        %892 = vmatpush1.xpose.msra.mxu0 0.0
        %893 = vmatprep.subr.mxu0 0.0
        %894 = vmatpush1.xpose.msra.mxu0 0.0
        %895 = vmatprep.subr.mxu0 0.0
        %896 = vmatpush1.xpose.msra.mxu0 0.0
        %897 = vmatprep.subr.mxu0 0.0
        %898 = vmatpush1.xpose.msra.mxu0 0.0
        %899 = vmatprep.subr.mxu0 0.0
        %900 = vmatpush1.xpose.msra.mxu0 0.0
        %901 = vmatprep.subr.mxu0 0.0
        %902 = vmatpush1.xpose.msra.mxu0 0.0
        %903 = vmatprep.subr.mxu0 0.0
        %904 = vmatpush1.xpose.msra.mxu0 0.0
        %905 = vmatprep.subr.mxu0 0.0
        %906 = vmatpush1.xpose.msra.mxu0 0.0
        %907 = vmatprep.subr.mxu0 0.0
        %908 = vmatpush1.xpose.msra.mxu0 0.0
        %909 = vmatprep.subr.mxu0 0.0
        %910 = vmatpush1.xpose.msra.mxu0 0.0
        %911 = vmatprep.subr.mxu0 0.0
        %912 = vmatpush1.xpose.msra.mxu0 0.0
        %913 = vmatprep.subr.mxu0 0.0
        %914 = vmatpush1.xpose.msra.mxu0 0.0
        %915 = vmatprep.subr.mxu0 0.0
        %916 = vmatpush1.xpose.msra.mxu0 0.0
        %917 = vmatprep.subr.mxu0 0.0
        %918 = vmatpush1.xpose.msra.mxu0 0.0
        %919 = vmatprep.subr.mxu0 0.0
        %920 = vmatpush1.xpose.msra.mxu0 0.0
        %921 = vmatprep.subr.mxu0 0.0
        %922 = vmatpush1.xpose.msra.mxu0 0.0
        %923 = vmatprep.subr.mxu0 0.0
        %924 = vmatpush1.xpose.msra.mxu0 0.0
        %925 = vmatprep.subr.mxu0 0.0
        %926 = vmatpush1.xpose.msra.mxu0 0.0
        %927 = vmatprep.subr.mxu0 0.0
        %928 = vmatpush1.xpose.msra.mxu0 0.0
        %929 = vmatprep.subr.mxu0 0.0
        %930 = vmatpush1.xpose.msra.mxu0 0.0
        %931 = vmatprep.subr.mxu0 0.0
        %932 = vmatpush1.xpose.msra.mxu0 0.0
        %933 = vmatprep.mubr.f32.mxu0 0.0
        %934 = vmatmul.mubr.f32.gmra.mrb[0].mxu0 %v861
        %v935 = vpop.f32.mrb[0].mxu0
        %v936 = vadd.f32 0.0, %v935
        %v937 = vpop.f32.mrb[0].mxu0
        %938 = vdwg.mxu0
        %v940 = vsel %vm780, %v762, 0
        %v943 = vsel %vm780, %v768, 0
        %v946 = vsel %vm780, %v769, 0
        %948 = vmatprep.subr.mxu0 0.0
        %949 = vmatpush1.xpose.msra.mxu0 %v943
        %950 = vmatprep.subr.mxu0 0.0
        %951 = vmatpush1.xpose.msra.mxu0 %v946
        %952 = vmatprep.subr.mxu0 0.0
        %953 = vmatpush1.xpose.msra.mxu0 0.0
        %954 = vmatprep.subr.mxu0 0.0
        %955 = vmatpush1.xpose.msra.mxu0 0.0
        %956 = vmatprep.subr.mxu0 0.0
        %957 = vmatpush1.xpose.msra.mxu0 0.0
        %958 = vmatprep.subr.mxu0 0.0
        %959 = vmatpush1.xpose.msra.mxu0 0.0
        %960 = vmatprep.subr.mxu0 0.0
        %961 = vmatpush1.xpose.msra.mxu0 0.0
        %962 = vmatprep.subr.mxu0 0.0
        %963 = vmatpush1.xpose.msra.mxu0 0.0
        %964 = vmatprep.subr.mxu0 0.0
        %965 = vmatpush1.xpose.msra.mxu0 0.0
        %966 = vmatprep.subr.mxu0 0.0
        %967 = vmatpush1.xpose.msra.mxu0 0.0
        %968 = vmatprep.subr.mxu0 0.0
        %969 = vmatpush1.xpose.msra.mxu0 0.0
        %970 = vmatprep.subr.mxu0 0.0
        %971 = vmatpush1.xpose.msra.mxu0 0.0
        %972 = vmatprep.subr.mxu0 0.0
        %973 = vmatpush1.xpose.msra.mxu0 0.0
        %974 = vmatprep.subr.mxu0 0.0
        %975 = vmatpush1.xpose.msra.mxu0 0.0
        %976 = vmatprep.subr.mxu0 0.0
        %977 = vmatpush1.xpose.msra.mxu0 0.0
        %978 = vmatprep.subr.mxu0 0.0
        %979 = vmatpush1.xpose.msra.mxu0 0.0
        %980 = vmatprep.subr.mxu0 0.0
        %981 = vmatpush1.xpose.msra.mxu0 0.0
        %982 = vmatprep.subr.mxu0 0.0
        %983 = vmatpush1.xpose.msra.mxu0 0.0
        %984 = vmatprep.subr.mxu0 0.0
        %985 = vmatpush1.xpose.msra.mxu0 0.0
        %986 = vmatprep.subr.mxu0 0.0
        %987 = vmatpush1.xpose.msra.mxu0 0.0
        %988 = vmatprep.subr.mxu0 0.0
        %989 = vmatpush1.xpose.msra.mxu0 0.0
        %990 = vmatprep.subr.mxu0 0.0
        %991 = vmatpush1.xpose.msra.mxu0 0.0
        %992 = vmatprep.subr.mxu0 0.0
        %993 = vmatpush1.xpose.msra.mxu0 0.0
        %994 = vmatprep.subr.mxu0 0.0
        %995 = vmatpush1.xpose.msra.mxu0 0.0
        %996 = vmatprep.subr.mxu0 0.0
        %997 = vmatpush1.xpose.msra.mxu0 0.0
        %998 = vmatprep.subr.mxu0 0.0
        %999 = vmatpush1.xpose.msra.mxu0 0.0
        %1000 = vmatprep.subr.mxu0 0.0
        %1001 = vmatpush1.xpose.msra.mxu0 0.0
        %1002 = vmatprep.subr.mxu0 0.0
        %1003 = vmatpush1.xpose.msra.mxu0 0.0
        %1004 = vmatprep.subr.mxu0 0.0
        %1005 = vmatpush1.xpose.msra.mxu0 0.0
        %1006 = vmatprep.subr.mxu0 0.0
        %1007 = vmatpush1.xpose.msra.mxu0 0.0
        %1008 = vmatprep.subr.mxu0 0.0
        %1009 = vmatpush1.xpose.msra.mxu0 0.0
        %1010 = vmatprep.subr.mxu0 0.0
        %1011 = vmatpush1.xpose.msra.mxu0 0.0
        %1012 = vmatprep.mubr.f32.mxu0 0.0
        %1013 = vmatmul.mubr.f32.gmra.mrb[0].mxu0 %v940
        %v1014 = vpop.f32.mrb[0].mxu0
        %v1015 = vadd.f32 0.0, %v1014
        %v1016 = vpop.f32.mrb[0].mxu0
        %1017 = vdwg.mxu0
        %v1019 = vsel %vm780, %v763, 0
        %v1022 = vsel %vm780, %v770, 0
        %v1025 = vsel %vm780, %v771, 0
        %1027 = vmatprep.subr.mxu0 0.0
        %1028 = vmatpush1.xpose.msra.mxu0 %v1022
        %1029 = vmatprep.subr.mxu0 0.0
        %1030 = vmatpush1.xpose.msra.mxu0 %v1025
        %1031 = vmatprep.subr.mxu0 0.0
        %1032 = vmatpush1.xpose.msra.mxu0 0.0
        %1033 = vmatprep.subr.mxu0 0.0
        %1034 = vmatpush1.xpose.msra.mxu0 0.0
        %1035 = vmatprep.subr.mxu0 0.0
        %1036 = vmatpush1.xpose.msra.mxu0 0.0
        %1037 = vmatprep.subr.mxu0 0.0
        %1038 = vmatpush1.xpose.msra.mxu0 0.0
        %1039 = vmatprep.subr.mxu0 0.0
        %1040 = vmatpush1.xpose.msra.mxu0 0.0
        %1041 = vmatprep.subr.mxu0 0.0
        %1042 = vmatpush1.xpose.msra.mxu0 0.0
        %1043 = vmatprep.subr.mxu0 0.0
        %1044 = vmatpush1.xpose.msra.mxu0 0.0
        %1045 = vmatprep.subr.mxu0 0.0
        %1046 = vmatpush1.xpose.msra.mxu0 0.0
        %1047 = vmatprep.subr.mxu0 0.0
        %1048 = vmatpush1.xpose.msra.mxu0 0.0
        %1049 = vmatprep.subr.mxu0 0.0
        %1050 = vmatpush1.xpose.msra.mxu0 0.0
        %1051 = vmatprep.subr.mxu0 0.0
        %1052 = vmatpush1.xpose.msra.mxu0 0.0
        %1053 = vmatprep.subr.mxu0 0.0
        %1054 = vmatpush1.xpose.msra.mxu0 0.0
        %1055 = vmatprep.subr.mxu0 0.0
        %1056 = vmatpush1.xpose.msra.mxu0 0.0
        %1057 = vmatprep.subr.mxu0 0.0
        %1058 = vmatpush1.xpose.msra.mxu0 0.0
        %1059 = vmatprep.subr.mxu0 0.0
        %1060 = vmatpush1.xpose.msra.mxu0 0.0
        %1061 = vmatprep.subr.mxu0 0.0
        %1062 = vmatpush1.xpose.msra.mxu0 0.0
        %1063 = vmatprep.subr.mxu0 0.0
        %1064 = vmatpush1.xpose.msra.mxu0 0.0
        %1065 = vmatprep.subr.mxu0 0.0
        %1066 = vmatpush1.xpose.msra.mxu0 0.0
        %1067 = vmatprep.subr.mxu0 0.0
        %1068 = vmatpush1.xpose.msra.mxu0 0.0
        %1069 = vmatprep.subr.mxu0 0.0
        %1070 = vmatpush1.xpose.msra.mxu0 0.0
        %1071 = vmatprep.subr.mxu0 0.0
        %1072 = vmatpush1.xpose.msra.mxu0 0.0
        %1073 = vmatprep.subr.mxu0 0.0
        %1074 = vmatpush1.xpose.msra.mxu0 0.0
        %1075 = vmatprep.subr.mxu0 0.0
        %1076 = vmatpush1.xpose.msra.mxu0 0.0
        %1077 = vmatprep.subr.mxu0 0.0
        %1078 = vmatpush1.xpose.msra.mxu0 0.0
        %1079 = vmatprep.subr.mxu0 0.0
        %1080 = vmatpush1.xpose.msra.mxu0 0.0
        %1081 = vmatprep.subr.mxu0 0.0
        %1082 = vmatpush1.xpose.msra.mxu0 0.0
        %1083 = vmatprep.subr.mxu0 0.0
        %1084 = vmatpush1.xpose.msra.mxu0 0.0
        %1085 = vmatprep.subr.mxu0 0.0
        %1086 = vmatpush1.xpose.msra.mxu0 0.0
        %1087 = vmatprep.subr.mxu0 0.0
        %1088 = vmatpush1.xpose.msra.mxu0 0.0
        %1089 = vmatprep.subr.mxu0 0.0
        %1090 = vmatpush1.xpose.msra.mxu0 0.0
        %1091 = vmatprep.mubr.f32.mxu0 0.0
        %1092 = vmatmul.mubr.f32.gmra.mrb[0].mxu0 %v1019
        %v1093 = vpop.f32.mrb[0].mxu0
        %v1094 = vadd.f32 0.0, %v1093
        %v1095 = vpop.f32.mrb[0].mxu0
        %1096 = vdwg.mxu0
        %vm1097 = vcmask 130048
        %v1098 = vsel %vm1097, %v857, -inf
        %1099 = vmax.xlane.f32.xlu0 %v1098
        %v1100 = vpop.xlane.xlu0 %1099
        %v1101 = vsel %vm1097, %v936, -inf
        %1102 = vmax.xlane.f32.xlu0 %v1101
        %v1103 = vpop.xlane.xlu0 %1102
        %v1104 = vsel %vm1097, %v1015, -inf
        %1105 = vmax.xlane.f32.xlu0 %v1104
        %v1106 = vpop.xlane.xlu0 %1105
        %v1107 = vsel %vm1097, %v1094, -inf
        %1108 = vmax.xlane.f32.xlu0 %v1107
        %v1109 = vpop.xlane.xlu0 %1108
        %v1110 = vsub.f32 %v857, %v1100
        %v1111 = vsub.f32 %v936, %v1103
        %v1112 = vsub.f32 %v1015, %v1106
        %v1113 = vsub.f32 %v1094, %v1109
        %v1114 = vmul.f32 %v1110, 1.442695
        %v1115 = vpow.pop %v1114
        %v1116 = vmul.f32 %v1111, 1.442695
        %v1117 = vpow.pop %v1116
        %v1118 = vmul.f32 %v1112, 1.442695
        %v1119 = vpow.pop %v1118
        %v1120 = vmul.f32 %v1113, 1.442695
        %v1121 = vpow.pop %v1120
        %v1122 = vsel %vm1097, %v1115, 0.0
        %1123 = vadd.xlane.f32.xlu0 %v1122
        %v1124 = vpop.xlane.xlu0 %1123
        %v1125 = vsel %vm1097, %v1117, 0.0
        %1126 = vadd.xlane.f32.xlu0 %v1125
        %v1127 = vpop.xlane.xlu0 %1126
        %v1128 = vsel %vm1097, %v1119, 0.0
        %1129 = vadd.xlane.f32.xlu0 %v1128
        %v1130 = vpop.xlane.xlu0 %1129
        %v1131 = vsel %vm1097, %v1121, 0.0
        %1132 = vadd.xlane.f32.xlu0 %v1131
        %v1133 = vpop.xlane.xlu0 %1132
        %v1134 = vrcp.pop %v1124
        %v1135 = vrcp.pop %v1127
        %v1136 = vrcp.pop %v1130
        %v1137 = vrcp.pop %v1133
        %v1138 = vmul.f32 %v1115, %v1134
        %v1139 = vmul.f32 %v1117, %v1135
        %v1140 = vmul.f32 %v1119, %v1136
        %v1141 = vmul.f32 %v1121, %v1137
        %1142 = vst.msk [vmem:[%s502] sm:$0xff] %vm1097, %v1138
        %1143 = vst.msk [vmem:[%s502 + $0x8] sm:$0xff] %vm1097, %v1139
        %1144 = vst.msk [vmem:[%s502 + $0x10] sm:$0xff] %vm1097, %v1140
        %1145 = vst.msk [vmem:[%s502 + $0x18] sm:$0xff] %vm1097, %v1141
        %v1147 = vsel %vm1097, %v1138, 0
        %1149 = vmatprep.subr.mxu0 0.0
        %1150 = vmatpush1.msra.mxu0 %v772
        %1151 = vmatprep.subr.mxu0 0.0
        %1152 = vmatpush1.msra.mxu0 %v773
        %1153 = vmatprep.subr.mxu0 0.0
        %1154 = vmatpush1.msra.mxu0 0.0
        %1155 = vmatprep.subr.mxu0 0.0
        %1156 = vmatpush1.msra.mxu0 0.0
        %1157 = vmatprep.subr.mxu0 0.0
        %1158 = vmatpush1.msra.mxu0 0.0
        %1159 = vmatprep.subr.mxu0 0.0
        %1160 = vmatpush1.msra.mxu0 0.0
        %1161 = vmatprep.subr.mxu0 0.0
        %1162 = vmatpush1.msra.mxu0 0.0
        %1163 = vmatprep.subr.mxu0 0.0
        %1164 = vmatpush1.msra.mxu0 0.0
        %1165 = vmatprep.subr.mxu0 0.0
        %1166 = vmatpush1.msra.mxu0 0.0
        %1167 = vmatprep.subr.mxu0 0.0
        %1168 = vmatpush1.msra.mxu0 0.0
        %1169 = vmatprep.subr.mxu0 0.0
        %1170 = vmatpush1.msra.mxu0 0.0
        %1171 = vmatprep.subr.mxu0 0.0
        %1172 = vmatpush1.msra.mxu0 0.0
        %1173 = vmatprep.subr.mxu0 0.0
        %1174 = vmatpush1.msra.mxu0 0.0
        %1175 = vmatprep.subr.mxu0 0.0
        %1176 = vmatpush1.msra.mxu0 0.0
        %1177 = vmatprep.subr.mxu0 0.0
        %1178 = vmatpush1.msra.mxu0 0.0
        %1179 = vmatprep.subr.mxu0 0.0
        %1180 = vmatpush1.msra.mxu0 0.0
        %1181 = vmatprep.subr.mxu0 0.0
        %1182 = vmatpush1.msra.mxu0 0.0
        %1183 = vmatprep.subr.mxu0 0.0
        %1184 = vmatpush1.msra.mxu0 0.0
        %1185 = vmatprep.subr.mxu0 0.0
        %1186 = vmatpush1.msra.mxu0 0.0
        %1187 = vmatprep.subr.mxu0 0.0
        %1188 = vmatpush1.msra.mxu0 0.0
        %1189 = vmatprep.subr.mxu0 0.0
        %1190 = vmatpush1.msra.mxu0 0.0
        %1191 = vmatprep.subr.mxu0 0.0
        %1192 = vmatpush1.msra.mxu0 0.0
        %1193 = vmatprep.subr.mxu0 0.0
        %1194 = vmatpush1.msra.mxu0 0.0
        %1195 = vmatprep.subr.mxu0 0.0
        %1196 = vmatpush1.msra.mxu0 0.0
        %1197 = vmatprep.subr.mxu0 0.0
        %1198 = vmatpush1.msra.mxu0 0.0
        %1199 = vmatprep.subr.mxu0 0.0
        %1200 = vmatpush1.msra.mxu0 0.0
        %1201 = vmatprep.subr.mxu0 0.0
        %1202 = vmatpush1.msra.mxu0 0.0
        %1203 = vmatprep.subr.mxu0 0.0
        %1204 = vmatpush1.msra.mxu0 0.0
        %1205 = vmatprep.subr.mxu0 0.0
        %1206 = vmatpush1.msra.mxu0 0.0
        %1207 = vmatprep.subr.mxu0 0.0
        %1208 = vmatpush1.msra.mxu0 0.0
        %1209 = vmatprep.subr.mxu0 0.0
        %1210 = vmatpush1.msra.mxu0 0.0
        %1211 = vmatprep.subr.mxu0 0.0
        %1212 = vmatpush1.msra.mxu0 0.0
        %1213 = vmatprep.mubr.f32.mxu0 0.0
        %1214 = vmatmul.mubr.f32.gmra.mrb[0].mxu0 %v1147
        %v1215 = vpop.f32.mrb[0].mxu0
        %v1216 = vadd.f32 0.0, %v1215
        %v1217 = vpop.f32.mrb[0].mxu0
        %1218 = vdwg.mxu0
        %v1220 = vsel %vm1097, %v1139, 0
        %1222 = vmatprep.subr.mxu0 0.0
        %1223 = vmatpush1.msra.mxu0 %v774
        %1224 = vmatprep.subr.mxu0 0.0
        %1225 = vmatpush1.msra.mxu0 %v775
        %1226 = vmatprep.subr.mxu0 0.0
        %1227 = vmatpush1.msra.mxu0 0.0
        %1228 = vmatprep.subr.mxu0 0.0
        %1229 = vmatpush1.msra.mxu0 0.0
        %1230 = vmatprep.subr.mxu0 0.0
        %1231 = vmatpush1.msra.mxu0 0.0
        %1232 = vmatprep.subr.mxu0 0.0
        %1233 = vmatpush1.msra.mxu0 0.0
        %1234 = vmatprep.subr.mxu0 0.0
        %1235 = vmatpush1.msra.mxu0 0.0
        %1236 = vmatprep.subr.mxu0 0.0
        %1237 = vmatpush1.msra.mxu0 0.0
        %1238 = vmatprep.subr.mxu0 0.0
        %1239 = vmatpush1.msra.mxu0 0.0
        %1240 = vmatprep.subr.mxu0 0.0
        %1241 = vmatpush1.msra.mxu0 0.0
        %1242 = vmatprep.subr.mxu0 0.0
        %1243 = vmatpush1.msra.mxu0 0.0
        %1244 = vmatprep.subr.mxu0 0.0
        %1245 = vmatpush1.msra.mxu0 0.0
        %1246 = vmatprep.subr.mxu0 0.0
        %1247 = vmatpush1.msra.mxu0 0.0
        %1248 = vmatprep.subr.mxu0 0.0
        %1249 = vmatpush1.msra.mxu0 0.0
        %1250 = vmatprep.subr.mxu0 0.0
        %1251 = vmatpush1.msra.mxu0 0.0
        %1252 = vmatprep.subr.mxu0 0.0
        %1253 = vmatpush1.msra.mxu0 0.0
        %1254 = vmatprep.subr.mxu0 0.0
        %1255 = vmatpush1.msra.mxu0 0.0
        %1256 = vmatprep.subr.mxu0 0.0
        %1257 = vmatpush1.msra.mxu0 0.0
        %1258 = vmatprep.subr.mxu0 0.0
        %1259 = vmatpush1.msra.mxu0 0.0
        %1260 = vmatprep.subr.mxu0 0.0
        %1261 = vmatpush1.msra.mxu0 0.0
        %1262 = vmatprep.subr.mxu0 0.0
        %1263 = vmatpush1.msra.mxu0 0.0
        %1264 = vmatprep.subr.mxu0 0.0
        %1265 = vmatpush1.msra.mxu0 0.0
        %1266 = vmatprep.subr.mxu0 0.0
        %1267 = vmatpush1.msra.mxu0 0.0
        %1268 = vmatprep.subr.mxu0 0.0
        %1269 = vmatpush1.msra.mxu0 0.0
        %1270 = vmatprep.subr.mxu0 0.0
        %1271 = vmatpush1.msra.mxu0 0.0
        %1272 = vmatprep.subr.mxu0 0.0
        %1273 = vmatpush1.msra.mxu0 0.0
        %1274 = vmatprep.subr.mxu0 0.0
        %1275 = vmatpush1.msra.mxu0 0.0
        %1276 = vmatprep.subr.mxu0 0.0
        %1277 = vmatpush1.msra.mxu0 0.0
        %1278 = vmatprep.subr.mxu0 0.0
        %1279 = vmatpush1.msra.mxu0 0.0
        %1280 = vmatprep.subr.mxu0 0.0
        %1281 = vmatpush1.msra.mxu0 0.0
        %1282 = vmatprep.subr.mxu0 0.0
        %1283 = vmatpush1.msra.mxu0 0.0
        %1284 = vmatprep.subr.mxu0 0.0
        %1285 = vmatpush1.msra.mxu0 0.0
        %1286 = vmatprep.mubr.f32.mxu0 0.0
        %1287 = vmatmul.mubr.f32.gmra.mrb[0].mxu0 %v1220
        %v1288 = vpop.f32.mrb[0].mxu0
        %v1289 = vadd.f32 0.0, %v1288
        %v1290 = vpop.f32.mrb[0].mxu0
        %1291 = vdwg.mxu0
        %v1293 = vsel %vm1097, %v1140, 0
        %1295 = vmatprep.subr.mxu0 0.0
        %1296 = vmatpush1.msra.mxu0 %v776
        %1297 = vmatprep.subr.mxu0 0.0
        %1298 = vmatpush1.msra.mxu0 %v777
        %1299 = vmatprep.subr.mxu0 0.0
        %1300 = vmatpush1.msra.mxu0 0.0
        %1301 = vmatprep.subr.mxu0 0.0
        %1302 = vmatpush1.msra.mxu0 0.0
        %1303 = vmatprep.subr.mxu0 0.0
        %1304 = vmatpush1.msra.mxu0 0.0
        %1305 = vmatprep.subr.mxu0 0.0
        %1306 = vmatpush1.msra.mxu0 0.0
        %1307 = vmatprep.subr.mxu0 0.0
        %1308 = vmatpush1.msra.mxu0 0.0
        %1309 = vmatprep.subr.mxu0 0.0
        %1310 = vmatpush1.msra.mxu0 0.0
        %1311 = vmatprep.subr.mxu0 0.0
        %1312 = vmatpush1.msra.mxu0 0.0
        %1313 = vmatprep.subr.mxu0 0.0
        %1314 = vmatpush1.msra.mxu0 0.0
        %1315 = vmatprep.subr.mxu0 0.0
        %1316 = vmatpush1.msra.mxu0 0.0
        %1317 = vmatprep.subr.mxu0 0.0
        %1318 = vmatpush1.msra.mxu0 0.0
        %1319 = vmatprep.subr.mxu0 0.0
        %1320 = vmatpush1.msra.mxu0 0.0
        %1321 = vmatprep.subr.mxu0 0.0
        %1322 = vmatpush1.msra.mxu0 0.0
        %1323 = vmatprep.subr.mxu0 0.0
        %1324 = vmatpush1.msra.mxu0 0.0
        %1325 = vmatprep.subr.mxu0 0.0
        %1326 = vmatpush1.msra.mxu0 0.0
        %1327 = vmatprep.subr.mxu0 0.0
        %1328 = vmatpush1.msra.mxu0 0.0
        %1329 = vmatprep.subr.mxu0 0.0
        %1330 = vmatpush1.msra.mxu0 0.0
        %1331 = vmatprep.subr.mxu0 0.0
        %1332 = vmatpush1.msra.mxu0 0.0
        %1333 = vmatprep.subr.mxu0 0.0
        %1334 = vmatpush1.msra.mxu0 0.0
        %1335 = vmatprep.subr.mxu0 0.0
        %1336 = vmatpush1.msra.mxu0 0.0
        %1337 = vmatprep.subr.mxu0 0.0
        %1338 = vmatpush1.msra.mxu0 0.0
        %1339 = vmatprep.subr.mxu0 0.0
        %1340 = vmatpush1.msra.mxu0 0.0
        %1341 = vmatprep.subr.mxu0 0.0
        %1342 = vmatpush1.msra.mxu0 0.0
        %1343 = vmatprep.subr.mxu0 0.0
        %1344 = vmatpush1.msra.mxu0 0.0
        %1345 = vmatprep.subr.mxu0 0.0
        %1346 = vmatpush1.msra.mxu0 0.0
        %1347 = vmatprep.subr.mxu0 0.0
        %1348 = vmatpush1.msra.mxu0 0.0
        %1349 = vmatprep.subr.mxu0 0.0
        %1350 = vmatpush1.msra.mxu0 0.0
        %1351 = vmatprep.subr.mxu0 0.0
        %1352 = vmatpush1.msra.mxu0 0.0
        %1353 = vmatprep.subr.mxu0 0.0
        %1354 = vmatpush1.msra.mxu0 0.0
        %1355 = vmatprep.subr.mxu0 0.0
        %1356 = vmatpush1.msra.mxu0 0.0
        %1357 = vmatprep.subr.mxu0 0.0
        %1358 = vmatpush1.msra.mxu0 0.0
        %1359 = vmatprep.mubr.f32.mxu0 0.0
        %1360 = vmatmul.mubr.f32.gmra.mrb[0].mxu0 %v1293
        %v1361 = vpop.f32.mrb[0].mxu0
        %v1362 = vadd.f32 0.0, %v1361
        %v1363 = vpop.f32.mrb[0].mxu0
        %1364 = vdwg.mxu0
        %v1366 = vsel %vm1097, %v1141, 0
        %1368 = vmatprep.subr.mxu0 0.0
        %1369 = vmatpush1.msra.mxu0 %v778
        %1370 = vmatprep.subr.mxu0 0.0
        %1371 = vmatpush1.msra.mxu0 %v779
        %1372 = vmatprep.subr.mxu0 0.0
        %1373 = vmatpush1.msra.mxu0 0.0
        %1374 = vmatprep.subr.mxu0 0.0
        %1375 = vmatpush1.msra.mxu0 0.0
        %1376 = vmatprep.subr.mxu0 0.0
        %1377 = vmatpush1.msra.mxu0 0.0
        %1378 = vmatprep.subr.mxu0 0.0
        %1379 = vmatpush1.msra.mxu0 0.0
        %1380 = vmatprep.subr.mxu0 0.0
        %1381 = vmatpush1.msra.mxu0 0.0
        %1382 = vmatprep.subr.mxu0 0.0
        %1383 = vmatpush1.msra.mxu0 0.0
        %1384 = vmatprep.subr.mxu0 0.0
        %1385 = vmatpush1.msra.mxu0 0.0
        %1386 = vmatprep.subr.mxu0 0.0
        %1387 = vmatpush1.msra.mxu0 0.0
        %1388 = vmatprep.subr.mxu0 0.0
        %1389 = vmatpush1.msra.mxu0 0.0
        %1390 = vmatprep.subr.mxu0 0.0
        %1391 = vmatpush1.msra.mxu0 0.0
        %1392 = vmatprep.subr.mxu0 0.0
        %1393 = vmatpush1.msra.mxu0 0.0
        %1394 = vmatprep.subr.mxu0 0.0
        %1395 = vmatpush1.msra.mxu0 0.0
        %1396 = vmatprep.subr.mxu0 0.0
        %1397 = vmatpush1.msra.mxu0 0.0
        %1398 = vmatprep.subr.mxu0 0.0
        %1399 = vmatpush1.msra.mxu0 0.0
        %1400 = vmatprep.subr.mxu0 0.0
        %1401 = vmatpush1.msra.mxu0 0.0
        %1402 = vmatprep.subr.mxu0 0.0
        %1403 = vmatpush1.msra.mxu0 0.0
        %1404 = vmatprep.subr.mxu0 0.0
        %1405 = vmatpush1.msra.mxu0 0.0
        %1406 = vmatprep.subr.mxu0 0.0
        %1407 = vmatpush1.msra.mxu0 0.0
        %1408 = vmatprep.subr.mxu0 0.0
        %1409 = vmatpush1.msra.mxu0 0.0
        %1410 = vmatprep.subr.mxu0 0.0
        %1411 = vmatpush1.msra.mxu0 0.0
        %1412 = vmatprep.subr.mxu0 0.0
        %1413 = vmatpush1.msra.mxu0 0.0
        %1414 = vmatprep.subr.mxu0 0.0
        %1415 = vmatpush1.msra.mxu0 0.0
        %1416 = vmatprep.subr.mxu0 0.0
        %1417 = vmatpush1.msra.mxu0 0.0
        %1418 = vmatprep.subr.mxu0 0.0
        %1419 = vmatpush1.msra.mxu0 0.0
        %1420 = vmatprep.subr.mxu0 0.0
        %1421 = vmatpush1.msra.mxu0 0.0
        %1422 = vmatprep.subr.mxu0 0.0
        %1423 = vmatpush1.msra.mxu0 0.0
        %1424 = vmatprep.subr.mxu0 0.0
        %1425 = vmatpush1.msra.mxu0 0.0
        %1426 = vmatprep.subr.mxu0 0.0
        %1427 = vmatpush1.msra.mxu0 0.0
        %1428 = vmatprep.subr.mxu0 0.0
        %1429 = vmatpush1.msra.mxu0 0.0
        %1430 = vmatprep.subr.mxu0 0.0
        %1431 = vmatpush1.msra.mxu0 0.0
        %1432 = vmatprep.mubr.f32.mxu0 0.0
        %1433 = vmatmul.mubr.f32.gmra.mrb[0].mxu0 %v1366
        %v1434 = vpop.f32.mrb[0].mxu0
        %v1435 = vadd.f32 0.0, %v1434
        %v1436 = vpop.f32.mrb[0].mxu0
        %1437 = vdwg.mxu0
        %v1438 = vld [vmem:[%s3] sm:$0xff]
        %v1439 = vld [vmem:[%s3 + $0x8] sm:$0xff]
        %v1440 = vld [vmem:[%s3 + $0x10] sm:$0xff]
        %v1441 = vld [vmem:[%s3 + $0x18] sm:$0xff]
        %v1443 = vsel %vm780, %v1216, 0
        %1445 = vmatprep.subr.mxu0 0.0
        %1446 = vmatpush1.msra.mxu0 %v1438
        %1447 = vmatprep.subr.mxu0 0.0
        %1448 = vmatpush1.msra.mxu0 0.0
        %1449 = vmatprep.subr.mxu0 0.0
        %1450 = vmatpush1.msra.mxu0 0.0
        %1451 = vmatprep.subr.mxu0 0.0
        %1452 = vmatpush1.msra.mxu0 0.0
        %1453 = vmatprep.subr.mxu0 0.0
        %1454 = vmatpush1.msra.mxu0 0.0
        %1455 = vmatprep.subr.mxu0 0.0
        %1456 = vmatpush1.msra.mxu0 0.0
        %1457 = vmatprep.subr.mxu0 0.0
        %1458 = vmatpush1.msra.mxu0 0.0
        %1459 = vmatprep.subr.mxu0 0.0
        %1460 = vmatpush1.msra.mxu0 0.0
        %1461 = vmatprep.subr.mxu0 0.0
        %1462 = vmatpush1.msra.mxu0 0.0
        %1463 = vmatprep.subr.mxu0 0.0
        %1464 = vmatpush1.msra.mxu0 0.0
        %1465 = vmatprep.subr.mxu0 0.0
        %1466 = vmatpush1.msra.mxu0 0.0
        %1467 = vmatprep.subr.mxu0 0.0
        %1468 = vmatpush1.msra.mxu0 0.0
        %1469 = vmatprep.subr.mxu0 0.0
        %1470 = vmatpush1.msra.mxu0 0.0
        %1471 = vmatprep.subr.mxu0 0.0
        %1472 = vmatpush1.msra.mxu0 0.0
        %1473 = vmatprep.subr.mxu0 0.0
        %1474 = vmatpush1.msra.mxu0 0.0
        %1475 = vmatprep.subr.mxu0 0.0
        %1476 = vmatpush1.msra.mxu0 0.0
        %1477 = vmatprep.subr.mxu0 0.0
        %1478 = vmatpush1.msra.mxu0 0.0
        %1479 = vmatprep.subr.mxu0 0.0
        %1480 = vmatpush1.msra.mxu0 0.0
        %1481 = vmatprep.subr.mxu0 0.0
        %1482 = vmatpush1.msra.mxu0 0.0
        %1483 = vmatprep.subr.mxu0 0.0
        %1484 = vmatpush1.msra.mxu0 0.0
        %1485 = vmatprep.subr.mxu0 0.0
        %1486 = vmatpush1.msra.mxu0 0.0
        %1487 = vmatprep.subr.mxu0 0.0
        %1488 = vmatpush1.msra.mxu0 0.0
        %1489 = vmatprep.subr.mxu0 0.0
        %1490 = vmatpush1.msra.mxu0 0.0
        %1491 = vmatprep.subr.mxu0 0.0
        %1492 = vmatpush1.msra.mxu0 0.0
        %1493 = vmatprep.subr.mxu0 0.0
        %1494 = vmatpush1.msra.mxu0 0.0
        %1495 = vmatprep.subr.mxu0 0.0
        %1496 = vmatpush1.msra.mxu0 0.0
        %1497 = vmatprep.subr.mxu0 0.0
        %1498 = vmatpush1.msra.mxu0 0.0
        %1499 = vmatprep.subr.mxu0 0.0
        %1500 = vmatpush1.msra.mxu0 0.0
        %1501 = vmatprep.subr.mxu0 0.0
        %1502 = vmatpush1.msra.mxu0 0.0
        %1503 = vmatprep.subr.mxu0 0.0
        %1504 = vmatpush1.msra.mxu0 0.0
        %1505 = vmatprep.subr.mxu0 0.0
        %1506 = vmatpush1.msra.mxu0 0.0
        %1507 = vmatprep.subr.mxu0 0.0
        %1508 = vmatpush1.msra.mxu0 0.0
        %1509 = vmatprep.mubr.f32.mxu0 0.0
        %1510 = vmatmul.mubr.f32.gmra.mrb[0].mxu0 %v1443
        %v1511 = vpop.f32.mrb[0].mxu0
        %v1512 = vadd.f32 0.0, %v1511
        %v1513 = vpop.f32.mrb[0].mxu0
        %1514 = vdwg.mxu0
        %v1516 = vsel %vm780, %v1289, 0
        %1518 = vmatprep.subr.mxu0 0.0
        %1519 = vmatpush1.msra.mxu0 %v1439
        %1520 = vmatprep.subr.mxu0 0.0
        %1521 = vmatpush1.msra.mxu0 0.0
        %1522 = vmatprep.subr.mxu0 0.0
        %1523 = vmatpush1.msra.mxu0 0.0
        %1524 = vmatprep.subr.mxu0 0.0
        %1525 = vmatpush1.msra.mxu0 0.0
        %1526 = vmatprep.subr.mxu0 0.0
        %1527 = vmatpush1.msra.mxu0 0.0
        %1528 = vmatprep.subr.mxu0 0.0
        %1529 = vmatpush1.msra.mxu0 0.0
        %1530 = vmatprep.subr.mxu0 0.0
        %1531 = vmatpush1.msra.mxu0 0.0
        %1532 = vmatprep.subr.mxu0 0.0
        %1533 = vmatpush1.msra.mxu0 0.0
        %1534 = vmatprep.subr.mxu0 0.0
        %1535 = vmatpush1.msra.mxu0 0.0
        %1536 = vmatprep.subr.mxu0 0.0
        %1537 = vmatpush1.msra.mxu0 0.0
        %1538 = vmatprep.subr.mxu0 0.0
        %1539 = vmatpush1.msra.mxu0 0.0
        %1540 = vmatprep.subr.mxu0 0.0
        %1541 = vmatpush1.msra.mxu0 0.0
        %1542 = vmatprep.subr.mxu0 0.0
        %1543 = vmatpush1.msra.mxu0 0.0
        %1544 = vmatprep.subr.mxu0 0.0
        %1545 = vmatpush1.msra.mxu0 0.0
        %1546 = vmatprep.subr.mxu0 0.0
        %1547 = vmatpush1.msra.mxu0 0.0
        %1548 = vmatprep.subr.mxu0 0.0
        %1549 = vmatpush1.msra.mxu0 0.0
        %1550 = vmatprep.subr.mxu0 0.0
        %1551 = vmatpush1.msra.mxu0 0.0
        %1552 = vmatprep.subr.mxu0 0.0
        %1553 = vmatpush1.msra.mxu0 0.0
        %1554 = vmatprep.subr.mxu0 0.0
        %1555 = vmatpush1.msra.mxu0 0.0
        %1556 = vmatprep.subr.mxu0 0.0
        %1557 = vmatpush1.msra.mxu0 0.0
        %1558 = vmatprep.subr.mxu0 0.0
        %1559 = vmatpush1.msra.mxu0 0.0
        %1560 = vmatprep.subr.mxu0 0.0
        %1561 = vmatpush1.msra.mxu0 0.0
        %1562 = vmatprep.subr.mxu0 0.0
        %1563 = vmatpush1.msra.mxu0 0.0
        %1564 = vmatprep.subr.mxu0 0.0
        %1565 = vmatpush1.msra.mxu0 0.0
        %1566 = vmatprep.subr.mxu0 0.0
        %1567 = vmatpush1.msra.mxu0 0.0
        %1568 = vmatprep.subr.mxu0 0.0
        %1569 = vmatpush1.msra.mxu0 0.0
        %1570 = vmatprep.subr.mxu0 0.0
        %1571 = vmatpush1.msra.mxu0 0.0
        %1572 = vmatprep.subr.mxu0 0.0
        %1573 = vmatpush1.msra.mxu0 0.0
        %1574 = vmatprep.subr.mxu0 0.0
        %1575 = vmatpush1.msra.mxu0 0.0
        %1576 = vmatprep.subr.mxu0 0.0
        %1577 = vmatpush1.msra.mxu0 0.0
        %1578 = vmatprep.subr.mxu0 0.0
        %1579 = vmatpush1.msra.mxu0 0.0
        %1580 = vmatprep.subr.mxu0 0.0
        %1581 = vmatpush1.msra.mxu0 0.0
        %1582 = vmatprep.mubr.f32.mxu0 0.0
        %1583 = vmatmul.mubr.f32.gmra.mrb[0].mxu0 %v1516
        %v1584 = vpop.f32.mrb[0].mxu0
        %v1585 = vadd.f32 0.0, %v1584
        %v1586 = vpop.f32.mrb[0].mxu0
        %1587 = vdwg.mxu0
        %v1589 = vsel %vm780, %v1362, 0
        %1591 = vmatprep.subr.mxu0 0.0
        %1592 = vmatpush1.msra.mxu0 %v1440
        %1593 = vmatprep.subr.mxu0 0.0
        %1594 = vmatpush1.msra.mxu0 0.0
        %1595 = vmatprep.subr.mxu0 0.0
        %1596 = vmatpush1.msra.mxu0 0.0
        %1597 = vmatprep.subr.mxu0 0.0
        %1598 = vmatpush1.msra.mxu0 0.0
        %1599 = vmatprep.subr.mxu0 0.0
        %1600 = vmatpush1.msra.mxu0 0.0
        %1601 = vmatprep.subr.mxu0 0.0
        %1602 = vmatpush1.msra.mxu0 0.0
        %1603 = vmatprep.subr.mxu0 0.0
        %1604 = vmatpush1.msra.mxu0 0.0
        %1605 = vmatprep.subr.mxu0 0.0
        %1606 = vmatpush1.msra.mxu0 0.0
        %1607 = vmatprep.subr.mxu0 0.0
        %1608 = vmatpush1.msra.mxu0 0.0
        %1609 = vmatprep.subr.mxu0 0.0
        %1610 = vmatpush1.msra.mxu0 0.0
        %1611 = vmatprep.subr.mxu0 0.0
        %1612 = vmatpush1.msra.mxu0 0.0
        %1613 = vmatprep.subr.mxu0 0.0
        %1614 = vmatpush1.msra.mxu0 0.0
        %1615 = vmatprep.subr.mxu0 0.0
        %1616 = vmatpush1.msra.mxu0 0.0
        %1617 = vmatprep.subr.mxu0 0.0
        %1618 = vmatpush1.msra.mxu0 0.0
        %1619 = vmatprep.subr.mxu0 0.0
        %1620 = vmatpush1.msra.mxu0 0.0
        %1621 = vmatprep.subr.mxu0 0.0
        %1622 = vmatpush1.msra.mxu0 0.0
        %1623 = vmatprep.subr.mxu0 0.0
        %1624 = vmatpush1.msra.mxu0 0.0
        %1625 = vmatprep.subr.mxu0 0.0
        %1626 = vmatpush1.msra.mxu0 0.0
        %1627 = vmatprep.subr.mxu0 0.0
        %1628 = vmatpush1.msra.mxu0 0.0
        %1629 = vmatprep.subr.mxu0 0.0
        %1630 = vmatpush1.msra.mxu0 0.0
        %1631 = vmatprep.subr.mxu0 0.0
        %1632 = vmatpush1.msra.mxu0 0.0
        %1633 = vmatprep.subr.mxu0 0.0
        %1634 = vmatpush1.msra.mxu0 0.0
        %1635 = vmatprep.subr.mxu0 0.0
        %1636 = vmatpush1.msra.mxu0 0.0
        %1637 = vmatprep.subr.mxu0 0.0
        %1638 = vmatpush1.msra.mxu0 0.0
        %1639 = vmatprep.subr.mxu0 0.0
        %1640 = vmatpush1.msra.mxu0 0.0
        %1641 = vmatprep.subr.mxu0 0.0
        %1642 = vmatpush1.msra.mxu0 0.0
        %1643 = vmatprep.subr.mxu0 0.0
        %1644 = vmatpush1.msra.mxu0 0.0
        %1645 = vmatprep.subr.mxu0 0.0
        %1646 = vmatpush1.msra.mxu0 0.0
        %1647 = vmatprep.subr.mxu0 0.0
        %1648 = vmatpush1.msra.mxu0 0.0
        %1649 = vmatprep.subr.mxu0 0.0
        %1650 = vmatpush1.msra.mxu0 0.0
        %1651 = vmatprep.subr.mxu0 0.0
        %1652 = vmatpush1.msra.mxu0 0.0
        %1653 = vmatprep.subr.mxu0 0.0
        %1654 = vmatpush1.msra.mxu0 0.0
        %1655 = vmatprep.mubr.f32.mxu0 0.0
        %1656 = vmatmul.mubr.f32.gmra.mrb[0].mxu0 %v1589
        %v1657 = vpop.f32.mrb[0].mxu0
        %v1658 = vadd.f32 0.0, %v1657
        %v1659 = vpop.f32.mrb[0].mxu0
        %1660 = vdwg.mxu0
        %v1662 = vsel %vm780, %v1435, 0
        %1664 = vmatprep.subr.mxu0 0.0
        %1665 = vmatpush1.msra.mxu0 %v1441
        %1666 = vmatprep.subr.mxu0 0.0
        %1667 = vmatpush1.msra.mxu0 0.0
        %1668 = vmatprep.subr.mxu0 0.0
        %1669 = vmatpush1.msra.mxu0 0.0
        %1670 = vmatprep.subr.mxu0 0.0
        %1671 = vmatpush1.msra.mxu0 0.0
        %1672 = vmatprep.subr.mxu0 0.0
        %1673 = vmatpush1.msra.mxu0 0.0
        %1674 = vmatprep.subr.mxu0 0.0
        %1675 = vmatpush1.msra.mxu0 0.0
        %1676 = vmatprep.subr.mxu0 0.0
        %1677 = vmatpush1.msra.mxu0 0.0
        %1678 = vmatprep.subr.mxu0 0.0
        %1679 = vmatpush1.msra.mxu0 0.0
        %1680 = vmatprep.subr.mxu0 0.0
        %1681 = vmatpush1.msra.mxu0 0.0
        %1682 = vmatprep.subr.mxu0 0.0
        %1683 = vmatpush1.msra.mxu0 0.0
        %1684 = vmatprep.subr.mxu0 0.0
        %1685 = vmatpush1.msra.mxu0 0.0
        %1686 = vmatprep.subr.mxu0 0.0
        %1687 = vmatpush1.msra.mxu0 0.0
        %1688 = vmatprep.subr.mxu0 0.0
        %1689 = vmatpush1.msra.mxu0 0.0
        %1690 = vmatprep.subr.mxu0 0.0
        %1691 = vmatpush1.msra.mxu0 0.0
        %1692 = vmatprep.subr.mxu0 0.0
        %1693 = vmatpush1.msra.mxu0 0.0
        %1694 = vmatprep.subr.mxu0 0.0
        %1695 = vmatpush1.msra.mxu0 0.0
        %1696 = vmatprep.subr.mxu0 0.0
        %1697 = vmatpush1.msra.mxu0 0.0
        %1698 = vmatprep.subr.mxu0 0.0
        %1699 = vmatpush1.msra.mxu0 0.0
        %1700 = vmatprep.subr.mxu0 0.0
        %1701 = vmatpush1.msra.mxu0 0.0
        %1702 = vmatprep.subr.mxu0 0.0
        %1703 = vmatpush1.msra.mxu0 0.0
        %1704 = vmatprep.subr.mxu0 0.0
        %1705 = vmatpush1.msra.mxu0 0.0
        %1706 = vmatprep.subr.mxu0 0.0
        %1707 = vmatpush1.msra.mxu0 0.0
        %1708 = vmatprep.subr.mxu0 0.0
        %1709 = vmatpush1.msra.mxu0 0.0
        %1710 = vmatprep.subr.mxu0 0.0
        %1711 = vmatpush1.msra.mxu0 0.0
        %1712 = vmatprep.subr.mxu0 0.0
        %1713 = vmatpush1.msra.mxu0 0.0
        %1714 = vmatprep.subr.mxu0 0.0
        %1715 = vmatpush1.msra.mxu0 0.0
        %1716 = vmatprep.subr.mxu0 0.0
        %1717 = vmatpush1.msra.mxu0 0.0
        %1718 = vmatprep.subr.mxu0 0.0
        %1719 = vmatpush1.msra.mxu0 0.0
        %1720 = vmatprep.subr.mxu0 0.0
        %1721 = vmatpush1.msra.mxu0 0.0
        %1722 = vmatprep.subr.mxu0 0.0
        %1723 = vmatpush1.msra.mxu0 0.0
        %1724 = vmatprep.subr.mxu0 0.0
        %1725 = vmatpush1.msra.mxu0 0.0
        %1726 = vmatprep.subr.mxu0 0.0
        %1727 = vmatpush1.msra.mxu0 0.0
        %1728 = vmatprep.mubr.f32.mxu0 0.0
        %1729 = vmatmul.mubr.f32.gmra.mrb[0].mxu0 %v1662
        %v1730 = vpop.f32.mrb[0].mxu0
        %v1731 = vadd.f32 0.0, %v1730
        %v1732 = vpop.f32.mrb[0].mxu0
        %1733 = vdwg.mxu0
        %vm1734 = vcmask 261120
        %v1735 = vsel %vm1734, %v1512, 0.0
        %v1736 = vsel %vm1734, %v1585, 0.0
        %v1737 = vadd.f32 %v1735, %v1736
        %v1738 = vsel %vm1734, %v1658, 0.0
        %v1739 = vadd.f32 %v1737, %v1738
        %v1740 = vsel %vm1734, %v1731, 0.0
        %v1741 = vadd.f32 %v1739, %v1740
        %v1742 = vld [vmem:[%s4] sm:$0x1]
        %v1744 = vlaneseq
        %v1745 = vshrl.u32 %v1744, 7
        %v1746 = vsub.s32 0, %v1745
        %v1747 = vrot.slane %v1742, %v1746
        %v1749 = vadd.f32 %v1741, %v1747
        %s1750 = scalar_lea.vmem %s507, %s758
        %v1751 = vld [vmem:[%s1750] sm:$0xff]
        %v1752 = vadd.f32 %v1749, %v1751
        %v1753 = vld [vmem:[%s7] sm:$0x1]
        %v1754 = vld [vmem:[%s8] sm:$0x1]
        %v1755 = vsel %vm1734, %v1752, 0.0
        %1756 = vadd.xlane.f32.xlu0 %v1755
        %v1757 = vpop.xlane.xlu0 %1756
        %v1758 = vrcp.pop 32.0
        %v1759 = vmul.f32 %v1757, %v1758
        %v1760 = vsub.f32 %v1752, %v1759
        %v1761 = vmul.f32 %v1760, %v1760
        %v1762 = vsel %vm1734, %v1761, 0.0
        %1763 = vadd.xlane.f32.xlu0 %v1762
        %v1764 = vpop.xlane.xlu0 %1763
        %v1765 = vmul.f32 %v1764, %v1758
        %v1766 = vadd.f32 %v1765, 1e-06
        %v1767 = vrsqrt.pop %v1766
        %v1768 = vmul.f32 %v1760, %v1767
        %v1770 = vlaneseq
        %v1771 = vshrl.u32 %v1770, 7
        %v1772 = vsub.s32 0, %v1771
        %v1773 = vrot.slane %v1753, %v1772
        %v1775 = vmul.f32 %v1768, %v1773
        %v1777 = vlaneseq
        %v1778 = vshrl.u32 %v1777, 7
        %v1779 = vsub.s32 0, %v1778
        %v1780 = vrot.slane %v1754, %v1779
        %v1782 = vadd.f32 %v1775, %v1780
        %v1783 = vld [vmem:[#allocation5] sm:$0xff]
        %v1784 = vld [vmem:[#allocation5 + $0x8] sm:$0xff]
        %v1785 = vld [vmem:[#allocation5 + $0x10] sm:$0xff]
        %v1786 = vld [vmem:[#allocation5 + $0x18] sm:$0xff]
        %v1787 = vld [vmem:[%s10] sm:$0x1]
        %v1789 = vlaneseq
        %v1790 = vshrl.u32 %v1789, 7
        %v1791 = vsub.s32 0, %v1790
        %v1792 = vrot.slane %v1787, %v1791
        %v1795 = vsel %vm1734, %v1782, 0
        %1797 = vmatprep.subr.mxu0 0.0
        %1798 = vmatpush1.msra.mxu0 %v1783
        %1799 = vmatprep.subr.mxu0 0.0
        %1800 = vmatpush1.msra.mxu0 %v1784
        %1801 = vmatprep.subr.mxu0 0.0
        %1802 = vmatpush1.msra.mxu0 %v1785
        %1803 = vmatprep.subr.mxu0 0.0
        %1804 = vmatpush1.msra.mxu0 %v1786
        %1805 = vmatprep.subr.mxu0 0.0
        %1806 = vmatpush1.msra.mxu0 0.0
        %1807 = vmatprep.subr.mxu0 0.0
        %1808 = vmatpush1.msra.mxu0 0.0
        %1809 = vmatprep.subr.mxu0 0.0
        %1810 = vmatpush1.msra.mxu0 0.0
        %1811 = vmatprep.subr.mxu0 0.0
        %1812 = vmatpush1.msra.mxu0 0.0
        %1813 = vmatprep.subr.mxu0 0.0
        %1814 = vmatpush1.msra.mxu0 0.0
        %1815 = vmatprep.subr.mxu0 0.0
        %1816 = vmatpush1.msra.mxu0 0.0
        %1817 = vmatprep.subr.mxu0 0.0
        %1818 = vmatpush1.msra.mxu0 0.0
        %1819 = vmatprep.subr.mxu0 0.0
        %1820 = vmatpush1.msra.mxu0 0.0
        %1821 = vmatprep.subr.mxu0 0.0
        %1822 = vmatpush1.msra.mxu0 0.0
        %1823 = vmatprep.subr.mxu0 0.0
        %1824 = vmatpush1.msra.mxu0 0.0
        %1825 = vmatprep.subr.mxu0 0.0
        %1826 = vmatpush1.msra.mxu0 0.0
        %1827 = vmatprep.subr.mxu0 0.0
        %1828 = vmatpush1.msra.mxu0 0.0
        %1829 = vmatprep.subr.mxu0 0.0
        %1830 = vmatpush1.msra.mxu0 0.0
        %1831 = vmatprep.subr.mxu0 0.0
        %1832 = vmatpush1.msra.mxu0 0.0
        %1833 = vmatprep.subr.mxu0 0.0
        %1834 = vmatpush1.msra.mxu0 0.0
        %1835 = vmatprep.subr.mxu0 0.0
        %1836 = vmatpush1.msra.mxu0 0.0
        %1837 = vmatprep.subr.mxu0 0.0
        %1838 = vmatpush1.msra.mxu0 0.0
        %1839 = vmatprep.subr.mxu0 0.0
        %1840 = vmatpush1.msra.mxu0 0.0
        %1841 = vmatprep.subr.mxu0 0.0
        %1842 = vmatpush1.msra.mxu0 0.0
        %1843 = vmatprep.subr.mxu0 0.0
        %1844 = vmatpush1.msra.mxu0 0.0
        %1845 = vmatprep.subr.mxu0 0.0
        %1846 = vmatpush1.msra.mxu0 0.0
        %1847 = vmatprep.subr.mxu0 0.0
        %1848 = vmatpush1.msra.mxu0 0.0
        %1849 = vmatprep.subr.mxu0 0.0
        %1850 = vmatpush1.msra.mxu0 0.0
        %1851 = vmatprep.subr.mxu0 0.0
        %1852 = vmatpush1.msra.mxu0 0.0
        %1853 = vmatprep.subr.mxu0 0.0
        %1854 = vmatpush1.msra.mxu0 0.0
        %1855 = vmatprep.subr.mxu0 0.0
        %1856 = vmatpush1.msra.mxu0 0.0
        %1857 = vmatprep.subr.mxu0 0.0
        %1858 = vmatpush1.msra.mxu0 0.0
        %1859 = vmatprep.subr.mxu0 0.0
        %1860 = vmatpush1.msra.mxu0 0.0
        %1861 = vmatprep.mubr.f32.mxu0 0.0
        %1862 = vmatmul.mubr.f32.gmra.mrb[0].mxu0 %v1795
        %v1863 = vpop.f32.mrb[0].mxu0
        %v1864 = vadd.f32 %v1792, %v1863
        %v1865 = vpop.f32.mrb[0].mxu0
        %1866 = vdwg.mxu0
        %v1867 = vmul.f32 %v1864, 0.5
        %v1868 = vmul.f32 %v1864, 0.70710677
        %v1869 = verf.f32.pop %v1868
        %v1870 = vadd.f32 %v1869, 1.0
        %v1871 = vmul.f32 %v1867, %v1870
        %v1872 = vld [vmem:[%s11] sm:$0xff]
        %v1873 = vld [vmem:[%s11 + $0x8] sm:$0xff]
        %v1874 = vld [vmem:[%s11 + $0x10] sm:$0xff]
        %v1875 = vld [vmem:[%s11 + $0x18] sm:$0xff]
        %v1876 = vld [vmem:[%s11 + $0x20] sm:$0xff]
        %v1877 = vld [vmem:[%s11 + $0x28] sm:$0xff]
        %v1878 = vld [vmem:[%s11 + $0x30] sm:$0xff]
        %v1879 = vld [vmem:[%s11 + $0x38] sm:$0xff]
        %v1880 = vld [vmem:[%s12] sm:$0x1]
        %v1882 = vlaneseq
        %v1883 = vshrl.u32 %v1882, 7
        %v1884 = vsub.s32 0, %v1883
        %v1885 = vrot.slane %v1880, %v1884
        %vm1887 = vcmask 523264
        %v1889 = vsel %vm1887, %v1871, 0
        %1891 = vmatprep.subr.mxu0 0.0
        %1892 = vmatpush1.msra.mxu0 %v1872
        %1893 = vmatprep.subr.mxu0 0.0
        %1894 = vmatpush1.msra.mxu0 %v1873
        %1895 = vmatprep.subr.mxu0 0.0
        %1896 = vmatpush1.msra.mxu0 %v1874
        %1897 = vmatprep.subr.mxu0 0.0
        %1898 = vmatpush1.msra.mxu0 %v1875
        %1899 = vmatprep.subr.mxu0 0.0
        %1900 = vmatpush1.msra.mxu0 %v1876
        %1901 = vmatprep.subr.mxu0 0.0
        %1902 = vmatpush1.msra.mxu0 %v1877
        %1903 = vmatprep.subr.mxu0 0.0
        %1904 = vmatpush1.msra.mxu0 %v1878
        %1905 = vmatprep.subr.mxu0 0.0
        %1906 = vmatpush1.msra.mxu0 %v1879
        %1907 = vmatprep.subr.mxu0 0.0
        %1908 = vmatpush1.msra.mxu0 0.0
        %1909 = vmatprep.subr.mxu0 0.0
        %1910 = vmatpush1.msra.mxu0 0.0
        %1911 = vmatprep.subr.mxu0 0.0
        %1912 = vmatpush1.msra.mxu0 0.0
        %1913 = vmatprep.subr.mxu0 0.0
        %1914 = vmatpush1.msra.mxu0 0.0
        %1915 = vmatprep.subr.mxu0 0.0
        %1916 = vmatpush1.msra.mxu0 0.0
        %1917 = vmatprep.subr.mxu0 0.0
        %1918 = vmatpush1.msra.mxu0 0.0
        %1919 = vmatprep.subr.mxu0 0.0
        %1920 = vmatpush1.msra.mxu0 0.0
        %1921 = vmatprep.subr.mxu0 0.0
        %1922 = vmatpush1.msra.mxu0 0.0
        %1923 = vmatprep.subr.mxu0 0.0
        %1924 = vmatpush1.msra.mxu0 0.0
        %1925 = vmatprep.subr.mxu0 0.0
        %1926 = vmatpush1.msra.mxu0 0.0
        %1927 = vmatprep.subr.mxu0 0.0
        %1928 = vmatpush1.msra.mxu0 0.0
        %1929 = vmatprep.subr.mxu0 0.0
        %1930 = vmatpush1.msra.mxu0 0.0
        %1931 = vmatprep.subr.mxu0 0.0
        %1932 = vmatpush1.msra.mxu0 0.0
        %1933 = vmatprep.subr.mxu0 0.0
        %1934 = vmatpush1.msra.mxu0 0.0
        %1935 = vmatprep.subr.mxu0 0.0
        %1936 = vmatpush1.msra.mxu0 0.0
        %1937 = vmatprep.subr.mxu0 0.0
        %1938 = vmatpush1.msra.mxu0 0.0
        %1939 = vmatprep.subr.mxu0 0.0
        %1940 = vmatpush1.msra.mxu0 0.0
        %1941 = vmatprep.subr.mxu0 0.0
        %1942 = vmatpush1.msra.mxu0 0.0
        %1943 = vmatprep.subr.mxu0 0.0
        %1944 = vmatpush1.msra.mxu0 0.0
        %1945 = vmatprep.subr.mxu0 0.0
        %1946 = vmatpush1.msra.mxu0 0.0
        %1947 = vmatprep.subr.mxu0 0.0
        %1948 = vmatpush1.msra.mxu0 0.0
        %1949 = vmatprep.subr.mxu0 0.0
        %1950 = vmatpush1.msra.mxu0 0.0
        %1951 = vmatprep.subr.mxu0 0.0
        %1952 = vmatpush1.msra.mxu0 0.0
        %1953 = vmatprep.subr.mxu0 0.0
        %1954 = vmatpush1.msra.mxu0 0.0
        %1955 = vmatprep.mubr.f32.mxu0 0.0
        %1956 = vmatmul.mubr.f32.gmra.mrb[0].mxu0 %v1889
        %v1957 = vpop.f32.mrb[0].mxu0
        %v1958 = vadd.f32 %v1885, %v1957
        %v1959 = vpop.f32.mrb[0].mxu0
        %1960 = vdwg.mxu0
        %v1961 = vadd.f32 %v1958, %v1752
        %1962 = vst.msk [vmem:[%s495] sm:$0xff] %vm1734, %v1961
        %s1963 = sand.u32 %s333, 1
        %s1964 = scalar_lea.sflag [#allocation7], %s1963
        %s1965 = sand.u32 %s333, 1
        %s1966 = smul.addr %s1965, 8
        %s1967 = scalar_lea.vmem [#allocation8], %s1966
        %s1968 = sand.u32 %s361, 1
        %s1969 = scalar_lea.sflag [#allocation10], %s1968
        %s1970 = sand.u32 %s361, 1
        %s1971 = smul.addr %s1970, 32
        %s1972 = scalar_lea.vmem [#allocation9], %s1971
        // Predicated region
        $region81: #{tpu_custom_call.1} parent=71 // pred_check
          %p1973 = pneg %p343
        $region82: #{tpu_custom_call.1} parent=71 // pred_check_branch
          %1975 = sbr.rel (%p1973) target = $region84
        $region83: #{tpu_custom_call.1} parent=71 // pred_region
          %s1977 = ssub.s32 128, 128
          %1978 = vsyncadd %s1964, %s1977
          %s1979 = smul.addr %s37, 2
          %s1980 = sadd.s32 %s38, %s1979
          %s1981 = smul.addr %s1980, 128
          %s1982 = scalar_lea.hbm %s13, %s1981
          %s1984 = sshll.u32 %s1967, 4
          %s1985 = int_to_ptr.vmem [resolvable:$true] %s1984
          %1987 = dma.vmem_to_hbm [thread:$0]  %s1985, 128, %s1982, %s1964
        $region84: #{tpu_custom_call.1} parent=71 // pred_fallthru
          _
        // Predicated region
        $region85: #{tpu_custom_call.1} parent=71 // pred_check
          %p1988 = pneg %p371
        $region86: #{tpu_custom_call.1} parent=71 // pred_check_branch
          %1990 = sbr.rel (%p1988) target = $region88
        $region87: #{tpu_custom_call.1} parent=71 // pred_region
          %s1992 = ssub.s32 512, 512
          %1993 = vsyncadd %s1969, %s1992
          %s1994 = smul.addr %s37, 8
          %s1995 = sadd.s32 %s38, %s1994
          %s1996 = smul.addr %s1995, 128
          %s1997 = scalar_lea.hbm %s14, %s1996
          %s1998 = sshll.u32 %s1972, 4
          %s1999 = int_to_ptr.vmem [resolvable:$true] %s1998
          %2004 = dma.vmem_to_hbm [thread:$0]  %s1999, 512, %s1997, %s1969, 128, 256, 8
        $region88: #{tpu_custom_call.1} parent=71 // pred_fallthru
          _
      $region72: #{tpu_custom_call.1} parent=5 // pred_fallthru
        _
      %p2005 = scmp.le.s32.totalorder 2, %s28
      // Predicated region
      $region89: #{tpu_custom_call.1} parent=5 // pred_check
        %p2006 = pneg %p2005
      $region90: #{tpu_custom_call.1} parent=5 // pred_check_branch
        %2008 = sbr.rel (%p2006) target = $region92
      $region91: #{tpu_custom_call.1} parent=5 // pred_region
        %s2009 = ssub.s32 %s28, 2
        // Predicated region
        $region93: #{tpu_custom_call.1} parent=91 // pred_check
          %p2010 = pneg %p349
        $region94: #{tpu_custom_call.1} parent=91 // pred_check_branch
          %2012 = sbr.rel (%p2010) target = $region96
        $region95: #{tpu_custom_call.1} parent=91 // pred_region
          %s2013 = sand.u32 %s334, 1
          %s2014 = scalar_lea.sflag [#allocation7], %s2013
          %s2015 = sand.u32 %s334, 1
          %s2016 = smul.addr %s2015, 8
          %s2017 = scalar_lea.vmem [#allocation8], %s2016
          %2018 = dma.done %s2014, 128
        $region96: #{tpu_custom_call.1} parent=91 // pred_fallthru
          _
        // Predicated region
        $region97: #{tpu_custom_call.1} parent=91 // pred_check
          %p2019 = pneg %p377
        $region98: #{tpu_custom_call.1} parent=91 // pred_check_branch
          %2021 = sbr.rel (%p2019) target = $region100
        $region99: #{tpu_custom_call.1} parent=91 // pred_region
          %s2022 = sand.u32 %s362, 1
          %s2023 = scalar_lea.sflag [#allocation10], %s2022
          %s2024 = sand.u32 %s362, 1
          %s2025 = smul.addr %s2024, 32
          %s2026 = scalar_lea.vmem [#allocation9], %s2025
          %2027 = dma.done %s2023, 512
        $region100: #{tpu_custom_call.1} parent=91 // pred_fallthru
          _
      $region92: #{tpu_custom_call.1} parent=5 // pred_fallthru
        _
    $region6: #{tpu_custom_call.1} parent=1 // loop_footer
      %s32 = sadd.s32 1, %s28
    $region7: #{tpu_custom_call.1} parent=1 // loop_footer_branch
      %27 = sbr.rel target = $region3
    $region8: #{tpu_custom_call.1} parent=1 // loop_exit
      _
    %2028 = vsyncpa [#allocation6], 1
    %s2029 = scalar_lea.sflag [#allocation6], 1
    %2030 = vsyncpa %s2029, 1
    %2031 = vsyncpa [#allocation7], 1
    %s2032 = scalar_lea.sflag [#allocation7], 1
    %2033 = vsyncpa %s2032, 1
    %2034 = vsyncpa [#allocation10], 1
    %s2035 = scalar_lea.sflag [#allocation10], 1
    %2036 = vsyncpa %s2035, 1

</llo_original>
